<compile_context>
chip_gen: v7x
topology: tpu7x:2x2x1
jax: 0.10.0
libtpu: 0.0.40
codegen_flags: <defaults>
</compile_context>

<pallas_src>
import math
from functools import partial

import jax
import jax.numpy as jnp
from jax.experimental import pallas as pl
from jax.experimental.pallas import tpu as pltpu

N_BATCH  = 4     # batch size
T_SEQ    = 8     # sequence length
N_OBS    = 4     # n_obs
N_STATES = 4     # n_states
HIDDEN   = 32    # GRU hidden size
DENSE    = 32    # dense layer width

_SUBLANE = 8     # f32 sublane tile height


def _sigmoid(x):
    # exp -> EUP, reciprocal -> EUP (approx), keeps the VALU slot free
    return pl.reciprocal(1.0 + jnp.exp(-x), approx=True)


def _softplus(x):
    return jnp.maximum(x, 0.0) + jnp.log(1.0 + jnp.exp(-jnp.abs(x)))


# --------------------------------------------------------------------------- #
# Fused kernel: GRU recurrence + dense head + Gaussian-Y log-evidence.
# Row layout everywhere: row = t * N_pad + n  (time-major, batch padded to 8).
# --------------------------------------------------------------------------- #
def _semidanse_unsup_kernel(y_ref,                       # (T*NP, n_obs)
                            wih_ref, whh_ref,            # (n_obs, 3H), (H, 3H)
                            bih_ref, bhh_ref,            # (1, 3H), (1, 3H)
                            wfc_ref, bfc_ref,            # (H, DENSE), (1, DENSE)
                            wmu_ref, bmu_ref,            # (DENSE, n_states), (1, n_states)
                            wvar_ref, bvar_ref,          # (DENSE, n_states), (1, n_states)
                            ht_ref,                      # (n_states, n_obs)   == H^T
                            muw_ref,                     # (1, n_obs)
                            m_ref,                       # (n_states, n_obs*n_obs): M[k, i*Dy+j] = H[i,k]H[j,k]
                            cw_ref,                      # (T*NP, n_obs*n_obs)  Cw tiled over t
                            out_ref,                     # (NP, 1) per-sample logprob summed over T
                            h_all):                      # VMEM scratch (T*NP, H)
    rows = y_ref.shape[0]
    n_pad = out_ref.shape[0]
    T = rows // n_pad
    Hh = whh_ref.shape[0]
    Dy = ht_ref.shape[1]
    jitter = 1e-6

    def dot(a, b):
        return jnp.dot(a, b, preferred_element_type=jnp.float32)

    # hoist invariant loads
    y_all = y_ref[...]
    wih = wih_ref[...]
    whh = whh_ref[...]
    bih = bih_ref[...]
    bhh = bhh_ref[...]

    # ---------------- GRU recurrence (unrolled, 2 MXU pushes per step) -------
    # NOTE: the time loop is inherently sequential (hidden-state carry); if it
    # were ever put on a grid axis, that axis must stay "arbitrary".
    h = jnp.zeros((n_pad, Hh), jnp.float32)
    for t in range(T):
        x_t = y_all[t * n_pad:(t + 1) * n_pad, :]            # (NP, n_obs)
        gi = dot(x_t, wih) + bih                              # (NP, 3H)
        gh = dot(h, whh) + bhh                                # (NP, 3H)
        r = _sigmoid(gi[:, 0:Hh] + gh[:, 0:Hh])
        z = _sigmoid(gi[:, Hh:2 * Hh] + gh[:, Hh:2 * Hh])
        n = jnp.tanh(gi[:, 2 * Hh:3 * Hh] + r * gh[:, 2 * Hh:3 * Hh])
        h = (1.0 - z) * n + z * h
        h_all[t * n_pad:(t + 1) * n_pad, :] = h               # aligned 8-row store

    # ---------------- dense head, batched over all T*NP rows -----------------
    hs = h_all[...]                                           # (T*NP, H)
    feat = jnp.maximum(dot(hs, wfc_ref[...]) + bfc_ref[...], 0.0)
    mu_all = dot(feat, wmu_ref[...]) + bmu_ref[...]           # (T*NP, n_states)
    var_all = _softplus(dot(feat, wvar_ref[...]) + bvar_ref[...])

    # ---------------- Gaussian-Y log-pdf epilogue -----------------------------
    # residual  r = y - (H mu + mu_w)           (T*NP, n_obs)
    resid = y_all - (dot(mu_all, ht_ref[...]) + muw_ref[...])
    # innovation covariance entries S[:, i*Dy+j] = sum_k H[i,k]H[j,k] var[:,k] + Cw[i,j]
    s_all = dot(var_all, m_ref[...]) + cw_ref[...]            # (T*NP, n_obs^2)

    def col(a, i):
        return a[:, i:i + 1]                                  # (T*NP, 1)

    S = [[col(s_all, i * Dy + j) for j in range(Dy)] for i in range(Dy)]
    r_cols = [col(resid, i) for i in range(Dy)]

    # batched Cholesky of the tiny Dy x Dy matrix, unrolled; each entry is a column
    L = [[None] * Dy for _ in range(Dy)]
    inv_d = [None] * Dy
    for i in range(Dy):
        for j in range(i + 1):
            s = S[i][j]
            for k in range(j):
                s = s - L[i][k] * L[j][k]
            if i == j:
                d = jnp.sqrt(s + jitter)
                L[i][i] = d
                inv_d[i] = 1.0 / d
            else:
                L[i][j] = s * inv_d[j]

    logdet = jnp.log(L[0][0])
    for i in range(1, Dy):
        logdet = logdet + jnp.log(L[i][i])
    logdet = 2.0 * logdet

    # forward substitution L w = resid ;  quad = ||w||^2 = resid^T S^{-1} resid
    w = [None] * Dy
    quad = None
    for i in range(Dy):
        s = r_cols[i]
        for k in range(i):
            s = s - L[i][k] * w[k]
        w[i] = s * inv_d[i]
        quad = w[i] * w[i] if quad is None else quad + w[i] * w[i]

    lp = (-0.5 * Dy * math.log(2.0 * math.pi)) - 0.5 * logdet - 0.5 * quad  # (T*NP, 1)

    # sum over time for each sample: row = t*NP + n  ->  aligned 8-row slices
    acc = lp[0:n_pad, :]
    for t in range(1, T):
        acc = acc + lp[t * n_pad:(t + 1) * n_pad, :]
    out_ref[...] = acc


def _round_up(x, m):
    return (x + m - 1) // m * m


def semidanse_unsup_logprob(params, Yi, Cw):
    """Per-sample log N(y_t; H mu_t + mu_w, H diag(var_t) H^T + Cw), summed over T."""
    N, T, Dy = Yi.shape
    Dx = params["H"].shape[1]
    hid = params["w_hh"].shape[0]
    NP = _round_up(max(N, _SUBLANE), _SUBLANE)

    # pad batch to a sublane multiple (identity Cw for padded rows keeps them finite)
    y_p = jnp.zeros((NP, T, Dy), jnp.float32).at[:N].set(Yi)
    cw_p = jnp.broadcast_to(jnp.eye(Dy, dtype=jnp.float32), (NP, Dy, Dy)).at[:N].set(Cw)

    # time-major flat rows: row = t*NP + n  (all layout prep is cheap XLA, outside the kernel)
    y_flat = jnp.transpose(y_p, (1, 0, 2)).reshape(T * NP, Dy)
    cw_flat = jnp.tile(cw_p.reshape(NP, Dy * Dy), (T, 1))

    Hm = params["H"]
    m_mat = (Hm[:, None, :] * Hm[None, :, :]).reshape(Dy * Dy, Dx).T     # (n_states, n_obs^2)
    h_t = Hm.T                                                           # (n_states, n_obs)
    muw_row = params["mu_w"].reshape(1, Dy)

    vspec = pl.BlockSpec(memory_space=pltpu.MemorySpace.VMEM)
    out = pl.pallas_call(
        _semidanse_unsup_kernel,
        out_shape=jax.ShapeDtypeStruct((NP, 1), jnp.float32),
        in_specs=[vspec] * 15,
        out_specs=vspec,
        scratch_shapes=[pltpu.VMEM((T * NP, hid), jnp.float32)],
    )(y_flat,
      params["w_ih"], params["w_hh"], params["b_ih"], params["b_hh"],
      params["w_fc"], params["b_fc"], params["w_mu"], params["b_mu"],
      params["w_var"], params["b_var"],
      h_t, muw_row, m_mat, cw_flat)
    return out[:N, 0]


# --------------------------------------------------------------------------- #
# SemiDANSE.forward (default flags): unsupervised Gaussian-Y log-evidence.
# --------------------------------------------------------------------------- #
@partial(jax.jit, static_argnames=("use_sup_loss", "use_unsup_loss"))
def semidanse_forward(params, Yi_unsup, Yi_sup, Xi_sup, Cw_unsup, Cw_sup,
                      use_sup_loss=False, use_unsup_loss=True):
    if use_unsup_loss:
        if use_sup_loss:
            # TODO(synk): supervised branch (Kalman posterior update + Gaussian-X log-pdf) not implemented.
            raise NotImplementedError("supervised loss branch not implemented")
        logprob_u = semidanse_unsup_logprob(params, Yi_unsup, Cw_unsup)
        return jnp.mean(logprob_u)
    elif use_sup_loss:
        # TODO(synk): supervised-only branch not implemented.
        raise NotImplementedError("supervised loss branch not implemented")
    return jnp.float32(0.0)


def init_params(key):
    ks = jax.random.split(key, 11)

    def u(k, shape, fan_in):
        b = 1.0 / math.sqrt(fan_in)
        return jax.random.uniform(k, shape, jnp.float32, -b, b)

    # GRU/Linear weights stored pre-transposed; GRU gates concatenated as (r|z|n).
    return dict(
        w_ih=u(ks[0], (N_OBS, 3 * HIDDEN), HIDDEN),
        w_hh=u(ks[1], (HIDDEN, 3 * HIDDEN), HIDDEN),
        b_ih=u(ks[2], (1, 3 * HIDDEN), HIDDEN),
        b_hh=u(ks[3], (1, 3 * HIDDEN), HIDDEN),
        w_fc=u(ks[4], (HIDDEN, DENSE), HIDDEN),
        b_fc=u(ks[5], (1, DENSE), HIDDEN),
        w_mu=u(ks[6], (DENSE, N_STATES), DENSE),
        b_mu=u(ks[7], (1, N_STATES), DENSE),
        w_var=u(ks[8], (DENSE, N_STATES), DENSE),
        b_var=u(ks[9], (1, N_STATES), DENSE),
        H=jax.random.normal(ks[10], (N_OBS, N_STATES), jnp.float32) * 0.5,
        mu_w=jnp.full((N_OBS, 1), 0.1, jnp.float32),
    )


if __name__ == "__main__":
    key = jax.random.PRNGKey(0)
    kp, ky, kys, kxs, kc1, kc2 = jax.random.split(key, 6)
    params = init_params(kp)

    Yi_unsup = jax.random.normal(ky, (N_BATCH, T_SEQ, N_OBS), jnp.float32)
    Yi_sup = jax.random.normal(kys, (N_BATCH, T_SEQ, N_OBS), jnp.float32)
    Xi_sup = jax.random.normal(kxs, (N_BATCH, T_SEQ, N_STATES), jnp.float32)

    def make_spd(k):
        a = jax.random.normal(k, (N_BATCH, N_OBS, N_OBS), jnp.float32) * 0.1
        eye = jnp.eye(N_OBS, dtype=jnp.float32)[None]
        return 0.2 * eye + jnp.einsum('nij,nkj->nik', a, a)

    Cw_unsup = make_spd(kc1)
    Cw_sup = make_spd(kc2)

    out = semidanse_forward(params, Yi_unsup, Yi_sup, Xi_sup, Cw_unsup, Cw_sup)
    out = jax.block_until_ready(out)
    assert out.shape == () and jnp.isfinite(out)
    print("KERNEL_OK")
</pallas_src>

<mosaic_0001>
module attributes {stable_mosaic.version = 11 : i64} {
  func.func @_semidanse_unsup_kernel(%arg0: memref<64x4xf32, #tpu.memory_space<vmem>>, %arg1: memref<4x96xf32, #tpu.memory_space<vmem>>, %arg2: memref<32x96xf32, #tpu.memory_space<vmem>>, %arg3: memref<1x96xf32, #tpu.memory_space<vmem>>, %arg4: memref<1x96xf32, #tpu.memory_space<vmem>>, %arg5: memref<32x32xf32, #tpu.memory_space<vmem>>, %arg6: memref<1x32xf32, #tpu.memory_space<vmem>>, %arg7: memref<32x4xf32, #tpu.memory_space<vmem>>, %arg8: memref<1x4xf32, #tpu.memory_space<vmem>>, %arg9: memref<32x4xf32, #tpu.memory_space<vmem>>, %arg10: memref<1x4xf32, #tpu.memory_space<vmem>>, %arg11: memref<4x4xf32, #tpu.memory_space<vmem>>, %arg12: memref<1x4xf32, #tpu.memory_space<vmem>>, %arg13: memref<4x16xf32, #tpu.memory_space<vmem>>, %arg14: memref<64x16xf32, #tpu.memory_space<vmem>>, %arg15: memref<8x1xf32, #tpu.memory_space<vmem>>, %arg16: memref<64x32xf32, #tpu.memory_space<vmem>>) attributes {dimension_semantics = [], scalar_prefetch = 0 : i64, scratch_operands = 1 : i64, tpu.core_type = #tpu.core_type<tc>} {
    %c0 = arith.constant 0 : index
    %c0_0 = arith.constant 0 : index
    %0 = vector.load %arg0[%c0, %c0_0] : memref<64x4xf32, #tpu.memory_space<vmem>>, vector<64x4xf32>
    %c0_1 = arith.constant 0 : index
    %c0_2 = arith.constant 0 : index
    %1 = vector.load %arg1[%c0_1, %c0_2] : memref<4x96xf32, #tpu.memory_space<vmem>>, vector<4x96xf32>
    %c0_3 = arith.constant 0 : index
    %c0_4 = arith.constant 0 : index
    %2 = vector.load %arg2[%c0_3, %c0_4] : memref<32x96xf32, #tpu.memory_space<vmem>>, vector<32x96xf32>
    %c0_5 = arith.constant 0 : index
    %c0_6 = arith.constant 0 : index
    %3 = vector.load %arg3[%c0_5, %c0_6] : memref<1x96xf32, #tpu.memory_space<vmem>>, vector<1x96xf32>
    %c0_7 = arith.constant 0 : index
    %c0_8 = arith.constant 0 : index
    %4 = vector.load %arg4[%c0_7, %c0_8] : memref<1x96xf32, #tpu.memory_space<vmem>>, vector<1x96xf32>
    %cst = arith.constant 0.000000e+00 : f32
    %5 = vector.broadcast %cst : f32 to vector<8x32xf32>
    %6 = vector.extract_strided_slice %0 {offsets = [0, 0], sizes = [8, 4], strides = [1, 1]} : vector<64x4xf32> to vector<8x4xf32>
    %cst_9 = arith.constant dense<0.000000e+00> : vector<8x96xf32>
    %7 = tpu.matmul %6, %1, %cst_9 {dimension_numbers = #tpu.dot_dimension_numbers<[1], [0], [0], [1], [0, 0, 1, 1], [], []>} : vector<8x4xf32>, vector<4x96xf32>, vector<8x96xf32> -> vector<8x96xf32>
    %8 = vector.broadcast %3 : vector<1x96xf32> to vector<8x96xf32>
    %9 = arith.addf %7, %8 : vector<8x96xf32>
    %cst_10 = arith.constant dense<0.000000e+00> : vector<8x96xf32>
    %10 = tpu.matmul %5, %2, %cst_10 {dimension_numbers = #tpu.dot_dimension_numbers<[1], [0], [0], [1], [0, 0, 1, 1], [], []>} : vector<8x32xf32>, vector<32x96xf32>, vector<8x96xf32> -> vector<8x96xf32>
    %11 = vector.broadcast %4 : vector<1x96xf32> to vector<8x96xf32>
    %12 = arith.addf %10, %11 : vector<8x96xf32>
    %13 = vector.extract_strided_slice %9 {offsets = [0, 0], sizes = [8, 32], strides = [1, 1]} : vector<8x96xf32> to vector<8x32xf32>
    %14 = vector.extract_strided_slice %12 {offsets = [0, 0], sizes = [8, 32], strides = [1, 1]} : vector<8x96xf32> to vector<8x32xf32>
    %15 = arith.addf %13, %14 : vector<8x32xf32>
    %cst_11 = arith.constant 0.000000e+00 : f32
    %16 = vector.broadcast %cst_11 : f32 to vector<8x32xf32>
    %17 = arith.subf %16, %15 : vector<8x32xf32>
    %18 = math.exp %17 : vector<8x32xf32>
    %cst_12 = arith.constant 1.000000e+00 : f32
    %19 = vector.broadcast %cst_12 : f32 to vector<8x32xf32>
    %20 = arith.addf %19, %18 : vector<8x32xf32>
    %21 = tpu.reciprocal %20 {approx = true} : vector<8x32xf32> -> vector<8x32xf32>
    %22 = vector.extract_strided_slice %9 {offsets = [0, 32], sizes = [8, 32], strides = [1, 1]} : vector<8x96xf32> to vector<8x32xf32>
    %23 = vector.extract_strided_slice %12 {offsets = [0, 32], sizes = [8, 32], strides = [1, 1]} : vector<8x96xf32> to vector<8x32xf32>
    %24 = arith.addf %22, %23 : vector<8x32xf32>
    %cst_13 = arith.constant 0.000000e+00 : f32
    %25 = vector.broadcast %cst_13 : f32 to vector<8x32xf32>
    %26 = arith.subf %25, %24 : vector<8x32xf32>
    %27 = math.exp %26 : vector<8x32xf32>
    %cst_14 = arith.constant 1.000000e+00 : f32
    %28 = vector.broadcast %cst_14 : f32 to vector<8x32xf32>
    %29 = arith.addf %28, %27 : vector<8x32xf32>
    %30 = tpu.reciprocal %29 {approx = true} : vector<8x32xf32> -> vector<8x32xf32>
    %31 = vector.extract_strided_slice %9 {offsets = [0, 64], sizes = [8, 32], strides = [1, 1]} : vector<8x96xf32> to vector<8x32xf32>
    %32 = vector.extract_strided_slice %12 {offsets = [0, 64], sizes = [8, 32], strides = [1, 1]} : vector<8x96xf32> to vector<8x32xf32>
    %33 = arith.mulf %21, %32 : vector<8x32xf32>
    %34 = arith.addf %31, %33 : vector<8x32xf32>
    %35 = math.tanh %34 : vector<8x32xf32>
    %cst_15 = arith.constant 1.000000e+00 : f32
    %36 = vector.broadcast %cst_15 : f32 to vector<8x32xf32>
    %37 = arith.subf %36, %30 : vector<8x32xf32>
    %38 = arith.mulf %37, %35 : vector<8x32xf32>
    %39 = arith.mulf %30, %5 : vector<8x32xf32>
    %40 = arith.addf %38, %39 : vector<8x32xf32>
    %c0_16 = arith.constant 0 : index
    %c0_17 = arith.constant 0 : index
    %41 = vector.load %arg16[%c0_16, %c0_17] : memref<64x32xf32, #tpu.memory_space<vmem>>, vector<8x32xf32>
    tpu.vector_store %arg16[%c0_16, %c0_17], %40 {strides = array<i32>} : memref<64x32xf32, #tpu.memory_space<vmem>>, vector<8x32xf32>,
    %42 = vector.extract_strided_slice %0 {offsets = [8, 0], sizes = [8, 4], strides = [1, 1]} : vector<64x4xf32> to vector<8x4xf32>
    %cst_18 = arith.constant dense<0.000000e+00> : vector<8x96xf32>
    %43 = tpu.matmul %42, %1, %cst_18 {dimension_numbers = #tpu.dot_dimension_numbers<[1], [0], [0], [1], [0, 0, 1, 1], [], []>} : vector<8x4xf32>, vector<4x96xf32>, vector<8x96xf32> -> vector<8x96xf32>
    %44 = vector.broadcast %3 : vector<1x96xf32> to vector<8x96xf32>
    %45 = arith.addf %43, %44 : vector<8x96xf32>
    %cst_19 = arith.constant dense<0.000000e+00> : vector<8x96xf32>
    %46 = tpu.matmul %40, %2, %cst_19 {dimension_numbers = #tpu.dot_dimension_numbers<[1], [0], [0], [1], [0, 0, 1, 1], [], []>} : vector<8x32xf32>, vector<32x96xf32>, vector<8x96xf32> -> vector<8x96xf32>
    %47 = vector.broadcast %4 : vector<1x96xf32> to vector<8x96xf32>
    %48 = arith.addf %46, %47 : vector<8x96xf32>
    %49 = vector.extract_strided_slice %45 {offsets = [0, 0], sizes = [8, 32], strides = [1, 1]} : vector<8x96xf32> to vector<8x32xf32>
    %50 = vector.extract_strided_slice %48 {offsets = [0, 0], sizes = [8, 32], strides = [1, 1]} : vector<8x96xf32> to vector<8x32xf32>
    %51 = arith.addf %49, %50 : vector<8x32xf32>
    %cst_20 = arith.constant 0.000000e+00 : f32
    %52 = vector.broadcast %cst_20 : f32 to vector<8x32xf32>
    %53 = arith.subf %52, %51 : vector<8x32xf32>
    %54 = math.exp %53 : vector<8x32xf32>
    %cst_21 = arith.constant 1.000000e+00 : f32
    %55 = vector.broadcast %cst_21 : f32 to vector<8x32xf32>
    %56 = arith.addf %55, %54 : vector<8x32xf32>
    %57 = tpu.reciprocal %56 {approx = true} : vector<8x32xf32> -> vector<8x32xf32>
    %58 = vector.extract_strided_slice %45 {offsets = [0, 32], sizes = [8, 32], strides = [1, 1]} : vector<8x96xf32> to vector<8x32xf32>
    %59 = vector.extract_strided_slice %48 {offsets = [0, 32], sizes = [8, 32], strides = [1, 1]} : vector<8x96xf32> to vector<8x32xf32>
    %60 = arith.addf %58, %59 : vector<8x32xf32>
    %cst_22 = arith.constant 0.000000e+00 : f32
    %61 = vector.broadcast %cst_22 : f32 to vector<8x32xf32>
    %62 = arith.subf %61, %60 : vector<8x32xf32>
    %63 = math.exp %62 : vector<8x32xf32>
    %cst_23 = arith.constant 1.000000e+00 : f32
    %64 = vector.broadcast %cst_23 : f32 to vector<8x32xf32>
    %65 = arith.addf %64, %63 : vector<8x32xf32>
    %66 = tpu.reciprocal %65 {approx = true} : vector<8x32xf32> -> vector<8x32xf32>
    %67 = vector.extract_strided_slice %45 {offsets = [0, 64], sizes = [8, 32], strides = [1, 1]} : vector<8x96xf32> to vector<8x32xf32>
    %68 = vector.extract_strided_slice %48 {offsets = [0, 64], sizes = [8, 32], strides = [1, 1]} : vector<8x96xf32> to vector<8x32xf32>
    %69 = arith.mulf %57, %68 : vector<8x32xf32>
    %70 = arith.addf %67, %69 : vector<8x32xf32>
    %71 = math.tanh %70 : vector<8x32xf32>
    %cst_24 = arith.constant 1.000000e+00 : f32
    %72 = vector.broadcast %cst_24 : f32 to vector<8x32xf32>
    %73 = arith.subf %72, %66 : vector<8x32xf32>
    %74 = arith.mulf %73, %71 : vector<8x32xf32>
    %75 = arith.mulf %66, %40 : vector<8x32xf32>
    %76 = arith.addf %74, %75 : vector<8x32xf32>
    %c8 = arith.constant 8 : index
    %c0_25 = arith.constant 0 : index
    %77 = vector.load %arg16[%c8, %c0_25] : memref<64x32xf32, #tpu.memory_space<vmem>>, vector<8x32xf32>
    tpu.vector_store %arg16[%c8, %c0_25], %76 {strides = array<i32>} : memref<64x32xf32, #tpu.memory_space<vmem>>, vector<8x32xf32>,
    %78 = vector.extract_strided_slice %0 {offsets = [16, 0], sizes = [8, 4], strides = [1, 1]} : vector<64x4xf32> to vector<8x4xf32>
    %cst_26 = arith.constant dense<0.000000e+00> : vector<8x96xf32>
    %79 = tpu.matmul %78, %1, %cst_26 {dimension_numbers = #tpu.dot_dimension_numbers<[1], [0], [0], [1], [0, 0, 1, 1], [], []>} : vector<8x4xf32>, vector<4x96xf32>, vector<8x96xf32> -> vector<8x96xf32>
    %80 = vector.broadcast %3 : vector<1x96xf32> to vector<8x96xf32>
    %81 = arith.addf %79, %80 : vector<8x96xf32>
    %cst_27 = arith.constant dense<0.000000e+00> : vector<8x96xf32>
    %82 = tpu.matmul %76, %2, %cst_27 {dimension_numbers = #tpu.dot_dimension_numbers<[1], [0], [0], [1], [0, 0, 1, 1], [], []>} : vector<8x32xf32>, vector<32x96xf32>, vector<8x96xf32> -> vector<8x96xf32>
    %83 = vector.broadcast %4 : vector<1x96xf32> to vector<8x96xf32>
    %84 = arith.addf %82, %83 : vector<8x96xf32>
    %85 = vector.extract_strided_slice %81 {offsets = [0, 0], sizes = [8, 32], strides = [1, 1]} : vector<8x96xf32> to vector<8x32xf32>
    %86 = vector.extract_strided_slice %84 {offsets = [0, 0], sizes = [8, 32], strides = [1, 1]} : vector<8x96xf32> to vector<8x32xf32>
    %87 = arith.addf %85, %86 : vector<8x32xf32>
    %cst_28 = arith.constant 0.000000e+00 : f32
    %88 = vector.broadcast %cst_28 : f32 to vector<8x32xf32>
    %89 = arith.subf %88, %87 : vector<8x32xf32>
    %90 = math.exp %89 : vector<8x32xf32>
    %cst_29 = arith.constant 1.000000e+00 : f32
    %91 = vector.broadcast %cst_29 : f32 to vector<8x32xf32>
    %92 = arith.addf %91, %90 : vector<8x32xf32>
    %93 = tpu.reciprocal %92 {approx = true} : vector<8x32xf32> -> vector<8x32xf32>
    %94 = vector.extract_strided_slice %81 {offsets = [0, 32], sizes = [8, 32], strides = [1, 1]} : vector<8x96xf32> to vector<8x32xf32>
    %95 = vector.extract_strided_slice %84 {offsets = [0, 32], sizes = [8, 32], strides = [1, 1]} : vector<8x96xf32> to vector<8x32xf32>
    %96 = arith.addf %94, %95 : vector<8x32xf32>
    %cst_30 = arith.constant 0.000000e+00 : f32
    %97 = vector.broadcast %cst_30 : f32 to vector<8x32xf32>
    %98 = arith.subf %97, %96 : vector<8x32xf32>
    %99 = math.exp %98 : vector<8x32xf32>
    %cst_31 = arith.constant 1.000000e+00 : f32
    %100 = vector.broadcast %cst_31 : f32 to vector<8x32xf32>
    %101 = arith.addf %100, %99 : vector<8x32xf32>
    %102 = tpu.reciprocal %101 {approx = true} : vector<8x32xf32> -> vector<8x32xf32>
    %103 = vector.extract_strided_slice %81 {offsets = [0, 64], sizes = [8, 32], strides = [1, 1]} : vector<8x96xf32> to vector<8x32xf32>
    %104 = vector.extract_strided_slice %84 {offsets = [0, 64], sizes = [8, 32], strides = [1, 1]} : vector<8x96xf32> to vector<8x32xf32>
    %105 = arith.mulf %93, %104 : vector<8x32xf32>
    %106 = arith.addf %103, %105 : vector<8x32xf32>
    %107 = math.tanh %106 : vector<8x32xf32>
    %cst_32 = arith.constant 1.000000e+00 : f32
    %108 = vector.broadcast %cst_32 : f32 to vector<8x32xf32>
    %109 = arith.subf %108, %102 : vector<8x32xf32>
    %110 = arith.mulf %109, %107 : vector<8x32xf32>
    %111 = arith.mulf %102, %76 : vector<8x32xf32>
    %112 = arith.addf %110, %111 : vector<8x32xf32>
    %c16 = arith.constant 16 : index
    %c0_33 = arith.constant 0 : index
    %113 = vector.load %arg16[%c16, %c0_33] : memref<64x32xf32, #tpu.memory_space<vmem>>, vector<8x32xf32>
    tpu.vector_store %arg16[%c16, %c0_33], %112 {strides = array<i32>} : memref<64x32xf32, #tpu.memory_space<vmem>>, vector<8x32xf32>,
    %114 = vector.extract_strided_slice %0 {offsets = [24, 0], sizes = [8, 4], strides = [1, 1]} : vector<64x4xf32> to vector<8x4xf32>
    %cst_34 = arith.constant dense<0.000000e+00> : vector<8x96xf32>
    %115 = tpu.matmul %114, %1, %cst_34 {dimension_numbers = #tpu.dot_dimension_numbers<[1], [0], [0], [1], [0, 0, 1, 1], [], []>} : vector<8x4xf32>, vector<4x96xf32>, vector<8x96xf32> -> vector<8x96xf32>
    %116 = vector.broadcast %3 : vector<1x96xf32> to vector<8x96xf32>
    %117 = arith.addf %115, %116 : vector<8x96xf32>
    %cst_35 = arith.constant dense<0.000000e+00> : vector<8x96xf32>
    %118 = tpu.matmul %112, %2, %cst_35 {dimension_numbers = #tpu.dot_dimension_numbers<[1], [0], [0], [1], [0, 0, 1, 1], [], []>} : vector<8x32xf32>, vector<32x96xf32>, vector<8x96xf32> -> vector<8x96xf32>
    %119 = vector.broadcast %4 : vector<1x96xf32> to vector<8x96xf32>
    %120 = arith.addf %118, %119 : vector<8x96xf32>
    %121 = vector.extract_strided_slice %117 {offsets = [0, 0], sizes = [8, 32], strides = [1, 1]} : vector<8x96xf32> to vector<8x32xf32>
    %122 = vector.extract_strided_slice %120 {offsets = [0, 0], sizes = [8, 32], strides = [1, 1]} : vector<8x96xf32> to vector<8x32xf32>
    %123 = arith.addf %121, %122 : vector<8x32xf32>
    %cst_36 = arith.constant 0.000000e+00 : f32
    %124 = vector.broadcast %cst_36 : f32 to vector<8x32xf32>
    %125 = arith.subf %124, %123 : vector<8x32xf32>
    %126 = math.exp %125 : vector<8x32xf32>
    %cst_37 = arith.constant 1.000000e+00 : f32
    %127 = vector.broadcast %cst_37 : f32 to vector<8x32xf32>
    %128 = arith.addf %127, %126 : vector<8x32xf32>
    %129 = tpu.reciprocal %128 {approx = true} : vector<8x32xf32> -> vector<8x32xf32>
    %130 = vector.extract_strided_slice %117 {offsets = [0, 32], sizes = [8, 32], strides = [1, 1]} : vector<8x96xf32> to vector<8x32xf32>
    %131 = vector.extract_strided_slice %120 {offsets = [0, 32], sizes = [8, 32], strides = [1, 1]} : vector<8x96xf32> to vector<8x32xf32>
    %132 = arith.addf %130, %131 : vector<8x32xf32>
    %cst_38 = arith.constant 0.000000e+00 : f32
    %133 = vector.broadcast %cst_38 : f32 to vector<8x32xf32>
    %134 = arith.subf %133, %132 : vector<8x32xf32>
    %135 = math.exp %134 : vector<8x32xf32>
    %cst_39 = arith.constant 1.000000e+00 : f32
    %136 = vector.broadcast %cst_39 : f32 to vector<8x32xf32>
    %137 = arith.addf %136, %135 : vector<8x32xf32>
    %138 = tpu.reciprocal %137 {approx = true} : vector<8x32xf32> -> vector<8x32xf32>
    %139 = vector.extract_strided_slice %117 {offsets = [0, 64], sizes = [8, 32], strides = [1, 1]} : vector<8x96xf32> to vector<8x32xf32>
    %140 = vector.extract_strided_slice %120 {offsets = [0, 64], sizes = [8, 32], strides = [1, 1]} : vector<8x96xf32> to vector<8x32xf32>
    %141 = arith.mulf %129, %140 : vector<8x32xf32>
    %142 = arith.addf %139, %141 : vector<8x32xf32>
    %143 = math.tanh %142 : vector<8x32xf32>
    %cst_40 = arith.constant 1.000000e+00 : f32
    %144 = vector.broadcast %cst_40 : f32 to vector<8x32xf32>
    %145 = arith.subf %144, %138 : vector<8x32xf32>
    %146 = arith.mulf %145, %143 : vector<8x32xf32>
    %147 = arith.mulf %138, %112 : vector<8x32xf32>
    %148 = arith.addf %146, %147 : vector<8x32xf32>
    %c24 = arith.constant 24 : index
    %c0_41 = arith.constant 0 : index
    %149 = vector.load %arg16[%c24, %c0_41] : memref<64x32xf32, #tpu.memory_space<vmem>>, vector<8x32xf32>
    tpu.vector_store %arg16[%c24, %c0_41], %148 {strides = array<i32>} : memref<64x32xf32, #tpu.memory_space<vmem>>, vector<8x32xf32>,
    %150 = vector.extract_strided_slice %0 {offsets = [32, 0], sizes = [8, 4], strides = [1, 1]} : vector<64x4xf32> to vector<8x4xf32>
    %cst_42 = arith.constant dense<0.000000e+00> : vector<8x96xf32>
    %151 = tpu.matmul %150, %1, %cst_42 {dimension_numbers = #tpu.dot_dimension_numbers<[1], [0], [0], [1], [0, 0, 1, 1], [], []>} : vector<8x4xf32>, vector<4x96xf32>, vector<8x96xf32> -> vector<8x96xf32>
    %152 = vector.broadcast %3 : vector<1x96xf32> to vector<8x96xf32>
    %153 = arith.addf %151, %152 : vector<8x96xf32>
    %cst_43 = arith.constant dense<0.000000e+00> : vector<8x96xf32>
    %154 = tpu.matmul %148, %2, %cst_43 {dimension_numbers = #tpu.dot_dimension_numbers<[1], [0], [0], [1], [0, 0, 1, 1], [], []>} : vector<8x32xf32>, vector<32x96xf32>, vector<8x96xf32> -> vector<8x96xf32>
    %155 = vector.broadcast %4 : vector<1x96xf32> to vector<8x96xf32>
    %156 = arith.addf %154, %155 : vector<8x96xf32>
    %157 = vector.extract_strided_slice %153 {offsets = [0, 0], sizes = [8, 32], strides = [1, 1]} : vector<8x96xf32> to vector<8x32xf32>
    %158 = vector.extract_strided_slice %156 {offsets = [0, 0], sizes = [8, 32], strides = [1, 1]} : vector<8x96xf32> to vector<8x32xf32>
    %159 = arith.addf %157, %158 : vector<8x32xf32>
    %cst_44 = arith.constant 0.000000e+00 : f32
    %160 = vector.broadcast %cst_44 : f32 to vector<8x32xf32>
    %161 = arith.subf %160, %159 : vector<8x32xf32>
    %162 = math.exp %161 : vector<8x32xf32>
    %cst_45 = arith.constant 1.000000e+00 : f32
    %163 = vector.broadcast %cst_45 : f32 to vector<8x32xf32>
    %164 = arith.addf %163, %162 : vector<8x32xf32>
    %165 = tpu.reciprocal %164 {approx = true} : vector<8x32xf32> -> vector<8x32xf32>
    %166 = vector.extract_strided_slice %153 {offsets = [0, 32], sizes = [8, 32], strides = [1, 1]} : vector<8x96xf32> to vector<8x32xf32>
    %167 = vector.extract_strided_slice %156 {offsets = [0, 32], sizes = [8, 32], strides = [1, 1]} : vector<8x96xf32> to vector<8x32xf32>
    %168 = arith.addf %166, %167 : vector<8x32xf32>
    %cst_46 = arith.constant 0.000000e+00 : f32
    %169 = vector.broadcast %cst_46 : f32 to vector<8x32xf32>
    %170 = arith.subf %169, %168 : vector<8x32xf32>
    %171 = math.exp %170 : vector<8x32xf32>
    %cst_47 = arith.constant 1.000000e+00 : f32
    %172 = vector.broadcast %cst_47 : f32 to vector<8x32xf32>
    %173 = arith.addf %172, %171 : vector<8x32xf32>
    %174 = tpu.reciprocal %173 {approx = true} : vector<8x32xf32> -> vector<8x32xf32>
    %175 = vector.extract_strided_slice %153 {offsets = [0, 64], sizes = [8, 32], strides = [1, 1]} : vector<8x96xf32> to vector<8x32xf32>
    %176 = vector.extract_strided_slice %156 {offsets = [0, 64], sizes = [8, 32], strides = [1, 1]} : vector<8x96xf32> to vector<8x32xf32>
    %177 = arith.mulf %165, %176 : vector<8x32xf32>
    %178 = arith.addf %175, %177 : vector<8x32xf32>
    %179 = math.tanh %178 : vector<8x32xf32>
    %cst_48 = arith.constant 1.000000e+00 : f32
    %180 = vector.broadcast %cst_48 : f32 to vector<8x32xf32>
    %181 = arith.subf %180, %174 : vector<8x32xf32>
    %182 = arith.mulf %181, %179 : vector<8x32xf32>
    %183 = arith.mulf %174, %148 : vector<8x32xf32>
    %184 = arith.addf %182, %183 : vector<8x32xf32>
    %c32 = arith.constant 32 : index
    %c0_49 = arith.constant 0 : index
    %185 = vector.load %arg16[%c32, %c0_49] : memref<64x32xf32, #tpu.memory_space<vmem>>, vector<8x32xf32>
    tpu.vector_store %arg16[%c32, %c0_49], %184 {strides = array<i32>} : memref<64x32xf32, #tpu.memory_space<vmem>>, vector<8x32xf32>,
    %186 = vector.extract_strided_slice %0 {offsets = [40, 0], sizes = [8, 4], strides = [1, 1]} : vector<64x4xf32> to vector<8x4xf32>
    %cst_50 = arith.constant dense<0.000000e+00> : vector<8x96xf32>
    %187 = tpu.matmul %186, %1, %cst_50 {dimension_numbers = #tpu.dot_dimension_numbers<[1], [0], [0], [1], [0, 0, 1, 1], [], []>} : vector<8x4xf32>, vector<4x96xf32>, vector<8x96xf32> -> vector<8x96xf32>
    %188 = vector.broadcast %3 : vector<1x96xf32> to vector<8x96xf32>
    %189 = arith.addf %187, %188 : vector<8x96xf32>
    %cst_51 = arith.constant dense<0.000000e+00> : vector<8x96xf32>
    %190 = tpu.matmul %184, %2, %cst_51 {dimension_numbers = #tpu.dot_dimension_numbers<[1], [0], [0], [1], [0, 0, 1, 1], [], []>} : vector<8x32xf32>, vector<32x96xf32>, vector<8x96xf32> -> vector<8x96xf32>
    %191 = vector.broadcast %4 : vector<1x96xf32> to vector<8x96xf32>
    %192 = arith.addf %190, %191 : vector<8x96xf32>
    %193 = vector.extract_strided_slice %189 {offsets = [0, 0], sizes = [8, 32], strides = [1, 1]} : vector<8x96xf32> to vector<8x32xf32>
    %194 = vector.extract_strided_slice %192 {offsets = [0, 0], sizes = [8, 32], strides = [1, 1]} : vector<8x96xf32> to vector<8x32xf32>
    %195 = arith.addf %193, %194 : vector<8x32xf32>
    %cst_52 = arith.constant 0.000000e+00 : f32
    %196 = vector.broadcast %cst_52 : f32 to vector<8x32xf32>
    %197 = arith.subf %196, %195 : vector<8x32xf32>
    %198 = math.exp %197 : vector<8x32xf32>
    %cst_53 = arith.constant 1.000000e+00 : f32
    %199 = vector.broadcast %cst_53 : f32 to vector<8x32xf32>
    %200 = arith.addf %199, %198 : vector<8x32xf32>
    %201 = tpu.reciprocal %200 {approx = true} : vector<8x32xf32> -> vector<8x32xf32>
    %202 = vector.extract_strided_slice %189 {offsets = [0, 32], sizes = [8, 32], strides = [1, 1]} : vector<8x96xf32> to vector<8x32xf32>
    %203 = vector.extract_strided_slice %192 {offsets = [0, 32], sizes = [8, 32], strides = [1, 1]} : vector<8x96xf32> to vector<8x32xf32>
    %204 = arith.addf %202, %203 : vector<8x32xf32>
    %cst_54 = arith.constant 0.000000e+00 : f32
    %205 = vector.broadcast %cst_54 : f32 to vector<8x32xf32>
    %206 = arith.subf %205, %204 : vector<8x32xf32>
    %207 = math.exp %206 : vector<8x32xf32>
    %cst_55 = arith.constant 1.000000e+00 : f32
    %208 = vector.broadcast %cst_55 : f32 to vector<8x32xf32>
    %209 = arith.addf %208, %207 : vector<8x32xf32>
    %210 = tpu.reciprocal %209 {approx = true} : vector<8x32xf32> -> vector<8x32xf32>
    %211 = vector.extract_strided_slice %189 {offsets = [0, 64], sizes = [8, 32], strides = [1, 1]} : vector<8x96xf32> to vector<8x32xf32>
    %212 = vector.extract_strided_slice %192 {offsets = [0, 64], sizes = [8, 32], strides = [1, 1]} : vector<8x96xf32> to vector<8x32xf32>
    %213 = arith.mulf %201, %212 : vector<8x32xf32>
    %214 = arith.addf %211, %213 : vector<8x32xf32>
    %215 = math.tanh %214 : vector<8x32xf32>
    %cst_56 = arith.constant 1.000000e+00 : f32
    %216 = vector.broadcast %cst_56 : f32 to vector<8x32xf32>
    %217 = arith.subf %216, %210 : vector<8x32xf32>
    %218 = arith.mulf %217, %215 : vector<8x32xf32>
    %219 = arith.mulf %210, %184 : vector<8x32xf32>
    %220 = arith.addf %218, %219 : vector<8x32xf32>
    %c40 = arith.constant 40 : index
    %c0_57 = arith.constant 0 : index
    %221 = vector.load %arg16[%c40, %c0_57] : memref<64x32xf32, #tpu.memory_space<vmem>>, vector<8x32xf32>
    tpu.vector_store %arg16[%c40, %c0_57], %220 {strides = array<i32>} : memref<64x32xf32, #tpu.memory_space<vmem>>, vector<8x32xf32>,
    %222 = vector.extract_strided_slice %0 {offsets = [48, 0], sizes = [8, 4], strides = [1, 1]} : vector<64x4xf32> to vector<8x4xf32>
    %cst_58 = arith.constant dense<0.000000e+00> : vector<8x96xf32>
    %223 = tpu.matmul %222, %1, %cst_58 {dimension_numbers = #tpu.dot_dimension_numbers<[1], [0], [0], [1], [0, 0, 1, 1], [], []>} : vector<8x4xf32>, vector<4x96xf32>, vector<8x96xf32> -> vector<8x96xf32>
    %224 = vector.broadcast %3 : vector<1x96xf32> to vector<8x96xf32>
    %225 = arith.addf %223, %224 : vector<8x96xf32>
    %cst_59 = arith.constant dense<0.000000e+00> : vector<8x96xf32>
    %226 = tpu.matmul %220, %2, %cst_59 {dimension_numbers = #tpu.dot_dimension_numbers<[1], [0], [0], [1], [0, 0, 1, 1], [], []>} : vector<8x32xf32>, vector<32x96xf32>, vector<8x96xf32> -> vector<8x96xf32>
    %227 = vector.broadcast %4 : vector<1x96xf32> to vector<8x96xf32>
    %228 = arith.addf %226, %227 : vector<8x96xf32>
    %229 = vector.extract_strided_slice %225 {offsets = [0, 0], sizes = [8, 32], strides = [1, 1]} : vector<8x96xf32> to vector<8x32xf32>
    %230 = vector.extract_strided_slice %228 {offsets = [0, 0], sizes = [8, 32], strides = [1, 1]} : vector<8x96xf32> to vector<8x32xf32>
    %231 = arith.addf %229, %230 : vector<8x32xf32>
    %cst_60 = arith.constant 0.000000e+00 : f32
    %232 = vector.broadcast %cst_60 : f32 to vector<8x32xf32>
    %233 = arith.subf %232, %231 : vector<8x32xf32>
    %234 = math.exp %233 : vector<8x32xf32>
    %cst_61 = arith.constant 1.000000e+00 : f32
    %235 = vector.broadcast %cst_61 : f32 to vector<8x32xf32>
    %236 = arith.addf %235, %234 : vector<8x32xf32>
    %237 = tpu.reciprocal %236 {approx = true} : vector<8x32xf32> -> vector<8x32xf32>
    %238 = vector.extract_strided_slice %225 {offsets = [0, 32], sizes = [8, 32], strides = [1, 1]} : vector<8x96xf32> to vector<8x32xf32>
    %239 = vector.extract_strided_slice %228 {offsets = [0, 32], sizes = [8, 32], strides = [1, 1]} : vector<8x96xf32> to vector<8x32xf32>
    %240 = arith.addf %238, %239 : vector<8x32xf32>
    %cst_62 = arith.constant 0.000000e+00 : f32
    %241 = vector.broadcast %cst_62 : f32 to vector<8x32xf32>
    %242 = arith.subf %241, %240 : vector<8x32xf32>
    %243 = math.exp %242 : vector<8x32xf32>
    %cst_63 = arith.constant 1.000000e+00 : f32
    %244 = vector.broadcast %cst_63 : f32 to vector<8x32xf32>
    %245 = arith.addf %244, %243 : vector<8x32xf32>
    %246 = tpu.reciprocal %245 {approx = true} : vector<8x32xf32> -> vector<8x32xf32>
    %247 = vector.extract_strided_slice %225 {offsets = [0, 64], sizes = [8, 32], strides = [1, 1]} : vector<8x96xf32> to vector<8x32xf32>
    %248 = vector.extract_strided_slice %228 {offsets = [0, 64], sizes = [8, 32], strides = [1, 1]} : vector<8x96xf32> to vector<8x32xf32>
    %249 = arith.mulf %237, %248 : vector<8x32xf32>
    %250 = arith.addf %247, %249 : vector<8x32xf32>
    %251 = math.tanh %250 : vector<8x32xf32>
    %cst_64 = arith.constant 1.000000e+00 : f32
    %252 = vector.broadcast %cst_64 : f32 to vector<8x32xf32>
    %253 = arith.subf %252, %246 : vector<8x32xf32>
    %254 = arith.mulf %253, %251 : vector<8x32xf32>
    %255 = arith.mulf %246, %220 : vector<8x32xf32>
    %256 = arith.addf %254, %255 : vector<8x32xf32>
    %c48 = arith.constant 48 : index
    %c0_65 = arith.constant 0 : index
    %257 = vector.load %arg16[%c48, %c0_65] : memref<64x32xf32, #tpu.memory_space<vmem>>, vector<8x32xf32>
    tpu.vector_store %arg16[%c48, %c0_65], %256 {strides = array<i32>} : memref<64x32xf32, #tpu.memory_space<vmem>>, vector<8x32xf32>,
    %258 = vector.extract_strided_slice %0 {offsets = [56, 0], sizes = [8, 4], strides = [1, 1]} : vector<64x4xf32> to vector<8x4xf32>
    %cst_66 = arith.constant dense<0.000000e+00> : vector<8x96xf32>
    %259 = tpu.matmul %258, %1, %cst_66 {dimension_numbers = #tpu.dot_dimension_numbers<[1], [0], [0], [1], [0, 0, 1, 1], [], []>} : vector<8x4xf32>, vector<4x96xf32>, vector<8x96xf32> -> vector<8x96xf32>
    %260 = vector.broadcast %3 : vector<1x96xf32> to vector<8x96xf32>
    %261 = arith.addf %259, %260 : vector<8x96xf32>
    %cst_67 = arith.constant dense<0.000000e+00> : vector<8x96xf32>
    %262 = tpu.matmul %256, %2, %cst_67 {dimension_numbers = #tpu.dot_dimension_numbers<[1], [0], [0], [1], [0, 0, 1, 1], [], []>} : vector<8x32xf32>, vector<32x96xf32>, vector<8x96xf32> -> vector<8x96xf32>
    %263 = vector.broadcast %4 : vector<1x96xf32> to vector<8x96xf32>
    %264 = arith.addf %262, %263 : vector<8x96xf32>
    %265 = vector.extract_strided_slice %261 {offsets = [0, 0], sizes = [8, 32], strides = [1, 1]} : vector<8x96xf32> to vector<8x32xf32>
    %266 = vector.extract_strided_slice %264 {offsets = [0, 0], sizes = [8, 32], strides = [1, 1]} : vector<8x96xf32> to vector<8x32xf32>
    %267 = arith.addf %265, %266 : vector<8x32xf32>
    %cst_68 = arith.constant 0.000000e+00 : f32
    %268 = vector.broadcast %cst_68 : f32 to vector<8x32xf32>
    %269 = arith.subf %268, %267 : vector<8x32xf32>
    %270 = math.exp %269 : vector<8x32xf32>
    %cst_69 = arith.constant 1.000000e+00 : f32
    %271 = vector.broadcast %cst_69 : f32 to vector<8x32xf32>
    %272 = arith.addf %271, %270 : vector<8x32xf32>
    %273 = tpu.reciprocal %272 {approx = true} : vector<8x32xf32> -> vector<8x32xf32>
    %274 = vector.extract_strided_slice %261 {offsets = [0, 32], sizes = [8, 32], strides = [1, 1]} : vector<8x96xf32> to vector<8x32xf32>
    %275 = vector.extract_strided_slice %264 {offsets = [0, 32], sizes = [8, 32], strides = [1, 1]} : vector<8x96xf32> to vector<8x32xf32>
    %276 = arith.addf %274, %275 : vector<8x32xf32>
    %cst_70 = arith.constant 0.000000e+00 : f32
    %277 = vector.broadcast %cst_70 : f32 to vector<8x32xf32>
    %278 = arith.subf %277, %276 : vector<8x32xf32>
    %279 = math.exp %278 : vector<8x32xf32>
    %cst_71 = arith.constant 1.000000e+00 : f32
    %280 = vector.broadcast %cst_71 : f32 to vector<8x32xf32>
    %281 = arith.addf %280, %279 : vector<8x32xf32>
    %282 = tpu.reciprocal %281 {approx = true} : vector<8x32xf32> -> vector<8x32xf32>
    %283 = vector.extract_strided_slice %261 {offsets = [0, 64], sizes = [8, 32], strides = [1, 1]} : vector<8x96xf32> to vector<8x32xf32>
    %284 = vector.extract_strided_slice %264 {offsets = [0, 64], sizes = [8, 32], strides = [1, 1]} : vector<8x96xf32> to vector<8x32xf32>
    %285 = arith.mulf %273, %284 : vector<8x32xf32>
    %286 = arith.addf %283, %285 : vector<8x32xf32>
    %287 = math.tanh %286 : vector<8x32xf32>
    %cst_72 = arith.constant 1.000000e+00 : f32
    %288 = vector.broadcast %cst_72 : f32 to vector<8x32xf32>
    %289 = arith.subf %288, %282 : vector<8x32xf32>
    %290 = arith.mulf %289, %287 : vector<8x32xf32>
    %291 = arith.mulf %282, %256 : vector<8x32xf32>
    %292 = arith.addf %290, %291 : vector<8x32xf32>
    %c56 = arith.constant 56 : index
    %c0_73 = arith.constant 0 : index
    %293 = vector.load %arg16[%c56, %c0_73] : memref<64x32xf32, #tpu.memory_space<vmem>>, vector<8x32xf32>
    tpu.vector_store %arg16[%c56, %c0_73], %292 {strides = array<i32>} : memref<64x32xf32, #tpu.memory_space<vmem>>, vector<8x32xf32>,
    %c0_74 = arith.constant 0 : index
    %c0_75 = arith.constant 0 : index
    %294 = vector.load %arg16[%c0_74, %c0_75] : memref<64x32xf32, #tpu.memory_space<vmem>>, vector<64x32xf32>
    %c0_76 = arith.constant 0 : index
    %c0_77 = arith.constant 0 : index
    %295 = vector.load %arg5[%c0_76, %c0_77] : memref<32x32xf32, #tpu.memory_space<vmem>>, vector<32x32xf32>
    %cst_78 = arith.constant dense<0.000000e+00> : vector<64x32xf32>
    %296 = tpu.matmul %294, %295, %cst_78 {dimension_numbers = #tpu.dot_dimension_numbers<[1], [0], [0], [1], [0, 0, 1, 1], [], []>} : vector<64x32xf32>, vector<32x32xf32>, vector<64x32xf32> -> vector<64x32xf32>
    %c0_79 = arith.constant 0 : index
    %c0_80 = arith.constant 0 : index
    %297 = vector.load %arg6[%c0_79, %c0_80] : memref<1x32xf32, #tpu.memory_space<vmem>>, vector<1x32xf32>
    %298 = vector.broadcast %297 : vector<1x32xf32> to vector<64x32xf32>
    %299 = arith.addf %296, %298 : vector<64x32xf32>
    %cst_81 = arith.constant 0.000000e+00 : f32
    %300 = vector.broadcast %cst_81 : f32 to vector<64x32xf32>
    %301 = arith.maximumf %299, %300 : vector<64x32xf32>
    %c0_82 = arith.constant 0 : index
    %c0_83 = arith.constant 0 : index
    %302 = vector.load %arg7[%c0_82, %c0_83] : memref<32x4xf32, #tpu.memory_space<vmem>>, vector<32x4xf32>
    %cst_84 = arith.constant dense<0.000000e+00> : vector<64x4xf32>
    %303 = tpu.matmul %301, %302, %cst_84 {dimension_numbers = #tpu.dot_dimension_numbers<[1], [0], [0], [1], [0, 0, 1, 1], [], []>} : vector<64x32xf32>, vector<32x4xf32>, vector<64x4xf32> -> vector<64x4xf32>
    %c0_85 = arith.constant 0 : index
    %c0_86 = arith.constant 0 : index
    %304 = vector.load %arg8[%c0_85, %c0_86] : memref<1x4xf32, #tpu.memory_space<vmem>>, vector<1x4xf32>
    %305 = vector.broadcast %304 : vector<1x4xf32> to vector<64x4xf32>
    %306 = arith.addf %303, %305 : vector<64x4xf32>
    %c0_87 = arith.constant 0 : index
    %c0_88 = arith.constant 0 : index
    %307 = vector.load %arg9[%c0_87, %c0_88] : memref<32x4xf32, #tpu.memory_space<vmem>>, vector<32x4xf32>
    %cst_89 = arith.constant dense<0.000000e+00> : vector<64x4xf32>
    %308 = tpu.matmul %301, %307, %cst_89 {dimension_numbers = #tpu.dot_dimension_numbers<[1], [0], [0], [1], [0, 0, 1, 1], [], []>} : vector<64x32xf32>, vector<32x4xf32>, vector<64x4xf32> -> vector<64x4xf32>
    %c0_90 = arith.constant 0 : index
    %c0_91 = arith.constant 0 : index
    %309 = vector.load %arg10[%c0_90, %c0_91] : memref<1x4xf32, #tpu.memory_space<vmem>>, vector<1x4xf32>
    %310 = vector.broadcast %309 : vector<1x4xf32> to vector<64x4xf32>
    %311 = arith.addf %308, %310 : vector<64x4xf32>
    %cst_92 = arith.constant 0.000000e+00 : f32
    %312 = vector.broadcast %cst_92 : f32 to vector<64x4xf32>
    %313 = arith.maximumf %311, %312 : vector<64x4xf32>
    %314 = math.absf %311 : vector<64x4xf32>
    %cst_93 = arith.constant 0.000000e+00 : f32
    %315 = vector.broadcast %cst_93 : f32 to vector<64x4xf32>
    %316 = arith.subf %315, %314 : vector<64x4xf32>
    %317 = math.exp %316 : vector<64x4xf32>
    %cst_94 = arith.constant 1.000000e+00 : f32
    %318 = vector.broadcast %cst_94 : f32 to vector<64x4xf32>
    %319 = arith.addf %318, %317 : vector<64x4xf32>
    %320 = math.log %319 : vector<64x4xf32>
    %321 = arith.addf %313, %320 : vector<64x4xf32>
    %c0_95 = arith.constant 0 : index
    %c0_96 = arith.constant 0 : index
    %322 = vector.load %arg11[%c0_95, %c0_96] : memref<4x4xf32, #tpu.memory_space<vmem>>, vector<4x4xf32>
    %cst_97 = arith.constant dense<0.000000e+00> : vector<64x4xf32>
    %323 = tpu.matmul %306, %322, %cst_97 {dimension_numbers = #tpu.dot_dimension_numbers<[1], [0], [0], [1], [0, 0, 1, 1], [], []>} : vector<64x4xf32>, vector<4x4xf32>, vector<64x4xf32> -> vector<64x4xf32>
    %c0_98 = arith.constant 0 : index
    %c0_99 = arith.constant 0 : index
    %324 = vector.load %arg12[%c0_98, %c0_99] : memref<1x4xf32, #tpu.memory_space<vmem>>, vector<1x4xf32>
    %325 = vector.broadcast %324 : vector<1x4xf32> to vector<64x4xf32>
    %326 = arith.addf %323, %325 : vector<64x4xf32>
    %327 = arith.subf %0, %326 : vector<64x4xf32>
    %c0_100 = arith.constant 0 : index
    %c0_101 = arith.constant 0 : index
    %328 = vector.load %arg13[%c0_100, %c0_101] : memref<4x16xf32, #tpu.memory_space<vmem>>, vector<4x16xf32>
    %cst_102 = arith.constant dense<0.000000e+00> : vector<64x16xf32>
    %329 = tpu.matmul %321, %328, %cst_102 {dimension_numbers = #tpu.dot_dimension_numbers<[1], [0], [0], [1], [0, 0, 1, 1], [], []>} : vector<64x4xf32>, vector<4x16xf32>, vector<64x16xf32> -> vector<64x16xf32>
    %c0_103 = arith.constant 0 : index
    %c0_104 = arith.constant 0 : index
    %330 = vector.load %arg14[%c0_103, %c0_104] : memref<64x16xf32, #tpu.memory_space<vmem>>, vector<64x16xf32>
    %331 = arith.addf %329, %330 : vector<64x16xf32>
    %332 = vector.extract_strided_slice %331 {offsets = [0, 0], sizes = [64, 1], strides = [1, 1]} : vector<64x16xf32> to vector<64x1xf32>
    %333 = vector.extract_strided_slice %331 {offsets = [0, 4], sizes = [64, 1], strides = [1, 1]} : vector<64x16xf32> to vector<64x1xf32>
    %334 = vector.extract_strided_slice %331 {offsets = [0, 5], sizes = [64, 1], strides = [1, 1]} : vector<64x16xf32> to vector<64x1xf32>
    %335 = vector.extract_strided_slice %331 {offsets = [0, 8], sizes = [64, 1], strides = [1, 1]} : vector<64x16xf32> to vector<64x1xf32>
    %336 = vector.extract_strided_slice %331 {offsets = [0, 9], sizes = [64, 1], strides = [1, 1]} : vector<64x16xf32> to vector<64x1xf32>
    %337 = vector.extract_strided_slice %331 {offsets = [0, 10], sizes = [64, 1], strides = [1, 1]} : vector<64x16xf32> to vector<64x1xf32>
    %338 = vector.extract_strided_slice %331 {offsets = [0, 12], sizes = [64, 1], strides = [1, 1]} : vector<64x16xf32> to vector<64x1xf32>
    %339 = vector.extract_strided_slice %331 {offsets = [0, 13], sizes = [64, 1], strides = [1, 1]} : vector<64x16xf32> to vector<64x1xf32>
    %340 = vector.extract_strided_slice %331 {offsets = [0, 14], sizes = [64, 1], strides = [1, 1]} : vector<64x16xf32> to vector<64x1xf32>
    %341 = vector.extract_strided_slice %331 {offsets = [0, 15], sizes = [64, 1], strides = [1, 1]} : vector<64x16xf32> to vector<64x1xf32>
    %342 = vector.extract_strided_slice %327 {offsets = [0, 0], sizes = [64, 1], strides = [1, 1]} : vector<64x4xf32> to vector<64x1xf32>
    %343 = vector.extract_strided_slice %327 {offsets = [0, 1], sizes = [64, 1], strides = [1, 1]} : vector<64x4xf32> to vector<64x1xf32>
    %344 = vector.extract_strided_slice %327 {offsets = [0, 2], sizes = [64, 1], strides = [1, 1]} : vector<64x4xf32> to vector<64x1xf32>
    %345 = vector.extract_strided_slice %327 {offsets = [0, 3], sizes = [64, 1], strides = [1, 1]} : vector<64x4xf32> to vector<64x1xf32>
    %cst_105 = arith.constant 9.99999997E-7 : f32
    %346 = vector.broadcast %cst_105 : f32 to vector<64x1xf32>
    %347 = arith.addf %332, %346 : vector<64x1xf32>
    %348 = math.sqrt %347 : vector<64x1xf32>
    %cst_106 = arith.constant 1.000000e+00 : f32
    %349 = vector.broadcast %cst_106 : f32 to vector<64x1xf32>
    %350 = arith.divf %349, %348 : vector<64x1xf32>
    %351 = arith.mulf %333, %350 : vector<64x1xf32>
    %352 = arith.mulf %351, %351 : vector<64x1xf32>
    %353 = arith.subf %334, %352 : vector<64x1xf32>
    %cst_107 = arith.constant 9.99999997E-7 : f32
    %354 = vector.broadcast %cst_107 : f32 to vector<64x1xf32>
    %355 = arith.addf %353, %354 : vector<64x1xf32>
    %356 = math.sqrt %355 : vector<64x1xf32>
    %cst_108 = arith.constant 1.000000e+00 : f32
    %357 = vector.broadcast %cst_108 : f32 to vector<64x1xf32>
    %358 = arith.divf %357, %356 : vector<64x1xf32>
    %359 = arith.mulf %335, %350 : vector<64x1xf32>
    %360 = arith.mulf %359, %351 : vector<64x1xf32>
    %361 = arith.subf %336, %360 : vector<64x1xf32>
    %362 = arith.mulf %361, %358 : vector<64x1xf32>
    %363 = arith.mulf %359, %359 : vector<64x1xf32>
    %364 = arith.subf %337, %363 : vector<64x1xf32>
    %365 = arith.mulf %362, %362 : vector<64x1xf32>
    %366 = arith.subf %364, %365 : vector<64x1xf32>
    %cst_109 = arith.constant 9.99999997E-7 : f32
    %367 = vector.broadcast %cst_109 : f32 to vector<64x1xf32>
    %368 = arith.addf %366, %367 : vector<64x1xf32>
    %369 = math.sqrt %368 : vector<64x1xf32>
    %cst_110 = arith.constant 1.000000e+00 : f32
    %370 = vector.broadcast %cst_110 : f32 to vector<64x1xf32>
    %371 = arith.divf %370, %369 : vector<64x1xf32>
    %372 = arith.mulf %338, %350 : vector<64x1xf32>
    %373 = arith.mulf %372, %351 : vector<64x1xf32>
    %374 = arith.subf %339, %373 : vector<64x1xf32>
    %375 = arith.mulf %374, %358 : vector<64x1xf32>
    %376 = arith.mulf %372, %359 : vector<64x1xf32>
    %377 = arith.subf %340, %376 : vector<64x1xf32>
    %378 = arith.mulf %375, %362 : vector<64x1xf32>
    %379 = arith.subf %377, %378 : vector<64x1xf32>
    %380 = arith.mulf %379, %371 : vector<64x1xf32>
    %381 = arith.mulf %372, %372 : vector<64x1xf32>
    %382 = arith.subf %341, %381 : vector<64x1xf32>
    %383 = arith.mulf %375, %375 : vector<64x1xf32>
    %384 = arith.subf %382, %383 : vector<64x1xf32>
    %385 = arith.mulf %380, %380 : vector<64x1xf32>
    %386 = arith.subf %384, %385 : vector<64x1xf32>
    %cst_111 = arith.constant 9.99999997E-7 : f32
    %387 = vector.broadcast %cst_111 : f32 to vector<64x1xf32>
    %388 = arith.addf %386, %387 : vector<64x1xf32>
    %389 = math.sqrt %388 : vector<64x1xf32>
    %cst_112 = arith.constant 1.000000e+00 : f32
    %390 = vector.broadcast %cst_112 : f32 to vector<64x1xf32>
    %391 = arith.divf %390, %389 : vector<64x1xf32>
    %392 = math.log %348 : vector<64x1xf32>
    %393 = math.log %356 : vector<64x1xf32>
    %394 = arith.addf %392, %393 : vector<64x1xf32>
    %395 = math.log %369 : vector<64x1xf32>
    %396 = arith.addf %394, %395 : vector<64x1xf32>
    %397 = math.log %389 : vector<64x1xf32>
    %398 = arith.addf %396, %397 : vector<64x1xf32>
    %cst_113 = arith.constant 2.000000e+00 : f32
    %399 = vector.broadcast %cst_113 : f32 to vector<64x1xf32>
    %400 = arith.mulf %399, %398 : vector<64x1xf32>
    %401 = arith.mulf %342, %350 : vector<64x1xf32>
    %402 = arith.mulf %401, %401 : vector<64x1xf32>
    %403 = arith.mulf %351, %401 : vector<64x1xf32>
    %404 = arith.subf %343, %403 : vector<64x1xf32>
    %405 = arith.mulf %404, %358 : vector<64x1xf32>
    %406 = arith.mulf %405, %405 : vector<64x1xf32>
    %407 = arith.addf %402, %406 : vector<64x1xf32>
    %408 = arith.mulf %359, %401 : vector<64x1xf32>
    %409 = arith.subf %344, %408 : vector<64x1xf32>
    %410 = arith.mulf %362, %405 : vector<64x1xf32>
    %411 = arith.subf %409, %410 : vector<64x1xf32>
    %412 = arith.mulf %411, %371 : vector<64x1xf32>
    %413 = arith.mulf %412, %412 : vector<64x1xf32>
    %414 = arith.addf %407, %413 : vector<64x1xf32>
    %415 = arith.mulf %372, %401 : vector<64x1xf32>
    %416 = arith.subf %345, %415 : vector<64x1xf32>
    %417 = arith.mulf %375, %405 : vector<64x1xf32>
    %418 = arith.subf %416, %417 : vector<64x1xf32>
    %419 = arith.mulf %380, %412 : vector<64x1xf32>
    %420 = arith.subf %418, %419 : vector<64x1xf32>
    %421 = arith.mulf %420, %391 : vector<64x1xf32>
    %422 = arith.mulf %421, %421 : vector<64x1xf32>
    %423 = arith.addf %414, %422 : vector<64x1xf32>
    %cst_114 = arith.constant 5.000000e-01 : f32
    %424 = vector.broadcast %cst_114 : f32 to vector<64x1xf32>
    %425 = arith.mulf %424, %400 : vector<64x1xf32>
    %cst_115 = arith.constant -3.67575407 : f32
    %426 = vector.broadcast %cst_115 : f32 to vector<64x1xf32>
    %427 = arith.subf %426, %425 : vector<64x1xf32>
    %cst_116 = arith.constant 5.000000e-01 : f32
    %428 = vector.broadcast %cst_116 : f32 to vector<64x1xf32>
    %429 = arith.mulf %428, %423 : vector<64x1xf32>
    %430 = arith.subf %427, %429 : vector<64x1xf32>
    %431 = vector.extract_strided_slice %430 {offsets = [0, 0], sizes = [8, 1], strides = [1, 1]} : vector<64x1xf32> to vector<8x1xf32>
    %432 = vector.extract_strided_slice %430 {offsets = [8, 0], sizes = [8, 1], strides = [1, 1]} : vector<64x1xf32> to vector<8x1xf32>
    %433 = arith.addf %431, %432 : vector<8x1xf32>
    %434 = vector.extract_strided_slice %430 {offsets = [16, 0], sizes = [8, 1], strides = [1, 1]} : vector<64x1xf32> to vector<8x1xf32>
    %435 = arith.addf %433, %434 : vector<8x1xf32>
    %436 = vector.extract_strided_slice %430 {offsets = [24, 0], sizes = [8, 1], strides = [1, 1]} : vector<64x1xf32> to vector<8x1xf32>
    %437 = arith.addf %435, %436 : vector<8x1xf32>
    %438 = vector.extract_strided_slice %430 {offsets = [32, 0], sizes = [8, 1], strides = [1, 1]} : vector<64x1xf32> to vector<8x1xf32>
    %439 = arith.addf %437, %438 : vector<8x1xf32>
    %440 = vector.extract_strided_slice %430 {offsets = [40, 0], sizes = [8, 1], strides = [1, 1]} : vector<64x1xf32> to vector<8x1xf32>
    %441 = arith.addf %439, %440 : vector<8x1xf32>
    %442 = vector.extract_strided_slice %430 {offsets = [48, 0], sizes = [8, 1], strides = [1, 1]} : vector<64x1xf32> to vector<8x1xf32>
    %443 = arith.addf %441, %442 : vector<8x1xf32>
    %444 = vector.extract_strided_slice %430 {offsets = [56, 0], sizes = [8, 1], strides = [1, 1]} : vector<64x1xf32> to vector<8x1xf32>
    %445 = arith.addf %443, %444 : vector<8x1xf32>
    %c0_117 = arith.constant 0 : index
    %c0_118 = arith.constant 0 : index
    %446 = vector.load %arg15[%c0_117, %c0_118] : memref<8x1xf32, #tpu.memory_space<vmem>>, vector<8x1xf32>
    tpu.vector_store %arg15[%c0_117, %c0_118], %445 {strides = array<i32>} : memref<8x1xf32, #tpu.memory_space<vmem>>, vector<8x1xf32>,
    return
  }
}

</mosaic_0001>

<llo_original>
// kernel: semidanse_forward.1
$region0: #{semidanse_forward.1}
  #allocation0 [shape = 'u32[]', space=smem, size = 0x4, offset = 0x4, fixed_abs, tag = 'smem constant byte address 0x4 - core index']
  #allocation1 [shape = 'u32[144,128]{1,0:T(1,128)}', space=vmem, size = 0x12000, scoped, tag = 'internal scratch']
  #allocation2 [shape = 'f32[64,32]{1,0:T(8,128)}', space=vmem, size = 0x8000, scoped, tag = 'scratch operand']
  %s0 = inlined_call_operand.vmem [shape: f32[64,4], index: 0, kind: input, shape index: {}]
  %s1 = inlined_call_operand.vmem [shape: f32[4,96], index: 1, kind: input, shape index: {}]
  %s2 = inlined_call_operand.vmem [shape: f32[32,96], index: 2, kind: input, shape index: {}]
  %s3 = inlined_call_operand.vmem [shape: f32[1,96], index: 3, kind: input, shape index: {}]
  %s4 = inlined_call_operand.vmem [shape: f32[1,96], index: 4, kind: input, shape index: {}]
  %s5 = inlined_call_operand.vmem [shape: f32[32,32], index: 5, kind: input, shape index: {}]
  %s6 = inlined_call_operand.vmem [shape: f32[1,32], index: 6, kind: input, shape index: {}]
  %s7 = inlined_call_operand.vmem [shape: f32[32,4], index: 7, kind: input, shape index: {}]
  %s8 = inlined_call_operand.vmem [shape: f32[1,4], index: 8, kind: input, shape index: {}]
  %s9 = inlined_call_operand.vmem [shape: f32[32,4], index: 9, kind: input, shape index: {}]
  %s10 = inlined_call_operand.vmem [shape: f32[1,4], index: 10, kind: input, shape index: {}]
  %s11 = inlined_call_operand.vmem [shape: f32[4,4], index: 11, kind: input, shape index: {}]
  %s12 = inlined_call_operand.vmem [shape: f32[1,4], index: 12, kind: input, shape index: {}]
  %s13 = inlined_call_operand.vmem [shape: f32[4,16], index: 13, kind: input, shape index: {}]
  %s14 = inlined_call_operand.vmem [shape: f32[64,16], index: 14, kind: input, shape index: {}]
  %s15 = inlined_call_operand.vmem [shape: f32[8,1], index: 15, kind: output, shape index: {}]
  %s16 = sld [smem:[#allocation0]]
  $region70: #{semidanse_forward.1} parent=0
    _
  %s18 = ssub.s32 1, %s16
  %s19 = scalar_select 0, %s18, %s16
  // Predicated region
  $region2: #{semidanse_forward.1} parent=0 // pred_check
    _
  $region3: #{semidanse_forward.1} parent=0 // pred_check_branch
    %21 = sbr.rel (0) target = $region5
  $region4: #{semidanse_forward.1} parent=0 // pred_region
    _
  $region5: #{semidanse_forward.1} parent=0 // pred_fallthru
    _
  // Predicated region
  $region6: #{semidanse_forward.1} parent=0 // pred_check
    _
  $region7: #{semidanse_forward.1} parent=0 // pred_check_branch
    %23 = sbr.rel (0) target = $region9
  $region8: #{semidanse_forward.1} parent=0 // pred_region
    _
  $region9: #{semidanse_forward.1} parent=0 // pred_fallthru
    _
  // Predicated region
  $region10: #{semidanse_forward.1} parent=0 // pred_check
    _
  $region11: #{semidanse_forward.1} parent=0 // pred_check_branch
    %25 = sbr.rel (0) target = $region13
  $region12: #{semidanse_forward.1} parent=0 // pred_region
    _
  $region13: #{semidanse_forward.1} parent=0 // pred_fallthru
    _
  // Predicated region
  $region14: #{semidanse_forward.1} parent=0 // pred_check
    _
  $region15: #{semidanse_forward.1} parent=0 // pred_check_branch
    %27 = sbr.rel (0) target = $region17
  $region16: #{semidanse_forward.1} parent=0 // pred_region
    _
  $region17: #{semidanse_forward.1} parent=0 // pred_fallthru
    _
  // Predicated region
  $region18: #{semidanse_forward.1} parent=0 // pred_check
    _
  $region19: #{semidanse_forward.1} parent=0 // pred_check_branch
    %29 = sbr.rel (0) target = $region21
  $region20: #{semidanse_forward.1} parent=0 // pred_region
    _
  $region21: #{semidanse_forward.1} parent=0 // pred_fallthru
    _
  // Predicated region
  $region22: #{semidanse_forward.1} parent=0 // pred_check
    _
  $region23: #{semidanse_forward.1} parent=0 // pred_check_branch
    %31 = sbr.rel (0) target = $region25
  $region24: #{semidanse_forward.1} parent=0 // pred_region
    _
  $region25: #{semidanse_forward.1} parent=0 // pred_fallthru
    _
  // Predicated region
  $region26: #{semidanse_forward.1} parent=0 // pred_check
    _
  $region27: #{semidanse_forward.1} parent=0 // pred_check_branch
    %33 = sbr.rel (0) target = $region29
  $region28: #{semidanse_forward.1} parent=0 // pred_region
    _
  $region29: #{semidanse_forward.1} parent=0 // pred_fallthru
    _
  // Predicated region
  $region30: #{semidanse_forward.1} parent=0 // pred_check
    _
  $region31: #{semidanse_forward.1} parent=0 // pred_check_branch
    %35 = sbr.rel (0) target = $region33
  $region32: #{semidanse_forward.1} parent=0 // pred_region
    _
  $region33: #{semidanse_forward.1} parent=0 // pred_fallthru
    _
  // Predicated region
  $region34: #{semidanse_forward.1} parent=0 // pred_check
    _
  $region35: #{semidanse_forward.1} parent=0 // pred_check_branch
    %37 = sbr.rel (0) target = $region37
  $region36: #{semidanse_forward.1} parent=0 // pred_region
    _
  $region37: #{semidanse_forward.1} parent=0 // pred_fallthru
    _
  // Predicated region
  $region38: #{semidanse_forward.1} parent=0 // pred_check
    _
  $region39: #{semidanse_forward.1} parent=0 // pred_check_branch
    %39 = sbr.rel (0) target = $region41
  $region40: #{semidanse_forward.1} parent=0 // pred_region
    _
  $region41: #{semidanse_forward.1} parent=0 // pred_fallthru
    _
  // Predicated region
  $region42: #{semidanse_forward.1} parent=0 // pred_check
    _
  $region43: #{semidanse_forward.1} parent=0 // pred_check_branch
    %41 = sbr.rel (0) target = $region45
  $region44: #{semidanse_forward.1} parent=0 // pred_region
    _
  $region45: #{semidanse_forward.1} parent=0 // pred_fallthru
    _
  // Predicated region
  $region46: #{semidanse_forward.1} parent=0 // pred_check
    _
  $region47: #{semidanse_forward.1} parent=0 // pred_check_branch
    %43 = sbr.rel (0) target = $region49
  $region48: #{semidanse_forward.1} parent=0 // pred_region
    _
  $region49: #{semidanse_forward.1} parent=0 // pred_fallthru
    _
  // Predicated region
  $region50: #{semidanse_forward.1} parent=0 // pred_check
    _
  $region51: #{semidanse_forward.1} parent=0 // pred_check_branch
    %45 = sbr.rel (0) target = $region53
  $region52: #{semidanse_forward.1} parent=0 // pred_region
    _
  $region53: #{semidanse_forward.1} parent=0 // pred_fallthru
    _
  // Predicated region
  $region54: #{semidanse_forward.1} parent=0 // pred_check
    _
  $region55: #{semidanse_forward.1} parent=0 // pred_check_branch
    %47 = sbr.rel (0) target = $region57
  $region56: #{semidanse_forward.1} parent=0 // pred_region
    _
  $region57: #{semidanse_forward.1} parent=0 // pred_fallthru
    _
  // Predicated region
  $region58: #{semidanse_forward.1} parent=0 // pred_check
    _
  $region59: #{semidanse_forward.1} parent=0 // pred_check_branch
    %49 = sbr.rel (0) target = $region61
  $region60: #{semidanse_forward.1} parent=0 // pred_region
    _
  $region61: #{semidanse_forward.1} parent=0 // pred_fallthru
    _
  %v50 = vld [vmem:[%s0] sm:$0xff]
  %v51 = vld [vmem:[%s0 + $0x8] sm:$0xff]
  %v52 = vld [vmem:[%s0 + $0x10] sm:$0xff]
  %v53 = vld [vmem:[%s0 + $0x18] sm:$0xff]
  %v54 = vld [vmem:[%s0 + $0x20] sm:$0xff]
  %v55 = vld [vmem:[%s0 + $0x28] sm:$0xff]
  %v56 = vld [vmem:[%s0 + $0x30] sm:$0xff]
  %v57 = vld [vmem:[%s0 + $0x38] sm:$0xff]
  %v58 = vld [vmem:[%s1] sm:$0xf]
  %v59 = vld [vmem:[%s2] sm:$0xff]
  %v60 = vld [vmem:[%s2 + $0x8] sm:$0xff]
  %v61 = vld [vmem:[%s2 + $0x10] sm:$0xff]
  %v62 = vld [vmem:[%s2 + $0x18] sm:$0xff]
  %v63 = vld [vmem:[%s3] sm:$0x1]
  %v64 = vld [vmem:[%s4] sm:$0x1]
  %v66 = vlaneseq
  %v67 = vshrl.u32 %v66, 7
  %v68 = vsub.s32 0, %v67
  %v69 = vrot.slane %v63, %v68
  %vm71 = vcmask 31744
  %v73 = vsel %vm71, %v50, 0
  %vm75 = vcmask 1043456
  %v77 = vsel %vm75, %v58, 0
  %79 = vmatprep.subr.mxu0 0.0
  %80 = vmatpush1.msra.mxu0 %v77
  %81 = vmatprep.subr.mxu0 0.0
  %82 = vmatpush1.msra.mxu0 0.0
  %83 = vmatprep.subr.mxu0 0.0
  %84 = vmatpush1.msra.mxu0 0.0
  %85 = vmatprep.subr.mxu0 0.0
  %86 = vmatpush1.msra.mxu0 0.0
  %87 = vmatprep.subr.mxu0 0.0
  %88 = vmatpush1.msra.mxu0 0.0
  %89 = vmatprep.subr.mxu0 0.0
  %90 = vmatpush1.msra.mxu0 0.0
  %91 = vmatprep.subr.mxu0 0.0
  %92 = vmatpush1.msra.mxu0 0.0
  %93 = vmatprep.subr.mxu0 0.0
  %94 = vmatpush1.msra.mxu0 0.0
  %95 = vmatprep.subr.mxu0 0.0
  %96 = vmatpush1.msra.mxu0 0.0
  %97 = vmatprep.subr.mxu0 0.0
  %98 = vmatpush1.msra.mxu0 0.0
  %99 = vmatprep.subr.mxu0 0.0
  %100 = vmatpush1.msra.mxu0 0.0
  %101 = vmatprep.subr.mxu0 0.0
  %102 = vmatpush1.msra.mxu0 0.0
  %103 = vmatprep.subr.mxu0 0.0
  %104 = vmatpush1.msra.mxu0 0.0
  %105 = vmatprep.subr.mxu0 0.0
  %106 = vmatpush1.msra.mxu0 0.0
  %107 = vmatprep.subr.mxu0 0.0
  %108 = vmatpush1.msra.mxu0 0.0
  %109 = vmatprep.subr.mxu0 0.0
  %110 = vmatpush1.msra.mxu0 0.0
  %111 = vmatprep.subr.mxu0 0.0
  %112 = vmatpush1.msra.mxu0 0.0
  %113 = vmatprep.subr.mxu0 0.0
  %114 = vmatpush1.msra.mxu0 0.0
  %115 = vmatprep.subr.mxu0 0.0
  %116 = vmatpush1.msra.mxu0 0.0
  %117 = vmatprep.subr.mxu0 0.0
  %118 = vmatpush1.msra.mxu0 0.0
  %119 = vmatprep.subr.mxu0 0.0
  %120 = vmatpush1.msra.mxu0 0.0
  %121 = vmatprep.subr.mxu0 0.0
  %122 = vmatpush1.msra.mxu0 0.0
  %123 = vmatprep.subr.mxu0 0.0
  %124 = vmatpush1.msra.mxu0 0.0
  %125 = vmatprep.subr.mxu0 0.0
  %126 = vmatpush1.msra.mxu0 0.0
  %127 = vmatprep.subr.mxu0 0.0
  %128 = vmatpush1.msra.mxu0 0.0
  %129 = vmatprep.subr.mxu0 0.0
  %130 = vmatpush1.msra.mxu0 0.0
  %131 = vmatprep.subr.mxu0 0.0
  %132 = vmatpush1.msra.mxu0 0.0
  %133 = vmatprep.subr.mxu0 0.0
  %134 = vmatpush1.msra.mxu0 0.0
  %135 = vmatprep.subr.mxu0 0.0
  %136 = vmatpush1.msra.mxu0 0.0
  %137 = vmatprep.subr.mxu0 0.0
  %138 = vmatpush1.msra.mxu0 0.0
  %139 = vmatprep.subr.mxu0 0.0
  %140 = vmatpush1.msra.mxu0 0.0
  %141 = vmatprep.subr.mxu0 0.0
  %142 = vmatpush1.msra.mxu0 0.0
  %143 = vmatprep.mubr.f32.mxu0 0.0
  %144 = vmatmul.mubr.f32.gmra.mrb[0].mxu0 %v73
  %v145 = vpop.f32.mrb[0].mxu0
  %v146 = vadd.f32 %v69, %v145
  %v147 = vpop.f32.mrb[0].mxu0
  %148 = vdwg.mxu0
  %v150 = vlaneseq
  %v151 = vshrl.u32 %v150, 7
  %v152 = vsub.s32 0, %v151
  %v153 = vrot.slane %v64, %v152
  %vm155 = vcmask 261120
  %v157 = vsel %vm155, 0.0, 0
  %159 = vmatprep.subr.mxu0 0.0
  %160 = vmatpush1.msra.mxu0 %v59
  %161 = vmatprep.subr.mxu0 0.0
  %162 = vmatpush1.msra.mxu0 %v60
  %163 = vmatprep.subr.mxu0 0.0
  %164 = vmatpush1.msra.mxu0 %v61
  %165 = vmatprep.subr.mxu0 0.0
  %166 = vmatpush1.msra.mxu0 %v62
  %167 = vmatprep.subr.mxu0 0.0
  %168 = vmatpush1.msra.mxu0 0.0
  %169 = vmatprep.subr.mxu0 0.0
  %170 = vmatpush1.msra.mxu0 0.0
  %171 = vmatprep.subr.mxu0 0.0
  %172 = vmatpush1.msra.mxu0 0.0
  %173 = vmatprep.subr.mxu0 0.0
  %174 = vmatpush1.msra.mxu0 0.0
  %175 = vmatprep.subr.mxu0 0.0
  %176 = vmatpush1.msra.mxu0 0.0
  %177 = vmatprep.subr.mxu0 0.0
  %178 = vmatpush1.msra.mxu0 0.0
  %179 = vmatprep.subr.mxu0 0.0
  %180 = vmatpush1.msra.mxu0 0.0
  %181 = vmatprep.subr.mxu0 0.0
  %182 = vmatpush1.msra.mxu0 0.0
  %183 = vmatprep.subr.mxu0 0.0
  %184 = vmatpush1.msra.mxu0 0.0
  %185 = vmatprep.subr.mxu0 0.0
  %186 = vmatpush1.msra.mxu0 0.0
  %187 = vmatprep.subr.mxu0 0.0
  %188 = vmatpush1.msra.mxu0 0.0
  %189 = vmatprep.subr.mxu0 0.0
  %190 = vmatpush1.msra.mxu0 0.0
  %191 = vmatprep.subr.mxu0 0.0
  %192 = vmatpush1.msra.mxu0 0.0
  %193 = vmatprep.subr.mxu0 0.0
  %194 = vmatpush1.msra.mxu0 0.0
  %195 = vmatprep.subr.mxu0 0.0
  %196 = vmatpush1.msra.mxu0 0.0
  %197 = vmatprep.subr.mxu0 0.0
  %198 = vmatpush1.msra.mxu0 0.0
  %199 = vmatprep.subr.mxu0 0.0
  %200 = vmatpush1.msra.mxu0 0.0
  %201 = vmatprep.subr.mxu0 0.0
  %202 = vmatpush1.msra.mxu0 0.0
  %203 = vmatprep.subr.mxu0 0.0
  %204 = vmatpush1.msra.mxu0 0.0
  %205 = vmatprep.subr.mxu0 0.0
  %206 = vmatpush1.msra.mxu0 0.0
  %207 = vmatprep.subr.mxu0 0.0
  %208 = vmatpush1.msra.mxu0 0.0
  %209 = vmatprep.subr.mxu0 0.0
  %210 = vmatpush1.msra.mxu0 0.0
  %211 = vmatprep.subr.mxu0 0.0
  %212 = vmatpush1.msra.mxu0 0.0
  %213 = vmatprep.subr.mxu0 0.0
  %214 = vmatpush1.msra.mxu0 0.0
  %215 = vmatprep.subr.mxu0 0.0
  %216 = vmatpush1.msra.mxu0 0.0
  %217 = vmatprep.subr.mxu0 0.0
  %218 = vmatpush1.msra.mxu0 0.0
  %219 = vmatprep.subr.mxu0 0.0
  %220 = vmatpush1.msra.mxu0 0.0
  %221 = vmatprep.subr.mxu0 0.0
  %222 = vmatpush1.msra.mxu0 0.0
  %223 = vmatprep.mubr.f32.mxu0 0.0
  %224 = vmatmul.mubr.f32.gmra.mrb[0].mxu0 %v157
  %v225 = vpop.f32.mrb[0].mxu0
  %v226 = vadd.f32 %v153, %v225
  %v227 = vpop.f32.mrb[0].mxu0
  %228 = vdwg.mxu0
  %v229 = vadd.f32 %v146, %v226
  %v230 = vsub.f32 0.0, %v229
  %v231 = vmul.f32 %v230, 1.442695
  %v232 = vpow.pop %v231
  %v233 = vadd.f32 %v232, 1.0
  %v234 = vrcp.pop %v233
  %236 = vrot.lane.b32.xlu0 %v226, 64
  %v237 = vpop.permute.xlu0 %236
  %v239 = vmul.f32 %v234, %v237
  %241 = vrot.lane.b32.xlu0 %v239, 64
  %v242 = vpop.permute.xlu0 %241
  %v244 = vadd.f32 %v146, %v242
  %v245 = vtanh.pop %v244
  %v246 = vsub.f32 1.0, %v234
  %248 = vrot.lane.b32.xlu0 %v245, 96
  %v249 = vpop.permute.xlu0 %248
  %v251 = vmul.f32 %v246, %v249
  %v252 = vmul.f32 %v234, 0.0
  %v253 = vadd.f32 %v251, %v252
  %255 = vrot.lane.b32.xlu0 %v253, 96
  %v256 = vpop.permute.xlu0 %255
  %258 = vst.msk [vmem:[#allocation2] sm:$0xff] %vm155, %v256
  %v260 = vsel %vm71, %v51, 0
  %262 = vmatprep.subr.mxu0 0.0
  %263 = vmatpush1.msra.mxu0 %v77
  %264 = vmatprep.subr.mxu0 0.0
  %265 = vmatpush1.msra.mxu0 0.0
  %266 = vmatprep.subr.mxu0 0.0
  %267 = vmatpush1.msra.mxu0 0.0
  %268 = vmatprep.subr.mxu0 0.0
  %269 = vmatpush1.msra.mxu0 0.0
  %270 = vmatprep.subr.mxu0 0.0
  %271 = vmatpush1.msra.mxu0 0.0
  %272 = vmatprep.subr.mxu0 0.0
  %273 = vmatpush1.msra.mxu0 0.0
  %274 = vmatprep.subr.mxu0 0.0
  %275 = vmatpush1.msra.mxu0 0.0
  %276 = vmatprep.subr.mxu0 0.0
  %277 = vmatpush1.msra.mxu0 0.0
  %278 = vmatprep.subr.mxu0 0.0
  %279 = vmatpush1.msra.mxu0 0.0
  %280 = vmatprep.subr.mxu0 0.0
  %281 = vmatpush1.msra.mxu0 0.0
  %282 = vmatprep.subr.mxu0 0.0
  %283 = vmatpush1.msra.mxu0 0.0
  %284 = vmatprep.subr.mxu0 0.0
  %285 = vmatpush1.msra.mxu0 0.0
  %286 = vmatprep.subr.mxu0 0.0
  %287 = vmatpush1.msra.mxu0 0.0
  %288 = vmatprep.subr.mxu0 0.0
  %289 = vmatpush1.msra.mxu0 0.0
  %290 = vmatprep.subr.mxu0 0.0
  %291 = vmatpush1.msra.mxu0 0.0
  %292 = vmatprep.subr.mxu0 0.0
  %293 = vmatpush1.msra.mxu0 0.0
  %294 = vmatprep.subr.mxu0 0.0
  %295 = vmatpush1.msra.mxu0 0.0
  %296 = vmatprep.subr.mxu0 0.0
  %297 = vmatpush1.msra.mxu0 0.0
  %298 = vmatprep.subr.mxu0 0.0
  %299 = vmatpush1.msra.mxu0 0.0
  %300 = vmatprep.subr.mxu0 0.0
  %301 = vmatpush1.msra.mxu0 0.0
  %302 = vmatprep.subr.mxu0 0.0
  %303 = vmatpush1.msra.mxu0 0.0
  %304 = vmatprep.subr.mxu0 0.0
  %305 = vmatpush1.msra.mxu0 0.0
  %306 = vmatprep.subr.mxu0 0.0
  %307 = vmatpush1.msra.mxu0 0.0
  %308 = vmatprep.subr.mxu0 0.0
  %309 = vmatpush1.msra.mxu0 0.0
  %310 = vmatprep.subr.mxu0 0.0
  %311 = vmatpush1.msra.mxu0 0.0
  %312 = vmatprep.subr.mxu0 0.0
  %313 = vmatpush1.msra.mxu0 0.0
  %314 = vmatprep.subr.mxu0 0.0
  %315 = vmatpush1.msra.mxu0 0.0
  %316 = vmatprep.subr.mxu0 0.0
  %317 = vmatpush1.msra.mxu0 0.0
  %318 = vmatprep.subr.mxu0 0.0
  %319 = vmatpush1.msra.mxu0 0.0
  %320 = vmatprep.subr.mxu0 0.0
  %321 = vmatpush1.msra.mxu0 0.0
  %322 = vmatprep.subr.mxu0 0.0
  %323 = vmatpush1.msra.mxu0 0.0
  %324 = vmatprep.subr.mxu0 0.0
  %325 = vmatpush1.msra.mxu0 0.0
  %326 = vmatprep.mubr.f32.mxu0 0.0
  %327 = vmatmul.mubr.f32.gmra.mrb[0].mxu0 %v260
  %v328 = vpop.f32.mrb[0].mxu0
  %v329 = vadd.f32 %v69, %v328
  %v330 = vpop.f32.mrb[0].mxu0
  %331 = vdwg.mxu0
  %v332 = vsel %vm155, %v256, 0
  %334 = vmatprep.subr.mxu0 0.0
  %335 = vmatpush1.msra.mxu0 %v59
  %336 = vmatprep.subr.mxu0 0.0
  %337 = vmatpush1.msra.mxu0 %v60
  %338 = vmatprep.subr.mxu0 0.0
  %339 = vmatpush1.msra.mxu0 %v61
  %340 = vmatprep.subr.mxu0 0.0
  %341 = vmatpush1.msra.mxu0 %v62
  %342 = vmatprep.subr.mxu0 0.0
  %343 = vmatpush1.msra.mxu0 0.0
  %344 = vmatprep.subr.mxu0 0.0
  %345 = vmatpush1.msra.mxu0 0.0
  %346 = vmatprep.subr.mxu0 0.0
  %347 = vmatpush1.msra.mxu0 0.0
  %348 = vmatprep.subr.mxu0 0.0
  %349 = vmatpush1.msra.mxu0 0.0
  %350 = vmatprep.subr.mxu0 0.0
  %351 = vmatpush1.msra.mxu0 0.0
  %352 = vmatprep.subr.mxu0 0.0
  %353 = vmatpush1.msra.mxu0 0.0
  %354 = vmatprep.subr.mxu0 0.0
  %355 = vmatpush1.msra.mxu0 0.0
  %356 = vmatprep.subr.mxu0 0.0
  %357 = vmatpush1.msra.mxu0 0.0
  %358 = vmatprep.subr.mxu0 0.0
  %359 = vmatpush1.msra.mxu0 0.0
  %360 = vmatprep.subr.mxu0 0.0
  %361 = vmatpush1.msra.mxu0 0.0
  %362 = vmatprep.subr.mxu0 0.0
  %363 = vmatpush1.msra.mxu0 0.0
  %364 = vmatprep.subr.mxu0 0.0
  %365 = vmatpush1.msra.mxu0 0.0
  %366 = vmatprep.subr.mxu0 0.0
  %367 = vmatpush1.msra.mxu0 0.0
  %368 = vmatprep.subr.mxu0 0.0
  %369 = vmatpush1.msra.mxu0 0.0
  %370 = vmatprep.subr.mxu0 0.0
  %371 = vmatpush1.msra.mxu0 0.0
  %372 = vmatprep.subr.mxu0 0.0
  %373 = vmatpush1.msra.mxu0 0.0
  %374 = vmatprep.subr.mxu0 0.0
  %375 = vmatpush1.msra.mxu0 0.0
  %376 = vmatprep.subr.mxu0 0.0
  %377 = vmatpush1.msra.mxu0 0.0
  %378 = vmatprep.subr.mxu0 0.0
  %379 = vmatpush1.msra.mxu0 0.0
  %380 = vmatprep.subr.mxu0 0.0
  %381 = vmatpush1.msra.mxu0 0.0
  %382 = vmatprep.subr.mxu0 0.0
  %383 = vmatpush1.msra.mxu0 0.0
  %384 = vmatprep.subr.mxu0 0.0
  %385 = vmatpush1.msra.mxu0 0.0
  %386 = vmatprep.subr.mxu0 0.0
  %387 = vmatpush1.msra.mxu0 0.0
  %388 = vmatprep.subr.mxu0 0.0
  %389 = vmatpush1.msra.mxu0 0.0
  %390 = vmatprep.subr.mxu0 0.0
  %391 = vmatpush1.msra.mxu0 0.0
  %392 = vmatprep.subr.mxu0 0.0
  %393 = vmatpush1.msra.mxu0 0.0
  %394 = vmatprep.subr.mxu0 0.0
  %395 = vmatpush1.msra.mxu0 0.0
  %396 = vmatprep.subr.mxu0 0.0
  %397 = vmatpush1.msra.mxu0 0.0
  %398 = vmatprep.mubr.f32.mxu0 0.0
  %399 = vmatmul.mubr.f32.gmra.mrb[0].mxu0 %v332
  %v400 = vpop.f32.mrb[0].mxu0
  %v401 = vadd.f32 %v153, %v400
  %v402 = vpop.f32.mrb[0].mxu0
  %403 = vdwg.mxu0
  %v404 = vadd.f32 %v329, %v401
  %v405 = vsub.f32 0.0, %v404
  %v406 = vmul.f32 %v405, 1.442695
  %v407 = vpow.pop %v406
  %v408 = vadd.f32 %v407, 1.0
  %v409 = vrcp.pop %v408
  %411 = vrot.lane.b32.xlu0 %v401, 64
  %v412 = vpop.permute.xlu0 %411
  %v414 = vmul.f32 %v409, %v412
  %416 = vrot.lane.b32.xlu0 %v414, 64
  %v417 = vpop.permute.xlu0 %416
  %v419 = vadd.f32 %v329, %v417
  %v420 = vtanh.pop %v419
  %v421 = vsub.f32 1.0, %v409
  %423 = vrot.lane.b32.xlu0 %v420, 96
  %v424 = vpop.permute.xlu0 %423
  %v426 = vmul.f32 %v421, %v424
  %v427 = vmul.f32 %v409, %v253
  %v428 = vadd.f32 %v426, %v427
  %430 = vrot.lane.b32.xlu0 %v428, 96
  %v431 = vpop.permute.xlu0 %430
  %433 = vst.msk [vmem:[#allocation2 + $0x8] sm:$0xff] %vm155, %v431
  %v435 = vsel %vm71, %v52, 0
  %437 = vmatprep.subr.mxu0 0.0
  %438 = vmatpush1.msra.mxu0 %v77
  %439 = vmatprep.subr.mxu0 0.0
  %440 = vmatpush1.msra.mxu0 0.0
  %441 = vmatprep.subr.mxu0 0.0
  %442 = vmatpush1.msra.mxu0 0.0
  %443 = vmatprep.subr.mxu0 0.0
  %444 = vmatpush1.msra.mxu0 0.0
  %445 = vmatprep.subr.mxu0 0.0
  %446 = vmatpush1.msra.mxu0 0.0
  %447 = vmatprep.subr.mxu0 0.0
  %448 = vmatpush1.msra.mxu0 0.0
  %449 = vmatprep.subr.mxu0 0.0
  %450 = vmatpush1.msra.mxu0 0.0
  %451 = vmatprep.subr.mxu0 0.0
  %452 = vmatpush1.msra.mxu0 0.0
  %453 = vmatprep.subr.mxu0 0.0
  %454 = vmatpush1.msra.mxu0 0.0
  %455 = vmatprep.subr.mxu0 0.0
  %456 = vmatpush1.msra.mxu0 0.0
  %457 = vmatprep.subr.mxu0 0.0
  %458 = vmatpush1.msra.mxu0 0.0
  %459 = vmatprep.subr.mxu0 0.0
  %460 = vmatpush1.msra.mxu0 0.0
  %461 = vmatprep.subr.mxu0 0.0
  %462 = vmatpush1.msra.mxu0 0.0
  %463 = vmatprep.subr.mxu0 0.0
  %464 = vmatpush1.msra.mxu0 0.0
  %465 = vmatprep.subr.mxu0 0.0
  %466 = vmatpush1.msra.mxu0 0.0
  %467 = vmatprep.subr.mxu0 0.0
  %468 = vmatpush1.msra.mxu0 0.0
  %469 = vmatprep.subr.mxu0 0.0
  %470 = vmatpush1.msra.mxu0 0.0
  %471 = vmatprep.subr.mxu0 0.0
  %472 = vmatpush1.msra.mxu0 0.0
  %473 = vmatprep.subr.mxu0 0.0
  %474 = vmatpush1.msra.mxu0 0.0
  %475 = vmatprep.subr.mxu0 0.0
  %476 = vmatpush1.msra.mxu0 0.0
  %477 = vmatprep.subr.mxu0 0.0
  %478 = vmatpush1.msra.mxu0 0.0
  %479 = vmatprep.subr.mxu0 0.0
  %480 = vmatpush1.msra.mxu0 0.0
  %481 = vmatprep.subr.mxu0 0.0
  %482 = vmatpush1.msra.mxu0 0.0
  %483 = vmatprep.subr.mxu0 0.0
  %484 = vmatpush1.msra.mxu0 0.0
  %485 = vmatprep.subr.mxu0 0.0
  %486 = vmatpush1.msra.mxu0 0.0
  %487 = vmatprep.subr.mxu0 0.0
  %488 = vmatpush1.msra.mxu0 0.0
  %489 = vmatprep.subr.mxu0 0.0
  %490 = vmatpush1.msra.mxu0 0.0
  %491 = vmatprep.subr.mxu0 0.0
  %492 = vmatpush1.msra.mxu0 0.0
  %493 = vmatprep.subr.mxu0 0.0
  %494 = vmatpush1.msra.mxu0 0.0
  %495 = vmatprep.subr.mxu0 0.0
  %496 = vmatpush1.msra.mxu0 0.0
  %497 = vmatprep.subr.mxu0 0.0
  %498 = vmatpush1.msra.mxu0 0.0
  %499 = vmatprep.subr.mxu0 0.0
  %500 = vmatpush1.msra.mxu0 0.0
  %501 = vmatprep.mubr.f32.mxu0 0.0
  %502 = vmatmul.mubr.f32.gmra.mrb[0].mxu0 %v435
  %v503 = vpop.f32.mrb[0].mxu0
  %v504 = vadd.f32 %v69, %v503
  %v505 = vpop.f32.mrb[0].mxu0
  %506 = vdwg.mxu0
  %v507 = vsel %vm155, %v431, 0
  %509 = vmatprep.subr.mxu0 0.0
  %510 = vmatpush1.msra.mxu0 %v59
  %511 = vmatprep.subr.mxu0 0.0
  %512 = vmatpush1.msra.mxu0 %v60
  %513 = vmatprep.subr.mxu0 0.0
  %514 = vmatpush1.msra.mxu0 %v61
  %515 = vmatprep.subr.mxu0 0.0
  %516 = vmatpush1.msra.mxu0 %v62
  %517 = vmatprep.subr.mxu0 0.0
  %518 = vmatpush1.msra.mxu0 0.0
  %519 = vmatprep.subr.mxu0 0.0
  %520 = vmatpush1.msra.mxu0 0.0
  %521 = vmatprep.subr.mxu0 0.0
  %522 = vmatpush1.msra.mxu0 0.0
  %523 = vmatprep.subr.mxu0 0.0
  %524 = vmatpush1.msra.mxu0 0.0
  %525 = vmatprep.subr.mxu0 0.0
  %526 = vmatpush1.msra.mxu0 0.0
  %527 = vmatprep.subr.mxu0 0.0
  %528 = vmatpush1.msra.mxu0 0.0
  %529 = vmatprep.subr.mxu0 0.0
  %530 = vmatpush1.msra.mxu0 0.0
  %531 = vmatprep.subr.mxu0 0.0
  %532 = vmatpush1.msra.mxu0 0.0
  %533 = vmatprep.subr.mxu0 0.0
  %534 = vmatpush1.msra.mxu0 0.0
  %535 = vmatprep.subr.mxu0 0.0
  %536 = vmatpush1.msra.mxu0 0.0
  %537 = vmatprep.subr.mxu0 0.0
  %538 = vmatpush1.msra.mxu0 0.0
  %539 = vmatprep.subr.mxu0 0.0
  %540 = vmatpush1.msra.mxu0 0.0
  %541 = vmatprep.subr.mxu0 0.0
  %542 = vmatpush1.msra.mxu0 0.0
  %543 = vmatprep.subr.mxu0 0.0
  %544 = vmatpush1.msra.mxu0 0.0
  %545 = vmatprep.subr.mxu0 0.0
  %546 = vmatpush1.msra.mxu0 0.0
  %547 = vmatprep.subr.mxu0 0.0
  %548 = vmatpush1.msra.mxu0 0.0
  %549 = vmatprep.subr.mxu0 0.0
  %550 = vmatpush1.msra.mxu0 0.0
  %551 = vmatprep.subr.mxu0 0.0
  %552 = vmatpush1.msra.mxu0 0.0
  %553 = vmatprep.subr.mxu0 0.0
  %554 = vmatpush1.msra.mxu0 0.0
  %555 = vmatprep.subr.mxu0 0.0
  %556 = vmatpush1.msra.mxu0 0.0
  %557 = vmatprep.subr.mxu0 0.0
  %558 = vmatpush1.msra.mxu0 0.0
  %559 = vmatprep.subr.mxu0 0.0
  %560 = vmatpush1.msra.mxu0 0.0
  %561 = vmatprep.subr.mxu0 0.0
  %562 = vmatpush1.msra.mxu0 0.0
  %563 = vmatprep.subr.mxu0 0.0
  %564 = vmatpush1.msra.mxu0 0.0
  %565 = vmatprep.subr.mxu0 0.0
  %566 = vmatpush1.msra.mxu0 0.0
  %567 = vmatprep.subr.mxu0 0.0
  %568 = vmatpush1.msra.mxu0 0.0
  %569 = vmatprep.subr.mxu0 0.0
  %570 = vmatpush1.msra.mxu0 0.0
  %571 = vmatprep.subr.mxu0 0.0
  %572 = vmatpush1.msra.mxu0 0.0
  %573 = vmatprep.mubr.f32.mxu0 0.0
  %574 = vmatmul.mubr.f32.gmra.mrb[0].mxu0 %v507
  %v575 = vpop.f32.mrb[0].mxu0
  %v576 = vadd.f32 %v153, %v575
  %v577 = vpop.f32.mrb[0].mxu0
  %578 = vdwg.mxu0
  %v579 = vadd.f32 %v504, %v576
  %v580 = vsub.f32 0.0, %v579
  %v581 = vmul.f32 %v580, 1.442695
  %v582 = vpow.pop %v581
  %v583 = vadd.f32 %v582, 1.0
  %v584 = vrcp.pop %v583
  %586 = vrot.lane.b32.xlu0 %v576, 64
  %v587 = vpop.permute.xlu0 %586
  %v589 = vmul.f32 %v584, %v587
  %591 = vrot.lane.b32.xlu0 %v589, 64
  %v592 = vpop.permute.xlu0 %591
  %v594 = vadd.f32 %v504, %v592
  %v595 = vtanh.pop %v594
  %v596 = vsub.f32 1.0, %v584
  %598 = vrot.lane.b32.xlu0 %v595, 96
  %v599 = vpop.permute.xlu0 %598
  %v601 = vmul.f32 %v596, %v599
  %v602 = vmul.f32 %v584, %v428
  %v603 = vadd.f32 %v601, %v602
  %605 = vrot.lane.b32.xlu0 %v603, 96
  %v606 = vpop.permute.xlu0 %605
  %608 = vst.msk [vmem:[#allocation2 + $0x10] sm:$0xff] %vm155, %v606
  %v610 = vsel %vm71, %v53, 0
  %612 = vmatprep.subr.mxu0 0.0
  %613 = vmatpush1.msra.mxu0 %v77
  %614 = vmatprep.subr.mxu0 0.0
  %615 = vmatpush1.msra.mxu0 0.0
  %616 = vmatprep.subr.mxu0 0.0
  %617 = vmatpush1.msra.mxu0 0.0
  %618 = vmatprep.subr.mxu0 0.0
  %619 = vmatpush1.msra.mxu0 0.0
  %620 = vmatprep.subr.mxu0 0.0
  %621 = vmatpush1.msra.mxu0 0.0
  %622 = vmatprep.subr.mxu0 0.0
  %623 = vmatpush1.msra.mxu0 0.0
  %624 = vmatprep.subr.mxu0 0.0
  %625 = vmatpush1.msra.mxu0 0.0
  %626 = vmatprep.subr.mxu0 0.0
  %627 = vmatpush1.msra.mxu0 0.0
  %628 = vmatprep.subr.mxu0 0.0
  %629 = vmatpush1.msra.mxu0 0.0
  %630 = vmatprep.subr.mxu0 0.0
  %631 = vmatpush1.msra.mxu0 0.0
  %632 = vmatprep.subr.mxu0 0.0
  %633 = vmatpush1.msra.mxu0 0.0
  %634 = vmatprep.subr.mxu0 0.0
  %635 = vmatpush1.msra.mxu0 0.0
  %636 = vmatprep.subr.mxu0 0.0
  %637 = vmatpush1.msra.mxu0 0.0
  %638 = vmatprep.subr.mxu0 0.0
  %639 = vmatpush1.msra.mxu0 0.0
  %640 = vmatprep.subr.mxu0 0.0
  %641 = vmatpush1.msra.mxu0 0.0
  %642 = vmatprep.subr.mxu0 0.0
  %643 = vmatpush1.msra.mxu0 0.0
  %644 = vmatprep.subr.mxu0 0.0
  %645 = vmatpush1.msra.mxu0 0.0
  %646 = vmatprep.subr.mxu0 0.0
  %647 = vmatpush1.msra.mxu0 0.0
  %648 = vmatprep.subr.mxu0 0.0
  %649 = vmatpush1.msra.mxu0 0.0
  %650 = vmatprep.subr.mxu0 0.0
  %651 = vmatpush1.msra.mxu0 0.0
  %652 = vmatprep.subr.mxu0 0.0
  %653 = vmatpush1.msra.mxu0 0.0
  %654 = vmatprep.subr.mxu0 0.0
  %655 = vmatpush1.msra.mxu0 0.0
  %656 = vmatprep.subr.mxu0 0.0
  %657 = vmatpush1.msra.mxu0 0.0
  %658 = vmatprep.subr.mxu0 0.0
  %659 = vmatpush1.msra.mxu0 0.0
  %660 = vmatprep.subr.mxu0 0.0
  %661 = vmatpush1.msra.mxu0 0.0
  %662 = vmatprep.subr.mxu0 0.0
  %663 = vmatpush1.msra.mxu0 0.0
  %664 = vmatprep.subr.mxu0 0.0
  %665 = vmatpush1.msra.mxu0 0.0
  %666 = vmatprep.subr.mxu0 0.0
  %667 = vmatpush1.msra.mxu0 0.0
  %668 = vmatprep.subr.mxu0 0.0
  %669 = vmatpush1.msra.mxu0 0.0
  %670 = vmatprep.subr.mxu0 0.0
  %671 = vmatpush1.msra.mxu0 0.0
  %672 = vmatprep.subr.mxu0 0.0
  %673 = vmatpush1.msra.mxu0 0.0
  %674 = vmatprep.subr.mxu0 0.0
  %675 = vmatpush1.msra.mxu0 0.0
  %676 = vmatprep.mubr.f32.mxu0 0.0
  %677 = vmatmul.mubr.f32.gmra.mrb[0].mxu0 %v610
  %v678 = vpop.f32.mrb[0].mxu0
  %v679 = vadd.f32 %v69, %v678
  %v680 = vpop.f32.mrb[0].mxu0
  %681 = vdwg.mxu0
  %v682 = vsel %vm155, %v606, 0
  %684 = vmatprep.subr.mxu0 0.0
  %685 = vmatpush1.msra.mxu0 %v59
  %686 = vmatprep.subr.mxu0 0.0
  %687 = vmatpush1.msra.mxu0 %v60
  %688 = vmatprep.subr.mxu0 0.0
  %689 = vmatpush1.msra.mxu0 %v61
  %690 = vmatprep.subr.mxu0 0.0
  %691 = vmatpush1.msra.mxu0 %v62
  %692 = vmatprep.subr.mxu0 0.0
  %693 = vmatpush1.msra.mxu0 0.0
  %694 = vmatprep.subr.mxu0 0.0
  %695 = vmatpush1.msra.mxu0 0.0
  %696 = vmatprep.subr.mxu0 0.0
  %697 = vmatpush1.msra.mxu0 0.0
  %698 = vmatprep.subr.mxu0 0.0
  %699 = vmatpush1.msra.mxu0 0.0
  %700 = vmatprep.subr.mxu0 0.0
  %701 = vmatpush1.msra.mxu0 0.0
  %702 = vmatprep.subr.mxu0 0.0
  %703 = vmatpush1.msra.mxu0 0.0
  %704 = vmatprep.subr.mxu0 0.0
  %705 = vmatpush1.msra.mxu0 0.0
  %706 = vmatprep.subr.mxu0 0.0
  %707 = vmatpush1.msra.mxu0 0.0
  %708 = vmatprep.subr.mxu0 0.0
  %709 = vmatpush1.msra.mxu0 0.0
  %710 = vmatprep.subr.mxu0 0.0
  %711 = vmatpush1.msra.mxu0 0.0
  %712 = vmatprep.subr.mxu0 0.0
  %713 = vmatpush1.msra.mxu0 0.0
  %714 = vmatprep.subr.mxu0 0.0
  %715 = vmatpush1.msra.mxu0 0.0
  %716 = vmatprep.subr.mxu0 0.0
  %717 = vmatpush1.msra.mxu0 0.0
  %718 = vmatprep.subr.mxu0 0.0
  %719 = vmatpush1.msra.mxu0 0.0
  %720 = vmatprep.subr.mxu0 0.0
  %721 = vmatpush1.msra.mxu0 0.0
  %722 = vmatprep.subr.mxu0 0.0
  %723 = vmatpush1.msra.mxu0 0.0
  %724 = vmatprep.subr.mxu0 0.0
  %725 = vmatpush1.msra.mxu0 0.0
  %726 = vmatprep.subr.mxu0 0.0
  %727 = vmatpush1.msra.mxu0 0.0
  %728 = vmatprep.subr.mxu0 0.0
  %729 = vmatpush1.msra.mxu0 0.0
  %730 = vmatprep.subr.mxu0 0.0
  %731 = vmatpush1.msra.mxu0 0.0
  %732 = vmatprep.subr.mxu0 0.0
  %733 = vmatpush1.msra.mxu0 0.0
  %734 = vmatprep.subr.mxu0 0.0
  %735 = vmatpush1.msra.mxu0 0.0
  %736 = vmatprep.subr.mxu0 0.0
  %737 = vmatpush1.msra.mxu0 0.0
  %738 = vmatprep.subr.mxu0 0.0
  %739 = vmatpush1.msra.mxu0 0.0
  %740 = vmatprep.subr.mxu0 0.0
  %741 = vmatpush1.msra.mxu0 0.0
  %742 = vmatprep.subr.mxu0 0.0
  %743 = vmatpush1.msra.mxu0 0.0
  %744 = vmatprep.subr.mxu0 0.0
  %745 = vmatpush1.msra.mxu0 0.0
  %746 = vmatprep.subr.mxu0 0.0
  %747 = vmatpush1.msra.mxu0 0.0
  %748 = vmatprep.mubr.f32.mxu0 0.0
  %749 = vmatmul.mubr.f32.gmra.mrb[0].mxu0 %v682
  %v750 = vpop.f32.mrb[0].mxu0
  %v751 = vadd.f32 %v153, %v750
  %v752 = vpop.f32.mrb[0].mxu0
  %753 = vdwg.mxu0
  %v754 = vadd.f32 %v679, %v751
  %v755 = vsub.f32 0.0, %v754
  %v756 = vmul.f32 %v755, 1.442695
  %v757 = vpow.pop %v756
  %v758 = vadd.f32 %v757, 1.0
  %v759 = vrcp.pop %v758
  %761 = vrot.lane.b32.xlu0 %v751, 64
  %v762 = vpop.permute.xlu0 %761
  %v764 = vmul.f32 %v759, %v762
  %766 = vrot.lane.b32.xlu0 %v764, 64
  %v767 = vpop.permute.xlu0 %766
  %v769 = vadd.f32 %v679, %v767
  %v770 = vtanh.pop %v769
  %v771 = vsub.f32 1.0, %v759
  %773 = vrot.lane.b32.xlu0 %v770, 96
  %v774 = vpop.permute.xlu0 %773
  %v776 = vmul.f32 %v771, %v774
  %v777 = vmul.f32 %v759, %v603
  %v778 = vadd.f32 %v776, %v777
  %780 = vrot.lane.b32.xlu0 %v778, 96
  %v781 = vpop.permute.xlu0 %780
  %783 = vst.msk [vmem:[#allocation2 + $0x18] sm:$0xff] %vm155, %v781
  %v785 = vsel %vm71, %v54, 0
  %787 = vmatprep.subr.mxu0 0.0
  %788 = vmatpush1.msra.mxu0 %v77
  %789 = vmatprep.subr.mxu0 0.0
  %790 = vmatpush1.msra.mxu0 0.0
  %791 = vmatprep.subr.mxu0 0.0
  %792 = vmatpush1.msra.mxu0 0.0
  %793 = vmatprep.subr.mxu0 0.0
  %794 = vmatpush1.msra.mxu0 0.0
  %795 = vmatprep.subr.mxu0 0.0
  %796 = vmatpush1.msra.mxu0 0.0
  %797 = vmatprep.subr.mxu0 0.0
  %798 = vmatpush1.msra.mxu0 0.0
  %799 = vmatprep.subr.mxu0 0.0
  %800 = vmatpush1.msra.mxu0 0.0
  %801 = vmatprep.subr.mxu0 0.0
  %802 = vmatpush1.msra.mxu0 0.0
  %803 = vmatprep.subr.mxu0 0.0
  %804 = vmatpush1.msra.mxu0 0.0
  %805 = vmatprep.subr.mxu0 0.0
  %806 = vmatpush1.msra.mxu0 0.0
  %807 = vmatprep.subr.mxu0 0.0
  %808 = vmatpush1.msra.mxu0 0.0
  %809 = vmatprep.subr.mxu0 0.0
  %810 = vmatpush1.msra.mxu0 0.0
  %811 = vmatprep.subr.mxu0 0.0
  %812 = vmatpush1.msra.mxu0 0.0
  %813 = vmatprep.subr.mxu0 0.0
  %814 = vmatpush1.msra.mxu0 0.0
  %815 = vmatprep.subr.mxu0 0.0
  %816 = vmatpush1.msra.mxu0 0.0
  %817 = vmatprep.subr.mxu0 0.0
  %818 = vmatpush1.msra.mxu0 0.0
  %819 = vmatprep.subr.mxu0 0.0
  %820 = vmatpush1.msra.mxu0 0.0
  %821 = vmatprep.subr.mxu0 0.0
  %822 = vmatpush1.msra.mxu0 0.0
  %823 = vmatprep.subr.mxu0 0.0
  %824 = vmatpush1.msra.mxu0 0.0
  %825 = vmatprep.subr.mxu0 0.0
  %826 = vmatpush1.msra.mxu0 0.0
  %827 = vmatprep.subr.mxu0 0.0
  %828 = vmatpush1.msra.mxu0 0.0
  %829 = vmatprep.subr.mxu0 0.0
  %830 = vmatpush1.msra.mxu0 0.0
  %831 = vmatprep.subr.mxu0 0.0
  %832 = vmatpush1.msra.mxu0 0.0
  %833 = vmatprep.subr.mxu0 0.0
  %834 = vmatpush1.msra.mxu0 0.0
  %835 = vmatprep.subr.mxu0 0.0
  %836 = vmatpush1.msra.mxu0 0.0
  %837 = vmatprep.subr.mxu0 0.0
  %838 = vmatpush1.msra.mxu0 0.0
  %839 = vmatprep.subr.mxu0 0.0
  %840 = vmatpush1.msra.mxu0 0.0
  %841 = vmatprep.subr.mxu0 0.0
  %842 = vmatpush1.msra.mxu0 0.0
  %843 = vmatprep.subr.mxu0 0.0
  %844 = vmatpush1.msra.mxu0 0.0
  %845 = vmatprep.subr.mxu0 0.0
  %846 = vmatpush1.msra.mxu0 0.0
  %847 = vmatprep.subr.mxu0 0.0
  %848 = vmatpush1.msra.mxu0 0.0
  %849 = vmatprep.subr.mxu0 0.0
  %850 = vmatpush1.msra.mxu0 0.0
  %851 = vmatprep.mubr.f32.mxu0 0.0
  %852 = vmatmul.mubr.f32.gmra.mrb[0].mxu0 %v785
  %v853 = vpop.f32.mrb[0].mxu0
  %v854 = vadd.f32 %v69, %v853
  %v855 = vpop.f32.mrb[0].mxu0
  %856 = vdwg.mxu0
  %v857 = vsel %vm155, %v781, 0
  %859 = vmatprep.subr.mxu0 0.0
  %860 = vmatpush1.msra.mxu0 %v59
  %861 = vmatprep.subr.mxu0 0.0
  %862 = vmatpush1.msra.mxu0 %v60
  %863 = vmatprep.subr.mxu0 0.0
  %864 = vmatpush1.msra.mxu0 %v61
  %865 = vmatprep.subr.mxu0 0.0
  %866 = vmatpush1.msra.mxu0 %v62
  %867 = vmatprep.subr.mxu0 0.0
  %868 = vmatpush1.msra.mxu0 0.0
  %869 = vmatprep.subr.mxu0 0.0
  %870 = vmatpush1.msra.mxu0 0.0
  %871 = vmatprep.subr.mxu0 0.0
  %872 = vmatpush1.msra.mxu0 0.0
  %873 = vmatprep.subr.mxu0 0.0
  %874 = vmatpush1.msra.mxu0 0.0
  %875 = vmatprep.subr.mxu0 0.0
  %876 = vmatpush1.msra.mxu0 0.0
  %877 = vmatprep.subr.mxu0 0.0
  %878 = vmatpush1.msra.mxu0 0.0
  %879 = vmatprep.subr.mxu0 0.0
  %880 = vmatpush1.msra.mxu0 0.0
  %881 = vmatprep.subr.mxu0 0.0
  %882 = vmatpush1.msra.mxu0 0.0
  %883 = vmatprep.subr.mxu0 0.0
  %884 = vmatpush1.msra.mxu0 0.0
  %885 = vmatprep.subr.mxu0 0.0
  %886 = vmatpush1.msra.mxu0 0.0
  %887 = vmatprep.subr.mxu0 0.0
  %888 = vmatpush1.msra.mxu0 0.0
  %889 = vmatprep.subr.mxu0 0.0
  %890 = vmatpush1.msra.mxu0 0.0
  %891 = vmatprep.subr.mxu0 0.0
  %892 = vmatpush1.msra.mxu0 0.0
  %893 = vmatprep.subr.mxu0 0.0
  %894 = vmatpush1.msra.mxu0 0.0
  %895 = vmatprep.subr.mxu0 0.0
  %896 = vmatpush1.msra.mxu0 0.0
  %897 = vmatprep.subr.mxu0 0.0
  %898 = vmatpush1.msra.mxu0 0.0
  %899 = vmatprep.subr.mxu0 0.0
  %900 = vmatpush1.msra.mxu0 0.0
  %901 = vmatprep.subr.mxu0 0.0
  %902 = vmatpush1.msra.mxu0 0.0
  %903 = vmatprep.subr.mxu0 0.0
  %904 = vmatpush1.msra.mxu0 0.0
  %905 = vmatprep.subr.mxu0 0.0
  %906 = vmatpush1.msra.mxu0 0.0
  %907 = vmatprep.subr.mxu0 0.0
  %908 = vmatpush1.msra.mxu0 0.0
  %909 = vmatprep.subr.mxu0 0.0
  %910 = vmatpush1.msra.mxu0 0.0
  %911 = vmatprep.subr.mxu0 0.0
  %912 = vmatpush1.msra.mxu0 0.0
  %913 = vmatprep.subr.mxu0 0.0
  %914 = vmatpush1.msra.mxu0 0.0
  %915 = vmatprep.subr.mxu0 0.0
  %916 = vmatpush1.msra.mxu0 0.0
  %917 = vmatprep.subr.mxu0 0.0
  %918 = vmatpush1.msra.mxu0 0.0
  %919 = vmatprep.subr.mxu0 0.0
  %920 = vmatpush1.msra.mxu0 0.0
  %921 = vmatprep.subr.mxu0 0.0
  %922 = vmatpush1.msra.mxu0 0.0
  %923 = vmatprep.mubr.f32.mxu0 0.0
  %924 = vmatmul.mubr.f32.gmra.mrb[0].mxu0 %v857
  %v925 = vpop.f32.mrb[0].mxu0
  %v926 = vadd.f32 %v153, %v925
  %v927 = vpop.f32.mrb[0].mxu0
  %928 = vdwg.mxu0
  %v929 = vadd.f32 %v854, %v926
  %v930 = vsub.f32 0.0, %v929
  %v931 = vmul.f32 %v930, 1.442695
  %v932 = vpow.pop %v931
  %v933 = vadd.f32 %v932, 1.0
  %v934 = vrcp.pop %v933
  %936 = vrot.lane.b32.xlu0 %v926, 64
  %v937 = vpop.permute.xlu0 %936
  %v939 = vmul.f32 %v934, %v937
  %941 = vrot.lane.b32.xlu0 %v939, 64
  %v942 = vpop.permute.xlu0 %941
  %v944 = vadd.f32 %v854, %v942
  %v945 = vtanh.pop %v944
  %v946 = vsub.f32 1.0, %v934
  %948 = vrot.lane.b32.xlu0 %v945, 96
  %v949 = vpop.permute.xlu0 %948
  %v951 = vmul.f32 %v946, %v949
  %v952 = vmul.f32 %v934, %v778
  %v953 = vadd.f32 %v951, %v952
  %955 = vrot.lane.b32.xlu0 %v953, 96
  %v956 = vpop.permute.xlu0 %955
  %958 = vst.msk [vmem:[#allocation2 + $0x20] sm:$0xff] %vm155, %v956
  %v960 = vsel %vm71, %v55, 0
  %962 = vmatprep.subr.mxu0 0.0
  %963 = vmatpush1.msra.mxu0 %v77
  %964 = vmatprep.subr.mxu0 0.0
  %965 = vmatpush1.msra.mxu0 0.0
  %966 = vmatprep.subr.mxu0 0.0
  %967 = vmatpush1.msra.mxu0 0.0
  %968 = vmatprep.subr.mxu0 0.0
  %969 = vmatpush1.msra.mxu0 0.0
  %970 = vmatprep.subr.mxu0 0.0
  %971 = vmatpush1.msra.mxu0 0.0
  %972 = vmatprep.subr.mxu0 0.0
  %973 = vmatpush1.msra.mxu0 0.0
  %974 = vmatprep.subr.mxu0 0.0
  %975 = vmatpush1.msra.mxu0 0.0
  %976 = vmatprep.subr.mxu0 0.0
  %977 = vmatpush1.msra.mxu0 0.0
  %978 = vmatprep.subr.mxu0 0.0
  %979 = vmatpush1.msra.mxu0 0.0
  %980 = vmatprep.subr.mxu0 0.0
  %981 = vmatpush1.msra.mxu0 0.0
  %982 = vmatprep.subr.mxu0 0.0
  %983 = vmatpush1.msra.mxu0 0.0
  %984 = vmatprep.subr.mxu0 0.0
  %985 = vmatpush1.msra.mxu0 0.0
  %986 = vmatprep.subr.mxu0 0.0
  %987 = vmatpush1.msra.mxu0 0.0
  %988 = vmatprep.subr.mxu0 0.0
  %989 = vmatpush1.msra.mxu0 0.0
  %990 = vmatprep.subr.mxu0 0.0
  %991 = vmatpush1.msra.mxu0 0.0
  %992 = vmatprep.subr.mxu0 0.0
  %993 = vmatpush1.msra.mxu0 0.0
  %994 = vmatprep.subr.mxu0 0.0
  %995 = vmatpush1.msra.mxu0 0.0
  %996 = vmatprep.subr.mxu0 0.0
  %997 = vmatpush1.msra.mxu0 0.0
  %998 = vmatprep.subr.mxu0 0.0
  %999 = vmatpush1.msra.mxu0 0.0
  %1000 = vmatprep.subr.mxu0 0.0
  %1001 = vmatpush1.msra.mxu0 0.0
  %1002 = vmatprep.subr.mxu0 0.0
  %1003 = vmatpush1.msra.mxu0 0.0
  %1004 = vmatprep.subr.mxu0 0.0
  %1005 = vmatpush1.msra.mxu0 0.0
  %1006 = vmatprep.subr.mxu0 0.0
  %1007 = vmatpush1.msra.mxu0 0.0
  %1008 = vmatprep.subr.mxu0 0.0
  %1009 = vmatpush1.msra.mxu0 0.0
  %1010 = vmatprep.subr.mxu0 0.0
  %1011 = vmatpush1.msra.mxu0 0.0
  %1012 = vmatprep.subr.mxu0 0.0
  %1013 = vmatpush1.msra.mxu0 0.0
  %1014 = vmatprep.subr.mxu0 0.0
  %1015 = vmatpush1.msra.mxu0 0.0
  %1016 = vmatprep.subr.mxu0 0.0
  %1017 = vmatpush1.msra.mxu0 0.0
  %1018 = vmatprep.subr.mxu0 0.0
  %1019 = vmatpush1.msra.mxu0 0.0
  %1020 = vmatprep.subr.mxu0 0.0
  %1021 = vmatpush1.msra.mxu0 0.0
  %1022 = vmatprep.subr.mxu0 0.0
  %1023 = vmatpush1.msra.mxu0 0.0
  %1024 = vmatprep.subr.mxu0 0.0
  %1025 = vmatpush1.msra.mxu0 0.0
  %1026 = vmatprep.mubr.f32.mxu0 0.0
  %1027 = vmatmul.mubr.f32.gmra.mrb[0].mxu0 %v960
  %v1028 = vpop.f32.mrb[0].mxu0
  %v1029 = vadd.f32 %v69, %v1028
  %v1030 = vpop.f32.mrb[0].mxu0
  %1031 = vdwg.mxu0
  %v1032 = vsel %vm155, %v956, 0
  %1034 = vmatprep.subr.mxu0 0.0
  %1035 = vmatpush1.msra.mxu0 %v59
  %1036 = vmatprep.subr.mxu0 0.0
  %1037 = vmatpush1.msra.mxu0 %v60
  %1038 = vmatprep.subr.mxu0 0.0
  %1039 = vmatpush1.msra.mxu0 %v61
  %1040 = vmatprep.subr.mxu0 0.0
  %1041 = vmatpush1.msra.mxu0 %v62
  %1042 = vmatprep.subr.mxu0 0.0
  %1043 = vmatpush1.msra.mxu0 0.0
  %1044 = vmatprep.subr.mxu0 0.0
  %1045 = vmatpush1.msra.mxu0 0.0
  %1046 = vmatprep.subr.mxu0 0.0
  %1047 = vmatpush1.msra.mxu0 0.0
  %1048 = vmatprep.subr.mxu0 0.0
  %1049 = vmatpush1.msra.mxu0 0.0
  %1050 = vmatprep.subr.mxu0 0.0
  %1051 = vmatpush1.msra.mxu0 0.0
  %1052 = vmatprep.subr.mxu0 0.0
  %1053 = vmatpush1.msra.mxu0 0.0
  %1054 = vmatprep.subr.mxu0 0.0
  %1055 = vmatpush1.msra.mxu0 0.0
  %1056 = vmatprep.subr.mxu0 0.0
  %1057 = vmatpush1.msra.mxu0 0.0
  %1058 = vmatprep.subr.mxu0 0.0
  %1059 = vmatpush1.msra.mxu0 0.0
  %1060 = vmatprep.subr.mxu0 0.0
  %1061 = vmatpush1.msra.mxu0 0.0
  %1062 = vmatprep.subr.mxu0 0.0
  %1063 = vmatpush1.msra.mxu0 0.0
  %1064 = vmatprep.subr.mxu0 0.0
  %1065 = vmatpush1.msra.mxu0 0.0
  %1066 = vmatprep.subr.mxu0 0.0
  %1067 = vmatpush1.msra.mxu0 0.0
  %1068 = vmatprep.subr.mxu0 0.0
  %1069 = vmatpush1.msra.mxu0 0.0
  %1070 = vmatprep.subr.mxu0 0.0
  %1071 = vmatpush1.msra.mxu0 0.0
  %1072 = vmatprep.subr.mxu0 0.0
  %1073 = vmatpush1.msra.mxu0 0.0
  %1074 = vmatprep.subr.mxu0 0.0
  %1075 = vmatpush1.msra.mxu0 0.0
  %1076 = vmatprep.subr.mxu0 0.0
  %1077 = vmatpush1.msra.mxu0 0.0
  %1078 = vmatprep.subr.mxu0 0.0
  %1079 = vmatpush1.msra.mxu0 0.0
  %1080 = vmatprep.subr.mxu0 0.0
  %1081 = vmatpush1.msra.mxu0 0.0
  %1082 = vmatprep.subr.mxu0 0.0
  %1083 = vmatpush1.msra.mxu0 0.0
  %1084 = vmatprep.subr.mxu0 0.0
  %1085 = vmatpush1.msra.mxu0 0.0
  %1086 = vmatprep.subr.mxu0 0.0
  %1087 = vmatpush1.msra.mxu0 0.0
  %1088 = vmatprep.subr.mxu0 0.0
  %1089 = vmatpush1.msra.mxu0 0.0
  %1090 = vmatprep.subr.mxu0 0.0
  %1091 = vmatpush1.msra.mxu0 0.0
  %1092 = vmatprep.subr.mxu0 0.0
  %1093 = vmatpush1.msra.mxu0 0.0
  %1094 = vmatprep.subr.mxu0 0.0
  %1095 = vmatpush1.msra.mxu0 0.0
  %1096 = vmatprep.subr.mxu0 0.0
  %1097 = vmatpush1.msra.mxu0 0.0
  %1098 = vmatprep.mubr.f32.mxu0 0.0
  %1099 = vmatmul.mubr.f32.gmra.mrb[0].mxu0 %v1032
  %v1100 = vpop.f32.mrb[0].mxu0
  %v1101 = vadd.f32 %v153, %v1100
  %v1102 = vpop.f32.mrb[0].mxu0
  %1103 = vdwg.mxu0
  %v1104 = vadd.f32 %v1029, %v1101
  %v1105 = vsub.f32 0.0, %v1104
  %v1106 = vmul.f32 %v1105, 1.442695
  %v1107 = vpow.pop %v1106
  %v1108 = vadd.f32 %v1107, 1.0
  %v1109 = vrcp.pop %v1108
  %1111 = vrot.lane.b32.xlu0 %v1101, 64
  %v1112 = vpop.permute.xlu0 %1111
  %v1114 = vmul.f32 %v1109, %v1112
  %1116 = vrot.lane.b32.xlu0 %v1114, 64
  %v1117 = vpop.permute.xlu0 %1116
  %v1119 = vadd.f32 %v1029, %v1117
  %v1120 = vtanh.pop %v1119
  %v1121 = vsub.f32 1.0, %v1109
  %1123 = vrot.lane.b32.xlu0 %v1120, 96
  %v1124 = vpop.permute.xlu0 %1123
  %v1126 = vmul.f32 %v1121, %v1124
  %v1127 = vmul.f32 %v1109, %v953
  %v1128 = vadd.f32 %v1126, %v1127
  %1130 = vrot.lane.b32.xlu0 %v1128, 96
  %v1131 = vpop.permute.xlu0 %1130
  %1133 = vst.msk [vmem:[#allocation2 + $0x28] sm:$0xff] %vm155, %v1131
  %v1135 = vsel %vm71, %v56, 0
  %1137 = vmatprep.subr.mxu0 0.0
  %1138 = vmatpush1.msra.mxu0 %v77
  %1139 = vmatprep.subr.mxu0 0.0
  %1140 = vmatpush1.msra.mxu0 0.0
  %1141 = vmatprep.subr.mxu0 0.0
  %1142 = vmatpush1.msra.mxu0 0.0
  %1143 = vmatprep.subr.mxu0 0.0
  %1144 = vmatpush1.msra.mxu0 0.0
  %1145 = vmatprep.subr.mxu0 0.0
  %1146 = vmatpush1.msra.mxu0 0.0
  %1147 = vmatprep.subr.mxu0 0.0
  %1148 = vmatpush1.msra.mxu0 0.0
  %1149 = vmatprep.subr.mxu0 0.0
  %1150 = vmatpush1.msra.mxu0 0.0
  %1151 = vmatprep.subr.mxu0 0.0
  %1152 = vmatpush1.msra.mxu0 0.0
  %1153 = vmatprep.subr.mxu0 0.0
  %1154 = vmatpush1.msra.mxu0 0.0
  %1155 = vmatprep.subr.mxu0 0.0
  %1156 = vmatpush1.msra.mxu0 0.0
  %1157 = vmatprep.subr.mxu0 0.0
  %1158 = vmatpush1.msra.mxu0 0.0
  %1159 = vmatprep.subr.mxu0 0.0
  %1160 = vmatpush1.msra.mxu0 0.0
  %1161 = vmatprep.subr.mxu0 0.0
  %1162 = vmatpush1.msra.mxu0 0.0
  %1163 = vmatprep.subr.mxu0 0.0
  %1164 = vmatpush1.msra.mxu0 0.0
  %1165 = vmatprep.subr.mxu0 0.0
  %1166 = vmatpush1.msra.mxu0 0.0
  %1167 = vmatprep.subr.mxu0 0.0
  %1168 = vmatpush1.msra.mxu0 0.0
  %1169 = vmatprep.subr.mxu0 0.0
  %1170 = vmatpush1.msra.mxu0 0.0
  %1171 = vmatprep.subr.mxu0 0.0
  %1172 = vmatpush1.msra.mxu0 0.0
  %1173 = vmatprep.subr.mxu0 0.0
  %1174 = vmatpush1.msra.mxu0 0.0
  %1175 = vmatprep.subr.mxu0 0.0
  %1176 = vmatpush1.msra.mxu0 0.0
  %1177 = vmatprep.subr.mxu0 0.0
  %1178 = vmatpush1.msra.mxu0 0.0
  %1179 = vmatprep.subr.mxu0 0.0
  %1180 = vmatpush1.msra.mxu0 0.0
  %1181 = vmatprep.subr.mxu0 0.0
  %1182 = vmatpush1.msra.mxu0 0.0
  %1183 = vmatprep.subr.mxu0 0.0
  %1184 = vmatpush1.msra.mxu0 0.0
  %1185 = vmatprep.subr.mxu0 0.0
  %1186 = vmatpush1.msra.mxu0 0.0
  %1187 = vmatprep.subr.mxu0 0.0
  %1188 = vmatpush1.msra.mxu0 0.0
  %1189 = vmatprep.subr.mxu0 0.0
  %1190 = vmatpush1.msra.mxu0 0.0
  %1191 = vmatprep.subr.mxu0 0.0
  %1192 = vmatpush1.msra.mxu0 0.0
  %1193 = vmatprep.subr.mxu0 0.0
  %1194 = vmatpush1.msra.mxu0 0.0
  %1195 = vmatprep.subr.mxu0 0.0
  %1196 = vmatpush1.msra.mxu0 0.0
  %1197 = vmatprep.subr.mxu0 0.0
  %1198 = vmatpush1.msra.mxu0 0.0
  %1199 = vmatprep.subr.mxu0 0.0
  %1200 = vmatpush1.msra.mxu0 0.0
  %1201 = vmatprep.mubr.f32.mxu0 0.0
  %1202 = vmatmul.mubr.f32.gmra.mrb[0].mxu0 %v1135
  %v1203 = vpop.f32.mrb[0].mxu0
  %v1204 = vadd.f32 %v69, %v1203
  %v1205 = vpop.f32.mrb[0].mxu0
  %1206 = vdwg.mxu0
  %v1207 = vsel %vm155, %v1131, 0
  %1209 = vmatprep.subr.mxu0 0.0
  %1210 = vmatpush1.msra.mxu0 %v59
  %1211 = vmatprep.subr.mxu0 0.0
  %1212 = vmatpush1.msra.mxu0 %v60
  %1213 = vmatprep.subr.mxu0 0.0
  %1214 = vmatpush1.msra.mxu0 %v61
  %1215 = vmatprep.subr.mxu0 0.0
  %1216 = vmatpush1.msra.mxu0 %v62
  %1217 = vmatprep.subr.mxu0 0.0
  %1218 = vmatpush1.msra.mxu0 0.0
  %1219 = vmatprep.subr.mxu0 0.0
  %1220 = vmatpush1.msra.mxu0 0.0
  %1221 = vmatprep.subr.mxu0 0.0
  %1222 = vmatpush1.msra.mxu0 0.0
  %1223 = vmatprep.subr.mxu0 0.0
  %1224 = vmatpush1.msra.mxu0 0.0
  %1225 = vmatprep.subr.mxu0 0.0
  %1226 = vmatpush1.msra.mxu0 0.0
  %1227 = vmatprep.subr.mxu0 0.0
  %1228 = vmatpush1.msra.mxu0 0.0
  %1229 = vmatprep.subr.mxu0 0.0
  %1230 = vmatpush1.msra.mxu0 0.0
  %1231 = vmatprep.subr.mxu0 0.0
  %1232 = vmatpush1.msra.mxu0 0.0
  %1233 = vmatprep.subr.mxu0 0.0
  %1234 = vmatpush1.msra.mxu0 0.0
  %1235 = vmatprep.subr.mxu0 0.0
  %1236 = vmatpush1.msra.mxu0 0.0
  %1237 = vmatprep.subr.mxu0 0.0
  %1238 = vmatpush1.msra.mxu0 0.0
  %1239 = vmatprep.subr.mxu0 0.0
  %1240 = vmatpush1.msra.mxu0 0.0
  %1241 = vmatprep.subr.mxu0 0.0
  %1242 = vmatpush1.msra.mxu0 0.0
  %1243 = vmatprep.subr.mxu0 0.0
  %1244 = vmatpush1.msra.mxu0 0.0
  %1245 = vmatprep.subr.mxu0 0.0
  %1246 = vmatpush1.msra.mxu0 0.0
  %1247 = vmatprep.subr.mxu0 0.0
  %1248 = vmatpush1.msra.mxu0 0.0
  %1249 = vmatprep.subr.mxu0 0.0
  %1250 = vmatpush1.msra.mxu0 0.0
  %1251 = vmatprep.subr.mxu0 0.0
  %1252 = vmatpush1.msra.mxu0 0.0
  %1253 = vmatprep.subr.mxu0 0.0
  %1254 = vmatpush1.msra.mxu0 0.0
  %1255 = vmatprep.subr.mxu0 0.0
  %1256 = vmatpush1.msra.mxu0 0.0
  %1257 = vmatprep.subr.mxu0 0.0
  %1258 = vmatpush1.msra.mxu0 0.0
  %1259 = vmatprep.subr.mxu0 0.0
  %1260 = vmatpush1.msra.mxu0 0.0
  %1261 = vmatprep.subr.mxu0 0.0
  %1262 = vmatpush1.msra.mxu0 0.0
  %1263 = vmatprep.subr.mxu0 0.0
  %1264 = vmatpush1.msra.mxu0 0.0
  %1265 = vmatprep.subr.mxu0 0.0
  %1266 = vmatpush1.msra.mxu0 0.0
  %1267 = vmatprep.subr.mxu0 0.0
  %1268 = vmatpush1.msra.mxu0 0.0
  %1269 = vmatprep.subr.mxu0 0.0
  %1270 = vmatpush1.msra.mxu0 0.0
  %1271 = vmatprep.subr.mxu0 0.0
  %1272 = vmatpush1.msra.mxu0 0.0
  %1273 = vmatprep.mubr.f32.mxu0 0.0
  %1274 = vmatmul.mubr.f32.gmra.mrb[0].mxu0 %v1207
  %v1275 = vpop.f32.mrb[0].mxu0
  %v1276 = vadd.f32 %v153, %v1275
  %v1277 = vpop.f32.mrb[0].mxu0
  %1278 = vdwg.mxu0
  %v1279 = vadd.f32 %v1204, %v1276
  %v1280 = vsub.f32 0.0, %v1279
  %v1281 = vmul.f32 %v1280, 1.442695
  %v1282 = vpow.pop %v1281
  %v1283 = vadd.f32 %v1282, 1.0
  %v1284 = vrcp.pop %v1283
  %1286 = vrot.lane.b32.xlu0 %v1276, 64
  %v1287 = vpop.permute.xlu0 %1286
  %v1289 = vmul.f32 %v1284, %v1287
  %1291 = vrot.lane.b32.xlu0 %v1289, 64
  %v1292 = vpop.permute.xlu0 %1291
  %v1294 = vadd.f32 %v1204, %v1292
  %v1295 = vtanh.pop %v1294
  %v1296 = vsub.f32 1.0, %v1284
  %1298 = vrot.lane.b32.xlu0 %v1295, 96
  %v1299 = vpop.permute.xlu0 %1298
  %v1301 = vmul.f32 %v1296, %v1299
  %v1302 = vmul.f32 %v1284, %v1128
  %v1303 = vadd.f32 %v1301, %v1302
  %1305 = vrot.lane.b32.xlu0 %v1303, 96
  %v1306 = vpop.permute.xlu0 %1305
  %1308 = vst.msk [vmem:[#allocation2 + $0x30] sm:$0xff] %vm155, %v1306
  %v1310 = vsel %vm71, %v57, 0
  %1312 = vmatprep.subr.mxu0 0.0
  %1313 = vmatpush1.msra.mxu0 %v77
  %1314 = vmatprep.subr.mxu0 0.0
  %1315 = vmatpush1.msra.mxu0 0.0
  %1316 = vmatprep.subr.mxu0 0.0
  %1317 = vmatpush1.msra.mxu0 0.0
  %1318 = vmatprep.subr.mxu0 0.0
  %1319 = vmatpush1.msra.mxu0 0.0
  %1320 = vmatprep.subr.mxu0 0.0
  %1321 = vmatpush1.msra.mxu0 0.0
  %1322 = vmatprep.subr.mxu0 0.0
  %1323 = vmatpush1.msra.mxu0 0.0
  %1324 = vmatprep.subr.mxu0 0.0
  %1325 = vmatpush1.msra.mxu0 0.0
  %1326 = vmatprep.subr.mxu0 0.0
  %1327 = vmatpush1.msra.mxu0 0.0
  %1328 = vmatprep.subr.mxu0 0.0
  %1329 = vmatpush1.msra.mxu0 0.0
  %1330 = vmatprep.subr.mxu0 0.0
  %1331 = vmatpush1.msra.mxu0 0.0
  %1332 = vmatprep.subr.mxu0 0.0
  %1333 = vmatpush1.msra.mxu0 0.0
  %1334 = vmatprep.subr.mxu0 0.0
  %1335 = vmatpush1.msra.mxu0 0.0
  %1336 = vmatprep.subr.mxu0 0.0
  %1337 = vmatpush1.msra.mxu0 0.0
  %1338 = vmatprep.subr.mxu0 0.0
  %1339 = vmatpush1.msra.mxu0 0.0
  %1340 = vmatprep.subr.mxu0 0.0
  %1341 = vmatpush1.msra.mxu0 0.0
  %1342 = vmatprep.subr.mxu0 0.0
  %1343 = vmatpush1.msra.mxu0 0.0
  %1344 = vmatprep.subr.mxu0 0.0
  %1345 = vmatpush1.msra.mxu0 0.0
  %1346 = vmatprep.subr.mxu0 0.0
  %1347 = vmatpush1.msra.mxu0 0.0
  %1348 = vmatprep.subr.mxu0 0.0
  %1349 = vmatpush1.msra.mxu0 0.0
  %1350 = vmatprep.subr.mxu0 0.0
  %1351 = vmatpush1.msra.mxu0 0.0
  %1352 = vmatprep.subr.mxu0 0.0
  %1353 = vmatpush1.msra.mxu0 0.0
  %1354 = vmatprep.subr.mxu0 0.0
  %1355 = vmatpush1.msra.mxu0 0.0
  %1356 = vmatprep.subr.mxu0 0.0
  %1357 = vmatpush1.msra.mxu0 0.0
  %1358 = vmatprep.subr.mxu0 0.0
  %1359 = vmatpush1.msra.mxu0 0.0
  %1360 = vmatprep.subr.mxu0 0.0
  %1361 = vmatpush1.msra.mxu0 0.0
  %1362 = vmatprep.subr.mxu0 0.0
  %1363 = vmatpush1.msra.mxu0 0.0
  %1364 = vmatprep.subr.mxu0 0.0
  %1365 = vmatpush1.msra.mxu0 0.0
  %1366 = vmatprep.subr.mxu0 0.0
  %1367 = vmatpush1.msra.mxu0 0.0
  %1368 = vmatprep.subr.mxu0 0.0
  %1369 = vmatpush1.msra.mxu0 0.0
  %1370 = vmatprep.subr.mxu0 0.0
  %1371 = vmatpush1.msra.mxu0 0.0
  %1372 = vmatprep.subr.mxu0 0.0
  %1373 = vmatpush1.msra.mxu0 0.0
  %1374 = vmatprep.subr.mxu0 0.0
  %1375 = vmatpush1.msra.mxu0 0.0
  %1376 = vmatprep.mubr.f32.mxu0 0.0
  %1377 = vmatmul.mubr.f32.gmra.mrb[0].mxu0 %v1310
  %v1378 = vpop.f32.mrb[0].mxu0
  %v1379 = vadd.f32 %v69, %v1378
  %v1380 = vpop.f32.mrb[0].mxu0
  %1381 = vdwg.mxu0
  %v1382 = vsel %vm155, %v1306, 0
  %1384 = vmatprep.subr.mxu0 0.0
  %1385 = vmatpush1.msra.mxu0 %v59
  %1386 = vmatprep.subr.mxu0 0.0
  %1387 = vmatpush1.msra.mxu0 %v60
  %1388 = vmatprep.subr.mxu0 0.0
  %1389 = vmatpush1.msra.mxu0 %v61
  %1390 = vmatprep.subr.mxu0 0.0
  %1391 = vmatpush1.msra.mxu0 %v62
  %1392 = vmatprep.subr.mxu0 0.0
  %1393 = vmatpush1.msra.mxu0 0.0
  %1394 = vmatprep.subr.mxu0 0.0
  %1395 = vmatpush1.msra.mxu0 0.0
  %1396 = vmatprep.subr.mxu0 0.0
  %1397 = vmatpush1.msra.mxu0 0.0
  %1398 = vmatprep.subr.mxu0 0.0
  %1399 = vmatpush1.msra.mxu0 0.0
  %1400 = vmatprep.subr.mxu0 0.0
  %1401 = vmatpush1.msra.mxu0 0.0
  %1402 = vmatprep.subr.mxu0 0.0
  %1403 = vmatpush1.msra.mxu0 0.0
  %1404 = vmatprep.subr.mxu0 0.0
  %1405 = vmatpush1.msra.mxu0 0.0
  %1406 = vmatprep.subr.mxu0 0.0
  %1407 = vmatpush1.msra.mxu0 0.0
  %1408 = vmatprep.subr.mxu0 0.0
  %1409 = vmatpush1.msra.mxu0 0.0
  %1410 = vmatprep.subr.mxu0 0.0
  %1411 = vmatpush1.msra.mxu0 0.0
  %1412 = vmatprep.subr.mxu0 0.0
  %1413 = vmatpush1.msra.mxu0 0.0
  %1414 = vmatprep.subr.mxu0 0.0
  %1415 = vmatpush1.msra.mxu0 0.0
  %1416 = vmatprep.subr.mxu0 0.0
  %1417 = vmatpush1.msra.mxu0 0.0
  %1418 = vmatprep.subr.mxu0 0.0
  %1419 = vmatpush1.msra.mxu0 0.0
  %1420 = vmatprep.subr.mxu0 0.0
  %1421 = vmatpush1.msra.mxu0 0.0
  %1422 = vmatprep.subr.mxu0 0.0
  %1423 = vmatpush1.msra.mxu0 0.0
  %1424 = vmatprep.subr.mxu0 0.0
  %1425 = vmatpush1.msra.mxu0 0.0
  %1426 = vmatprep.subr.mxu0 0.0
  %1427 = vmatpush1.msra.mxu0 0.0
  %1428 = vmatprep.subr.mxu0 0.0
  %1429 = vmatpush1.msra.mxu0 0.0
  %1430 = vmatprep.subr.mxu0 0.0
  %1431 = vmatpush1.msra.mxu0 0.0
  %1432 = vmatprep.subr.mxu0 0.0
  %1433 = vmatpush1.msra.mxu0 0.0
  %1434 = vmatprep.subr.mxu0 0.0
  %1435 = vmatpush1.msra.mxu0 0.0
  %1436 = vmatprep.subr.mxu0 0.0
  %1437 = vmatpush1.msra.mxu0 0.0
  %1438 = vmatprep.subr.mxu0 0.0
  %1439 = vmatpush1.msra.mxu0 0.0
  %1440 = vmatprep.subr.mxu0 0.0
  %1441 = vmatpush1.msra.mxu0 0.0
  %1442 = vmatprep.subr.mxu0 0.0
  %1443 = vmatpush1.msra.mxu0 0.0
  %1444 = vmatprep.subr.mxu0 0.0
  %1445 = vmatpush1.msra.mxu0 0.0
  %1446 = vmatprep.subr.mxu0 0.0
  %1447 = vmatpush1.msra.mxu0 0.0
  %1448 = vmatprep.mubr.f32.mxu0 0.0
  %1449 = vmatmul.mubr.f32.gmra.mrb[0].mxu0 %v1382
  %v1450 = vpop.f32.mrb[0].mxu0
  %v1451 = vadd.f32 %v153, %v1450
  %v1452 = vpop.f32.mrb[0].mxu0
  %1453 = vdwg.mxu0
  %v1454 = vadd.f32 %v1379, %v1451
  %v1455 = vsub.f32 0.0, %v1454
  %v1456 = vmul.f32 %v1455, 1.442695
  %v1457 = vpow.pop %v1456
  %v1458 = vadd.f32 %v1457, 1.0
  %v1459 = vrcp.pop %v1458
  %1461 = vrot.lane.b32.xlu0 %v1451, 64
  %v1462 = vpop.permute.xlu0 %1461
  %v1464 = vmul.f32 %v1459, %v1462
  %1466 = vrot.lane.b32.xlu0 %v1464, 64
  %v1467 = vpop.permute.xlu0 %1466
  %v1469 = vadd.f32 %v1379, %v1467
  %v1470 = vtanh.pop %v1469
  %v1471 = vsub.f32 1.0, %v1459
  %1473 = vrot.lane.b32.xlu0 %v1470, 96
  %v1474 = vpop.permute.xlu0 %1473
  %v1476 = vmul.f32 %v1471, %v1474
  %v1477 = vmul.f32 %v1459, %v1303
  %v1478 = vadd.f32 %v1476, %v1477
  %1480 = vrot.lane.b32.xlu0 %v1478, 96
  %v1481 = vpop.permute.xlu0 %1480
  %1483 = vst.msk [vmem:[#allocation2 + $0x38] sm:$0xff] %vm155, %v1481
  %v1484 = vld [vmem:[#allocation2] sm:$0xff]
  %v1485 = vld [vmem:[#allocation2 + $0x8] sm:$0xff]
  %v1486 = vld [vmem:[#allocation2 + $0x10] sm:$0xff]
  %v1487 = vld [vmem:[#allocation2 + $0x18] sm:$0xff]
  %v1488 = vld [vmem:[#allocation2 + $0x20] sm:$0xff]
  %v1489 = vld [vmem:[#allocation2 + $0x28] sm:$0xff]
  %v1490 = vld [vmem:[#allocation2 + $0x30] sm:$0xff]
  %v1491 = vld [vmem:[#allocation2 + $0x38] sm:$0xff]
  %v1492 = vld [vmem:[%s5] sm:$0xff]
  %v1493 = vld [vmem:[%s5 + $0x8] sm:$0xff]
  %v1494 = vld [vmem:[%s5 + $0x10] sm:$0xff]
  %v1495 = vld [vmem:[%s5 + $0x18] sm:$0xff]
  %v1496 = vld [vmem:[%s6] sm:$0x1]
  %v1498 = vlaneseq
  %v1499 = vshrl.u32 %v1498, 7
  %v1500 = vsub.s32 0, %v1499
  %v1501 = vrot.slane %v1496, %v1500
  %v1504 = vsel %vm155, %v1484, 0
  %v1507 = vsel %vm155, %v1485, 0
  %v1510 = vsel %vm155, %v1486, 0
  %v1513 = vsel %vm155, %v1487, 0
  %v1516 = vsel %vm155, %v1488, 0
  %v1519 = vsel %vm155, %v1489, 0
  %v1522 = vsel %vm155, %v1490, 0
  %v1525 = vsel %vm155, %v1491, 0
  %1527 = vmatprep.subr.mxu0 0.0
  %1528 = vmatpush1.msra.mxu0 %v1492
  %1529 = vmatprep.subr.mxu0 0.0
  %1530 = vmatpush1.msra.mxu0 %v1493
  %1531 = vmatprep.subr.mxu0 0.0
  %1532 = vmatpush1.msra.mxu0 %v1494
  %1533 = vmatprep.subr.mxu0 0.0
  %1534 = vmatpush1.msra.mxu0 %v1495
  %1535 = vmatprep.subr.mxu0 0.0
  %1536 = vmatpush1.msra.mxu0 0.0
  %1537 = vmatprep.subr.mxu0 0.0
  %1538 = vmatpush1.msra.mxu0 0.0
  %1539 = vmatprep.subr.mxu0 0.0
  %1540 = vmatpush1.msra.mxu0 0.0
  %1541 = vmatprep.subr.mxu0 0.0
  %1542 = vmatpush1.msra.mxu0 0.0
  %1543 = vmatprep.subr.mxu0 0.0
  %1544 = vmatpush1.msra.mxu0 0.0
  %1545 = vmatprep.subr.mxu0 0.0
  %1546 = vmatpush1.msra.mxu0 0.0
  %1547 = vmatprep.subr.mxu0 0.0
  %1548 = vmatpush1.msra.mxu0 0.0
  %1549 = vmatprep.subr.mxu0 0.0
  %1550 = vmatpush1.msra.mxu0 0.0
  %1551 = vmatprep.subr.mxu0 0.0
  %1552 = vmatpush1.msra.mxu0 0.0
  %1553 = vmatprep.subr.mxu0 0.0
  %1554 = vmatpush1.msra.mxu0 0.0
  %1555 = vmatprep.subr.mxu0 0.0
  %1556 = vmatpush1.msra.mxu0 0.0
  %1557 = vmatprep.subr.mxu0 0.0
  %1558 = vmatpush1.msra.mxu0 0.0
  %1559 = vmatprep.subr.mxu0 0.0
  %1560 = vmatpush1.msra.mxu0 0.0
  %1561 = vmatprep.subr.mxu0 0.0
  %1562 = vmatpush1.msra.mxu0 0.0
  %1563 = vmatprep.subr.mxu0 0.0
  %1564 = vmatpush1.msra.mxu0 0.0
  %1565 = vmatprep.subr.mxu0 0.0
  %1566 = vmatpush1.msra.mxu0 0.0
  %1567 = vmatprep.subr.mxu0 0.0
  %1568 = vmatpush1.msra.mxu0 0.0
  %1569 = vmatprep.subr.mxu0 0.0
  %1570 = vmatpush1.msra.mxu0 0.0
  %1571 = vmatprep.subr.mxu0 0.0
  %1572 = vmatpush1.msra.mxu0 0.0
  %1573 = vmatprep.subr.mxu0 0.0
  %1574 = vmatpush1.msra.mxu0 0.0
  %1575 = vmatprep.subr.mxu0 0.0
  %1576 = vmatpush1.msra.mxu0 0.0
  %1577 = vmatprep.subr.mxu0 0.0
  %1578 = vmatpush1.msra.mxu0 0.0
  %1579 = vmatprep.subr.mxu0 0.0
  %1580 = vmatpush1.msra.mxu0 0.0
  %1581 = vmatprep.subr.mxu0 0.0
  %1582 = vmatpush1.msra.mxu0 0.0
  %1583 = vmatprep.subr.mxu0 0.0
  %1584 = vmatpush1.msra.mxu0 0.0
  %1585 = vmatprep.subr.mxu0 0.0
  %1586 = vmatpush1.msra.mxu0 0.0
  %1587 = vmatprep.subr.mxu0 0.0
  %1588 = vmatpush1.msra.mxu0 0.0
  %1589 = vmatprep.subr.mxu0 0.0
  %1590 = vmatpush1.msra.mxu0 0.0
  %1591 = vmatprep.mubr.f32.mxu0 0.0
  %1592 = vmatmul.mubr.f32.gmra.mrb[0].mxu0 %v1504
  %v1593 = vpop.f32.mrb[0].mxu0
  %v1594 = vadd.f32 %v1501, %v1593
  %v1595 = vpop.f32.mrb[0].mxu0
  %1596 = vmatprep.mubr.f32.mxu0 0.0
  %1597 = vmatmul.mubr.f32.gmra.mrb[0].mxu0 %v1507
  %v1598 = vpop.f32.mrb[0].mxu0
  %v1599 = vadd.f32 %v1501, %v1598
  %v1600 = vpop.f32.mrb[0].mxu0
  %1601 = vmatprep.mubr.f32.mxu0 0.0
  %1602 = vmatmul.mubr.f32.gmra.mrb[0].mxu0 %v1510
  %v1603 = vpop.f32.mrb[0].mxu0
  %v1604 = vadd.f32 %v1501, %v1603
  %v1605 = vpop.f32.mrb[0].mxu0
  %1606 = vmatprep.mubr.f32.mxu0 0.0
  %1607 = vmatmul.mubr.f32.gmra.mrb[0].mxu0 %v1513
  %v1608 = vpop.f32.mrb[0].mxu0
  %v1609 = vadd.f32 %v1501, %v1608
  %v1610 = vpop.f32.mrb[0].mxu0
  %1611 = vmatprep.mubr.f32.mxu0 0.0
  %1612 = vmatmul.mubr.f32.gmra.mrb[0].mxu0 %v1516
  %v1613 = vpop.f32.mrb[0].mxu0
  %v1614 = vadd.f32 %v1501, %v1613
  %v1615 = vpop.f32.mrb[0].mxu0
  %1616 = vmatprep.mubr.f32.mxu0 0.0
  %1617 = vmatmul.mubr.f32.gmra.mrb[0].mxu0 %v1519
  %v1618 = vpop.f32.mrb[0].mxu0
  %v1619 = vadd.f32 %v1501, %v1618
  %v1620 = vpop.f32.mrb[0].mxu0
  %1621 = vmatprep.mubr.f32.mxu0 0.0
  %1622 = vmatmul.mubr.f32.gmra.mrb[0].mxu0 %v1522
  %v1623 = vpop.f32.mrb[0].mxu0
  %v1624 = vadd.f32 %v1501, %v1623
  %v1625 = vpop.f32.mrb[0].mxu0
  %1626 = vmatprep.mubr.f32.mxu0 0.0
  %1627 = vmatmul.mubr.f32.gmra.mrb[0].mxu0 %v1525
  %v1628 = vpop.f32.mrb[0].mxu0
  %v1629 = vadd.f32 %v1501, %v1628
  %v1630 = vpop.f32.mrb[0].mxu0
  %1631 = vdwg.mxu0
  %v1632 = vmax.f32 %v1594, 0.0
  %v1633 = vmax.f32 %v1599, 0.0
  %v1634 = vmax.f32 %v1604, 0.0
  %v1635 = vmax.f32 %v1609, 0.0
  %v1636 = vmax.f32 %v1614, 0.0
  %v1637 = vmax.f32 %v1619, 0.0
  %v1638 = vmax.f32 %v1624, 0.0
  %v1639 = vmax.f32 %v1629, 0.0
  %v1640 = vld [vmem:[%s7] sm:$0xff]
  %v1641 = vld [vmem:[%s7 + $0x8] sm:$0xff]
  %v1642 = vld [vmem:[%s7 + $0x10] sm:$0xff]
  %v1643 = vld [vmem:[%s7 + $0x18] sm:$0xff]
  %v1644 = vld [vmem:[%s8] sm:$0x1]
  %v1646 = vlaneseq
  %v1647 = vshrl.u32 %v1646, 7
  %v1648 = vsub.s32 0, %v1647
  %v1649 = vrot.slane %v1644, %v1648
  %v1652 = vsel %vm155, %v1632, 0
  %v1655 = vsel %vm155, %v1633, 0
  %v1658 = vsel %vm155, %v1634, 0
  %v1661 = vsel %vm155, %v1635, 0
  %v1664 = vsel %vm155, %v1636, 0
  %v1667 = vsel %vm155, %v1637, 0
  %v1670 = vsel %vm155, %v1638, 0
  %v1673 = vsel %vm155, %v1639, 0
  %1675 = vmatprep.subr.mxu0 0.0
  %1676 = vmatpush1.msra.mxu0 %v1640
  %1677 = vmatprep.subr.mxu0 0.0
  %1678 = vmatpush1.msra.mxu0 %v1641
  %1679 = vmatprep.subr.mxu0 0.0
  %1680 = vmatpush1.msra.mxu0 %v1642
  %1681 = vmatprep.subr.mxu0 0.0
  %1682 = vmatpush1.msra.mxu0 %v1643
  %1683 = vmatprep.subr.mxu0 0.0
  %1684 = vmatpush1.msra.mxu0 0.0
  %1685 = vmatprep.subr.mxu0 0.0
  %1686 = vmatpush1.msra.mxu0 0.0
  %1687 = vmatprep.subr.mxu0 0.0
  %1688 = vmatpush1.msra.mxu0 0.0
  %1689 = vmatprep.subr.mxu0 0.0
  %1690 = vmatpush1.msra.mxu0 0.0
  %1691 = vmatprep.subr.mxu0 0.0
  %1692 = vmatpush1.msra.mxu0 0.0
  %1693 = vmatprep.subr.mxu0 0.0
  %1694 = vmatpush1.msra.mxu0 0.0
  %1695 = vmatprep.subr.mxu0 0.0
  %1696 = vmatpush1.msra.mxu0 0.0
  %1697 = vmatprep.subr.mxu0 0.0
  %1698 = vmatpush1.msra.mxu0 0.0
  %1699 = vmatprep.subr.mxu0 0.0
  %1700 = vmatpush1.msra.mxu0 0.0
  %1701 = vmatprep.subr.mxu0 0.0
  %1702 = vmatpush1.msra.mxu0 0.0
  %1703 = vmatprep.subr.mxu0 0.0
  %1704 = vmatpush1.msra.mxu0 0.0
  %1705 = vmatprep.subr.mxu0 0.0
  %1706 = vmatpush1.msra.mxu0 0.0
  %1707 = vmatprep.subr.mxu0 0.0
  %1708 = vmatpush1.msra.mxu0 0.0
  %1709 = vmatprep.subr.mxu0 0.0
  %1710 = vmatpush1.msra.mxu0 0.0
  %1711 = vmatprep.subr.mxu0 0.0
  %1712 = vmatpush1.msra.mxu0 0.0
  %1713 = vmatprep.subr.mxu0 0.0
  %1714 = vmatpush1.msra.mxu0 0.0
  %1715 = vmatprep.subr.mxu0 0.0
  %1716 = vmatpush1.msra.mxu0 0.0
  %1717 = vmatprep.subr.mxu0 0.0
  %1718 = vmatpush1.msra.mxu0 0.0
  %1719 = vmatprep.subr.mxu0 0.0
  %1720 = vmatpush1.msra.mxu0 0.0
  %1721 = vmatprep.subr.mxu0 0.0
  %1722 = vmatpush1.msra.mxu0 0.0
  %1723 = vmatprep.subr.mxu0 0.0
  %1724 = vmatpush1.msra.mxu0 0.0
  %1725 = vmatprep.subr.mxu0 0.0
  %1726 = vmatpush1.msra.mxu0 0.0
  %1727 = vmatprep.subr.mxu0 0.0
  %1728 = vmatpush1.msra.mxu0 0.0
  %1729 = vmatprep.subr.mxu0 0.0
  %1730 = vmatpush1.msra.mxu0 0.0
  %1731 = vmatprep.subr.mxu0 0.0
  %1732 = vmatpush1.msra.mxu0 0.0
  %1733 = vmatprep.subr.mxu0 0.0
  %1734 = vmatpush1.msra.mxu0 0.0
  %1735 = vmatprep.subr.mxu0 0.0
  %1736 = vmatpush1.msra.mxu0 0.0
  %1737 = vmatprep.subr.mxu0 0.0
  %1738 = vmatpush1.msra.mxu0 0.0
  %1739 = vmatprep.mubr.f32.mxu0 0.0
  %1740 = vmatmul.mubr.f32.gmra.mrb[0].mxu0 %v1652
  %v1741 = vpop.f32.mrb[0].mxu0
  %v1742 = vadd.f32 %v1649, %v1741
  %v1743 = vpop.f32.mrb[0].mxu0
  %1744 = vmatprep.mubr.f32.mxu0 0.0
  %1745 = vmatmul.mubr.f32.gmra.mrb[0].mxu0 %v1655
  %v1746 = vpop.f32.mrb[0].mxu0
  %v1747 = vadd.f32 %v1649, %v1746
  %v1748 = vpop.f32.mrb[0].mxu0
  %1749 = vmatprep.mubr.f32.mxu0 0.0
  %1750 = vmatmul.mubr.f32.gmra.mrb[0].mxu0 %v1658
  %v1751 = vpop.f32.mrb[0].mxu0
  %v1752 = vadd.f32 %v1649, %v1751
  %v1753 = vpop.f32.mrb[0].mxu0
  %1754 = vmatprep.mubr.f32.mxu0 0.0
  %1755 = vmatmul.mubr.f32.gmra.mrb[0].mxu0 %v1661
  %v1756 = vpop.f32.mrb[0].mxu0
  %v1757 = vadd.f32 %v1649, %v1756
  %v1758 = vpop.f32.mrb[0].mxu0
  %1759 = vmatprep.mubr.f32.mxu0 0.0
  %1760 = vmatmul.mubr.f32.gmra.mrb[0].mxu0 %v1664
  %v1761 = vpop.f32.mrb[0].mxu0
  %v1762 = vadd.f32 %v1649, %v1761
  %v1763 = vpop.f32.mrb[0].mxu0
  %1764 = vmatprep.mubr.f32.mxu0 0.0
  %1765 = vmatmul.mubr.f32.gmra.mrb[0].mxu0 %v1667
  %v1766 = vpop.f32.mrb[0].mxu0
  %v1767 = vadd.f32 %v1649, %v1766
  %v1768 = vpop.f32.mrb[0].mxu0
  %1769 = vmatprep.mubr.f32.mxu0 0.0
  %1770 = vmatmul.mubr.f32.gmra.mrb[0].mxu0 %v1670
  %v1771 = vpop.f32.mrb[0].mxu0
  %v1772 = vadd.f32 %v1649, %v1771
  %v1773 = vpop.f32.mrb[0].mxu0
  %1774 = vmatprep.mubr.f32.mxu0 0.0
  %1775 = vmatmul.mubr.f32.gmra.mrb[0].mxu0 %v1673
  %v1776 = vpop.f32.mrb[0].mxu0
  %v1777 = vadd.f32 %v1649, %v1776
  %v1778 = vpop.f32.mrb[0].mxu0
  %1779 = vdwg.mxu0
  %v1780 = vld [vmem:[%s9] sm:$0xff]
  %v1781 = vld [vmem:[%s9 + $0x8] sm:$0xff]
  %v1782 = vld [vmem:[%s9 + $0x10] sm:$0xff]
  %v1783 = vld [vmem:[%s9 + $0x18] sm:$0xff]
  %v1784 = vld [vmem:[%s10] sm:$0x1]
  %v1786 = vlaneseq
  %v1787 = vshrl.u32 %v1786, 7
  %v1788 = vsub.s32 0, %v1787
  %v1789 = vrot.slane %v1784, %v1788
  %1791 = vmatprep.subr.mxu0 0.0
  %1792 = vmatpush1.msra.mxu0 %v1780
  %1793 = vmatprep.subr.mxu0 0.0
  %1794 = vmatpush1.msra.mxu0 %v1781
  %1795 = vmatprep.subr.mxu0 0.0
  %1796 = vmatpush1.msra.mxu0 %v1782
  %1797 = vmatprep.subr.mxu0 0.0
  %1798 = vmatpush1.msra.mxu0 %v1783
  %1799 = vmatprep.subr.mxu0 0.0
  %1800 = vmatpush1.msra.mxu0 0.0
  %1801 = vmatprep.subr.mxu0 0.0
  %1802 = vmatpush1.msra.mxu0 0.0
  %1803 = vmatprep.subr.mxu0 0.0
  %1804 = vmatpush1.msra.mxu0 0.0
  %1805 = vmatprep.subr.mxu0 0.0
  %1806 = vmatpush1.msra.mxu0 0.0
  %1807 = vmatprep.subr.mxu0 0.0
  %1808 = vmatpush1.msra.mxu0 0.0
  %1809 = vmatprep.subr.mxu0 0.0
  %1810 = vmatpush1.msra.mxu0 0.0
  %1811 = vmatprep.subr.mxu0 0.0
  %1812 = vmatpush1.msra.mxu0 0.0
  %1813 = vmatprep.subr.mxu0 0.0
  %1814 = vmatpush1.msra.mxu0 0.0
  %1815 = vmatprep.subr.mxu0 0.0
  %1816 = vmatpush1.msra.mxu0 0.0
  %1817 = vmatprep.subr.mxu0 0.0
  %1818 = vmatpush1.msra.mxu0 0.0
  %1819 = vmatprep.subr.mxu0 0.0
  %1820 = vmatpush1.msra.mxu0 0.0
  %1821 = vmatprep.subr.mxu0 0.0
  %1822 = vmatpush1.msra.mxu0 0.0
  %1823 = vmatprep.subr.mxu0 0.0
  %1824 = vmatpush1.msra.mxu0 0.0
  %1825 = vmatprep.subr.mxu0 0.0
  %1826 = vmatpush1.msra.mxu0 0.0
  %1827 = vmatprep.subr.mxu0 0.0
  %1828 = vmatpush1.msra.mxu0 0.0
  %1829 = vmatprep.subr.mxu0 0.0
  %1830 = vmatpush1.msra.mxu0 0.0
  %1831 = vmatprep.subr.mxu0 0.0
  %1832 = vmatpush1.msra.mxu0 0.0
  %1833 = vmatprep.subr.mxu0 0.0
  %1834 = vmatpush1.msra.mxu0 0.0
  %1835 = vmatprep.subr.mxu0 0.0
  %1836 = vmatpush1.msra.mxu0 0.0
  %1837 = vmatprep.subr.mxu0 0.0
  %1838 = vmatpush1.msra.mxu0 0.0
  %1839 = vmatprep.subr.mxu0 0.0
  %1840 = vmatpush1.msra.mxu0 0.0
  %1841 = vmatprep.subr.mxu0 0.0
  %1842 = vmatpush1.msra.mxu0 0.0
  %1843 = vmatprep.subr.mxu0 0.0
  %1844 = vmatpush1.msra.mxu0 0.0
  %1845 = vmatprep.subr.mxu0 0.0
  %1846 = vmatpush1.msra.mxu0 0.0
  %1847 = vmatprep.subr.mxu0 0.0
  %1848 = vmatpush1.msra.mxu0 0.0
  %1849 = vmatprep.subr.mxu0 0.0
  %1850 = vmatpush1.msra.mxu0 0.0
  %1851 = vmatprep.subr.mxu0 0.0
  %1852 = vmatpush1.msra.mxu0 0.0
  %1853 = vmatprep.subr.mxu0 0.0
  %1854 = vmatpush1.msra.mxu0 0.0
  %1855 = vmatprep.mubr.f32.mxu0 0.0
  %1856 = vmatmul.mubr.f32.gmra.mrb[0].mxu0 %v1652
  %v1857 = vpop.f32.mrb[0].mxu0
  %v1858 = vadd.f32 %v1789, %v1857
  %v1859 = vpop.f32.mrb[0].mxu0
  %1860 = vmatprep.mubr.f32.mxu0 0.0
  %1861 = vmatmul.mubr.f32.gmra.mrb[0].mxu0 %v1655
  %v1862 = vpop.f32.mrb[0].mxu0
  %v1863 = vadd.f32 %v1789, %v1862
  %v1864 = vpop.f32.mrb[0].mxu0
  %1865 = vmatprep.mubr.f32.mxu0 0.0
  %1866 = vmatmul.mubr.f32.gmra.mrb[0].mxu0 %v1658
  %v1867 = vpop.f32.mrb[0].mxu0
  %v1868 = vadd.f32 %v1789, %v1867
  %v1869 = vpop.f32.mrb[0].mxu0
  %1870 = vmatprep.mubr.f32.mxu0 0.0
  %1871 = vmatmul.mubr.f32.gmra.mrb[0].mxu0 %v1661
  %v1872 = vpop.f32.mrb[0].mxu0
  %v1873 = vadd.f32 %v1789, %v1872
  %v1874 = vpop.f32.mrb[0].mxu0
  %1875 = vmatprep.mubr.f32.mxu0 0.0
  %1876 = vmatmul.mubr.f32.gmra.mrb[0].mxu0 %v1664
  %v1877 = vpop.f32.mrb[0].mxu0
  %v1878 = vadd.f32 %v1789, %v1877
  %v1879 = vpop.f32.mrb[0].mxu0
  %1880 = vmatprep.mubr.f32.mxu0 0.0
  %1881 = vmatmul.mubr.f32.gmra.mrb[0].mxu0 %v1667
  %v1882 = vpop.f32.mrb[0].mxu0
  %v1883 = vadd.f32 %v1789, %v1882
  %v1884 = vpop.f32.mrb[0].mxu0
  %1885 = vmatprep.mubr.f32.mxu0 0.0
  %1886 = vmatmul.mubr.f32.gmra.mrb[0].mxu0 %v1670
  %v1887 = vpop.f32.mrb[0].mxu0
  %v1888 = vadd.f32 %v1789, %v1887
  %v1889 = vpop.f32.mrb[0].mxu0
  %1890 = vmatprep.mubr.f32.mxu0 0.0
  %1891 = vmatmul.mubr.f32.gmra.mrb[0].mxu0 %v1673
  %v1892 = vpop.f32.mrb[0].mxu0
  %v1893 = vadd.f32 %v1789, %v1892
  %v1894 = vpop.f32.mrb[0].mxu0
  %1895 = vdwg.mxu0
  %v1896 = vmax.f32 %v1858, 0.0
  %v1897 = vmax.f32 %v1863, 0.0
  %v1898 = vmax.f32 %v1868, 0.0
  %v1899 = vmax.f32 %v1873, 0.0
  %v1900 = vmax.f32 %v1878, 0.0
  %v1901 = vmax.f32 %v1883, 0.0
  %v1902 = vmax.f32 %v1888, 0.0
  %v1903 = vmax.f32 %v1893, 0.0
  %v1904 = vand.u32 2147483647, %v1858
  %v1905 = vand.u32 2147483647, %v1863
  %v1906 = vand.u32 2147483647, %v1868
  %v1907 = vand.u32 2147483647, %v1873
  %v1908 = vand.u32 2147483647, %v1878
  %v1909 = vand.u32 2147483647, %v1883
  %v1910 = vand.u32 2147483647, %v1888
  %v1911 = vand.u32 2147483647, %v1893
  %v1912 = vsub.f32 0.0, %v1904
  %v1913 = vsub.f32 0.0, %v1905
  %v1914 = vsub.f32 0.0, %v1906
  %v1915 = vsub.f32 0.0, %v1907
  %v1916 = vsub.f32 0.0, %v1908
  %v1917 = vsub.f32 0.0, %v1909
  %v1918 = vsub.f32 0.0, %v1910
  %v1919 = vsub.f32 0.0, %v1911
  %v1920 = vmul.f32 %v1912, 1.442695
  %v1921 = vpow.pop %v1920
  %v1922 = vmul.f32 %v1913, 1.442695
  %v1923 = vpow.pop %v1922
  %v1924 = vmul.f32 %v1914, 1.442695
  %v1925 = vpow.pop %v1924
  %v1926 = vmul.f32 %v1915, 1.442695
  %v1927 = vpow.pop %v1926
  %v1928 = vmul.f32 %v1916, 1.442695
  %v1929 = vpow.pop %v1928
  %v1930 = vmul.f32 %v1917, 1.442695
  %v1931 = vpow.pop %v1930
  %v1932 = vmul.f32 %v1918, 1.442695
  %v1933 = vpow.pop %v1932
  %v1934 = vmul.f32 %v1919, 1.442695
  %v1935 = vpow.pop %v1934
  %v1936 = vadd.f32 %v1921, 1.0
  %v1937 = vadd.f32 %v1923, 1.0
  %v1938 = vadd.f32 %v1925, 1.0
  %v1939 = vadd.f32 %v1927, 1.0
  %v1940 = vadd.f32 %v1929, 1.0
  %v1941 = vadd.f32 %v1931, 1.0
  %v1942 = vadd.f32 %v1933, 1.0
  %v1943 = vadd.f32 %v1935, 1.0
  %v1944 = vlog2.pop %v1936
  %v1945 = vmul.f32 %v1944, 0.6931472
  %v1946 = vlog2.pop %v1937
  %v1947 = vmul.f32 %v1946, 0.6931472
  %v1948 = vlog2.pop %v1938
  %v1949 = vmul.f32 %v1948, 0.6931472
  %v1950 = vlog2.pop %v1939
  %v1951 = vmul.f32 %v1950, 0.6931472
  %v1952 = vlog2.pop %v1940
  %v1953 = vmul.f32 %v1952, 0.6931472
  %v1954 = vlog2.pop %v1941
  %v1955 = vmul.f32 %v1954, 0.6931472
  %v1956 = vlog2.pop %v1942
  %v1957 = vmul.f32 %v1956, 0.6931472
  %v1958 = vlog2.pop %v1943
  %v1959 = vmul.f32 %v1958, 0.6931472
  %v1960 = vadd.f32 %v1896, %v1945
  %v1961 = vadd.f32 %v1897, %v1947
  %v1962 = vadd.f32 %v1898, %v1949
  %v1963 = vadd.f32 %v1899, %v1951
  %v1964 = vadd.f32 %v1900, %v1953
  %v1965 = vadd.f32 %v1901, %v1955
  %v1966 = vadd.f32 %v1902, %v1957
  %v1967 = vadd.f32 %v1903, %v1959
  %v1968 = vld [vmem:[%s11] sm:$0xf]
  %v1969 = vld [vmem:[%s12] sm:$0x1]
  %v1971 = vlaneseq
  %v1972 = vshrl.u32 %v1971, 7
  %v1973 = vsub.s32 0, %v1972
  %v1974 = vrot.slane %v1969, %v1973
  %v1977 = vsel %vm71, %v1742, 0
  %v1980 = vsel %vm71, %v1747, 0
  %v1983 = vsel %vm71, %v1752, 0
  %v1986 = vsel %vm71, %v1757, 0
  %v1989 = vsel %vm71, %v1762, 0
  %v1992 = vsel %vm71, %v1767, 0
  %v1995 = vsel %vm71, %v1772, 0
  %v1998 = vsel %vm71, %v1777, 0
  %v2001 = vsel %vm75, %v1968, 0
  %2003 = vmatprep.subr.mxu0 0.0
  %2004 = vmatpush1.msra.mxu0 %v2001
  %2005 = vmatprep.subr.mxu0 0.0
  %2006 = vmatpush1.msra.mxu0 0.0
  %2007 = vmatprep.subr.mxu0 0.0
  %2008 = vmatpush1.msra.mxu0 0.0
  %2009 = vmatprep.subr.mxu0 0.0
  %2010 = vmatpush1.msra.mxu0 0.0
  %2011 = vmatprep.subr.mxu0 0.0
  %2012 = vmatpush1.msra.mxu0 0.0
  %2013 = vmatprep.subr.mxu0 0.0
  %2014 = vmatpush1.msra.mxu0 0.0
  %2015 = vmatprep.subr.mxu0 0.0
  %2016 = vmatpush1.msra.mxu0 0.0
  %2017 = vmatprep.subr.mxu0 0.0
  %2018 = vmatpush1.msra.mxu0 0.0
  %2019 = vmatprep.subr.mxu0 0.0
  %2020 = vmatpush1.msra.mxu0 0.0
  %2021 = vmatprep.subr.mxu0 0.0
  %2022 = vmatpush1.msra.mxu0 0.0
  %2023 = vmatprep.subr.mxu0 0.0
  %2024 = vmatpush1.msra.mxu0 0.0
  %2025 = vmatprep.subr.mxu0 0.0
  %2026 = vmatpush1.msra.mxu0 0.0
  %2027 = vmatprep.subr.mxu0 0.0
  %2028 = vmatpush1.msra.mxu0 0.0
  %2029 = vmatprep.subr.mxu0 0.0
  %2030 = vmatpush1.msra.mxu0 0.0
  %2031 = vmatprep.subr.mxu0 0.0
  %2032 = vmatpush1.msra.mxu0 0.0
  %2033 = vmatprep.subr.mxu0 0.0
  %2034 = vmatpush1.msra.mxu0 0.0
  %2035 = vmatprep.subr.mxu0 0.0
  %2036 = vmatpush1.msra.mxu0 0.0
  %2037 = vmatprep.subr.mxu0 0.0
  %2038 = vmatpush1.msra.mxu0 0.0
  %2039 = vmatprep.subr.mxu0 0.0
  %2040 = vmatpush1.msra.mxu0 0.0
  %2041 = vmatprep.subr.mxu0 0.0
  %2042 = vmatpush1.msra.mxu0 0.0
  %2043 = vmatprep.subr.mxu0 0.0
  %2044 = vmatpush1.msra.mxu0 0.0
  %2045 = vmatprep.subr.mxu0 0.0
  %2046 = vmatpush1.msra.mxu0 0.0
  %2047 = vmatprep.subr.mxu0 0.0
  %2048 = vmatpush1.msra.mxu0 0.0
  %2049 = vmatprep.subr.mxu0 0.0
  %2050 = vmatpush1.msra.mxu0 0.0
  %2051 = vmatprep.subr.mxu0 0.0
  %2052 = vmatpush1.msra.mxu0 0.0
  %2053 = vmatprep.subr.mxu0 0.0
  %2054 = vmatpush1.msra.mxu0 0.0
  %2055 = vmatprep.subr.mxu0 0.0
  %2056 = vmatpush1.msra.mxu0 0.0
  %2057 = vmatprep.subr.mxu0 0.0
  %2058 = vmatpush1.msra.mxu0 0.0
  %2059 = vmatprep.subr.mxu0 0.0
  %2060 = vmatpush1.msra.mxu0 0.0
  %2061 = vmatprep.subr.mxu0 0.0
  %2062 = vmatpush1.msra.mxu0 0.0
  %2063 = vmatprep.subr.mxu0 0.0
  %2064 = vmatpush1.msra.mxu0 0.0
  %2065 = vmatprep.subr.mxu0 0.0
  %2066 = vmatpush1.msra.mxu0 0.0
  %2067 = vmatprep.mubr.f32.mxu0 0.0
  %2068 = vmatmul.mubr.f32.gmra.mrb[0].mxu0 %v1977
  %v2069 = vpop.f32.mrb[0].mxu0
  %v2070 = vadd.f32 %v1974, %v2069
  %v2071 = vpop.f32.mrb[0].mxu0
  %2072 = vmatprep.mubr.f32.mxu0 0.0
  %2073 = vmatmul.mubr.f32.gmra.mrb[0].mxu0 %v1980
  %v2074 = vpop.f32.mrb[0].mxu0
  %v2075 = vadd.f32 %v1974, %v2074
  %v2076 = vpop.f32.mrb[0].mxu0
  %2077 = vmatprep.mubr.f32.mxu0 0.0
  %2078 = vmatmul.mubr.f32.gmra.mrb[0].mxu0 %v1983
  %v2079 = vpop.f32.mrb[0].mxu0
  %v2080 = vadd.f32 %v1974, %v2079
  %v2081 = vpop.f32.mrb[0].mxu0
  %2082 = vmatprep.mubr.f32.mxu0 0.0
  %2083 = vmatmul.mubr.f32.gmra.mrb[0].mxu0 %v1986
  %v2084 = vpop.f32.mrb[0].mxu0
  %v2085 = vadd.f32 %v1974, %v2084
  %v2086 = vpop.f32.mrb[0].mxu0
  %2087 = vmatprep.mubr.f32.mxu0 0.0
  %2088 = vmatmul.mubr.f32.gmra.mrb[0].mxu0 %v1989
  %v2089 = vpop.f32.mrb[0].mxu0
  %v2090 = vadd.f32 %v1974, %v2089
  %v2091 = vpop.f32.mrb[0].mxu0
  %2092 = vmatprep.mubr.f32.mxu0 0.0
  %2093 = vmatmul.mubr.f32.gmra.mrb[0].mxu0 %v1992
  %v2094 = vpop.f32.mrb[0].mxu0
  %v2095 = vadd.f32 %v1974, %v2094
  %v2096 = vpop.f32.mrb[0].mxu0
  %2097 = vmatprep.mubr.f32.mxu0 0.0
  %2098 = vmatmul.mubr.f32.gmra.mrb[0].mxu0 %v1995
  %v2099 = vpop.f32.mrb[0].mxu0
  %v2100 = vadd.f32 %v1974, %v2099
  %v2101 = vpop.f32.mrb[0].mxu0
  %2102 = vmatprep.mubr.f32.mxu0 0.0
  %2103 = vmatmul.mubr.f32.gmra.mrb[0].mxu0 %v1998
  %v2104 = vpop.f32.mrb[0].mxu0
  %v2105 = vadd.f32 %v1974, %v2104
  %v2106 = vpop.f32.mrb[0].mxu0
  %2107 = vdwg.mxu0
  %v2108 = vsub.f32 %v50, %v2070
  %v2109 = vsub.f32 %v51, %v2075
  %v2110 = vsub.f32 %v52, %v2080
  %v2111 = vsub.f32 %v53, %v2085
  %v2112 = vsub.f32 %v54, %v2090
  %v2113 = vsub.f32 %v55, %v2095
  %v2114 = vsub.f32 %v56, %v2100
  %v2115 = vsub.f32 %v57, %v2105
  %v2116 = vld [vmem:[%s13] sm:$0xf]
  %v2117 = vld [vmem:[%s14] sm:$0xff]
  %v2118 = vld [vmem:[%s14 + $0x8] sm:$0xff]
  %v2119 = vld [vmem:[%s14 + $0x10] sm:$0xff]
  %v2120 = vld [vmem:[%s14 + $0x18] sm:$0xff]
  %v2121 = vld [vmem:[%s14 + $0x20] sm:$0xff]
  %v2122 = vld [vmem:[%s14 + $0x28] sm:$0xff]
  %v2123 = vld [vmem:[%s14 + $0x30] sm:$0xff]
  %v2124 = vld [vmem:[%s14 + $0x38] sm:$0xff]
  %v2126 = vsel %vm71, %v1960, 0
  %v2129 = vsel %vm71, %v1961, 0
  %v2132 = vsel %vm71, %v1962, 0
  %v2135 = vsel %vm71, %v1963, 0
  %v2138 = vsel %vm71, %v1964, 0
  %v2141 = vsel %vm71, %v1965, 0
  %v2144 = vsel %vm71, %v1966, 0
  %v2147 = vsel %vm71, %v1967, 0
  %v2150 = vsel %vm75, %v2116, 0
  %2152 = vmatprep.subr.mxu0 0.0
  %2153 = vmatpush1.msra.mxu0 %v2150
  %2154 = vmatprep.subr.mxu0 0.0
  %2155 = vmatpush1.msra.mxu0 0.0
  %2156 = vmatprep.subr.mxu0 0.0
  %2157 = vmatpush1.msra.mxu0 0.0
  %2158 = vmatprep.subr.mxu0 0.0
  %2159 = vmatpush1.msra.mxu0 0.0
  %2160 = vmatprep.subr.mxu0 0.0
  %2161 = vmatpush1.msra.mxu0 0.0
  %2162 = vmatprep.subr.mxu0 0.0
  %2163 = vmatpush1.msra.mxu0 0.0
  %2164 = vmatprep.subr.mxu0 0.0
  %2165 = vmatpush1.msra.mxu0 0.0
  %2166 = vmatprep.subr.mxu0 0.0
  %2167 = vmatpush1.msra.mxu0 0.0
  %2168 = vmatprep.subr.mxu0 0.0
  %2169 = vmatpush1.msra.mxu0 0.0
  %2170 = vmatprep.subr.mxu0 0.0
  %2171 = vmatpush1.msra.mxu0 0.0
  %2172 = vmatprep.subr.mxu0 0.0
  %2173 = vmatpush1.msra.mxu0 0.0
  %2174 = vmatprep.subr.mxu0 0.0
  %2175 = vmatpush1.msra.mxu0 0.0
  %2176 = vmatprep.subr.mxu0 0.0
  %2177 = vmatpush1.msra.mxu0 0.0
  %2178 = vmatprep.subr.mxu0 0.0
  %2179 = vmatpush1.msra.mxu0 0.0
  %2180 = vmatprep.subr.mxu0 0.0
  %2181 = vmatpush1.msra.mxu0 0.0
  %2182 = vmatprep.subr.mxu0 0.0
  %2183 = vmatpush1.msra.mxu0 0.0
  %2184 = vmatprep.subr.mxu0 0.0
  %2185 = vmatpush1.msra.mxu0 0.0
  %2186 = vmatprep.subr.mxu0 0.0
  %2187 = vmatpush1.msra.mxu0 0.0
  %2188 = vmatprep.subr.mxu0 0.0
  %2189 = vmatpush1.msra.mxu0 0.0
  %2190 = vmatprep.subr.mxu0 0.0
  %2191 = vmatpush1.msra.mxu0 0.0
  %2192 = vmatprep.subr.mxu0 0.0
  %2193 = vmatpush1.msra.mxu0 0.0
  %2194 = vmatprep.subr.mxu0 0.0
  %2195 = vmatpush1.msra.mxu0 0.0
  %2196 = vmatprep.subr.mxu0 0.0
  %2197 = vmatpush1.msra.mxu0 0.0
  %2198 = vmatprep.subr.mxu0 0.0
  %2199 = vmatpush1.msra.mxu0 0.0
  %2200 = vmatprep.subr.mxu0 0.0
  %2201 = vmatpush1.msra.mxu0 0.0
  %2202 = vmatprep.subr.mxu0 0.0
  %2203 = vmatpush1.msra.mxu0 0.0
  %2204 = vmatprep.subr.mxu0 0.0
  %2205 = vmatpush1.msra.mxu0 0.0
  %2206 = vmatprep.subr.mxu0 0.0
  %2207 = vmatpush1.msra.mxu0 0.0
  %2208 = vmatprep.subr.mxu0 0.0
  %2209 = vmatpush1.msra.mxu0 0.0
  %2210 = vmatprep.subr.mxu0 0.0
  %2211 = vmatpush1.msra.mxu0 0.0
  %2212 = vmatprep.subr.mxu0 0.0
  %2213 = vmatpush1.msra.mxu0 0.0
  %2214 = vmatprep.subr.mxu0 0.0
  %2215 = vmatpush1.msra.mxu0 0.0
  %2216 = vmatprep.mubr.f32.mxu0 0.0
  %2217 = vmatmul.mubr.f32.gmra.mrb[0].mxu0 %v2126
  %v2218 = vpop.f32.mrb[0].mxu0
  %v2219 = vadd.f32 %v2117, %v2218
  %v2220 = vpop.f32.mrb[0].mxu0
  %2221 = vmatprep.mubr.f32.mxu0 0.0
  %2222 = vmatmul.mubr.f32.gmra.mrb[0].mxu0 %v2129
  %v2223 = vpop.f32.mrb[0].mxu0
  %v2224 = vadd.f32 %v2118, %v2223
  %v2225 = vpop.f32.mrb[0].mxu0
  %2226 = vmatprep.mubr.f32.mxu0 0.0
  %2227 = vmatmul.mubr.f32.gmra.mrb[0].mxu0 %v2132
  %v2228 = vpop.f32.mrb[0].mxu0
  %v2229 = vadd.f32 %v2119, %v2228
  %v2230 = vpop.f32.mrb[0].mxu0
  %2231 = vmatprep.mubr.f32.mxu0 0.0
  %2232 = vmatmul.mubr.f32.gmra.mrb[0].mxu0 %v2135
  %v2233 = vpop.f32.mrb[0].mxu0
  %v2234 = vadd.f32 %v2120, %v2233
  %v2235 = vpop.f32.mrb[0].mxu0
  %2236 = vmatprep.mubr.f32.mxu0 0.0
  %2237 = vmatmul.mubr.f32.gmra.mrb[0].mxu0 %v2138
  %v2238 = vpop.f32.mrb[0].mxu0
  %v2239 = vadd.f32 %v2121, %v2238
  %v2240 = vpop.f32.mrb[0].mxu0
  %2241 = vmatprep.mubr.f32.mxu0 0.0
  %2242 = vmatmul.mubr.f32.gmra.mrb[0].mxu0 %v2141
  %v2243 = vpop.f32.mrb[0].mxu0
  %v2244 = vadd.f32 %v2122, %v2243
  %v2245 = vpop.f32.mrb[0].mxu0
  %2246 = vmatprep.mubr.f32.mxu0 0.0
  %2247 = vmatmul.mubr.f32.gmra.mrb[0].mxu0 %v2144
  %v2248 = vpop.f32.mrb[0].mxu0
  %v2249 = vadd.f32 %v2123, %v2248
  %v2250 = vpop.f32.mrb[0].mxu0
  %2251 = vmatprep.mubr.f32.mxu0 0.0
  %2252 = vmatmul.mubr.f32.gmra.mrb[0].mxu0 %v2147
  %v2253 = vpop.f32.mrb[0].mxu0
  %v2254 = vadd.f32 %v2124, %v2253
  %v2255 = vpop.f32.mrb[0].mxu0
  %2256 = vdwg.mxu0
  %v2257 = vadd.f32 %v2219, 1e-06
  %v2258 = vadd.f32 %v2224, 1e-06
  %v2259 = vadd.f32 %v2229, 1e-06
  %v2260 = vadd.f32 %v2234, 1e-06
  %v2261 = vadd.f32 %v2239, 1e-06
  %v2262 = vadd.f32 %v2244, 1e-06
  %v2263 = vadd.f32 %v2249, 1e-06
  %v2264 = vadd.f32 %v2254, 1e-06
  %v2265 = vrsqrt.pop %v2257
  %v2266 = vmul.f32 %v2257, %v2265
  %vm2267 = vcmp.eq.f32.partialorder %v2257, inf
  %v2268 = vsel %vm2267, %v2257, %v2266
  %vm2269 = vcmp.eq.f32.partialorder %v2257, 0.0
  %v2270 = vand.u32 %v2257, 2147483648
  %v2271 = vsel %vm2269, %v2270, %v2268
  %v2272 = vrsqrt.pop %v2258
  %v2273 = vmul.f32 %v2258, %v2272
  %vm2274 = vcmp.eq.f32.partialorder %v2258, inf
  %v2275 = vsel %vm2274, %v2258, %v2273
  %vm2276 = vcmp.eq.f32.partialorder %v2258, 0.0
  %v2277 = vand.u32 %v2258, 2147483648
  %v2278 = vsel %vm2276, %v2277, %v2275
  %v2279 = vrsqrt.pop %v2259
  %v2280 = vmul.f32 %v2259, %v2279
  %vm2281 = vcmp.eq.f32.partialorder %v2259, inf
  %v2282 = vsel %vm2281, %v2259, %v2280
  %vm2283 = vcmp.eq.f32.partialorder %v2259, 0.0
  %v2284 = vand.u32 %v2259, 2147483648
  %v2285 = vsel %vm2283, %v2284, %v2282
  %v2286 = vrsqrt.pop %v2260
  %v2287 = vmul.f32 %v2260, %v2286
  %vm2288 = vcmp.eq.f32.partialorder %v2260, inf
  %v2289 = vsel %vm2288, %v2260, %v2287
  %vm2290 = vcmp.eq.f32.partialorder %v2260, 0.0
  %v2291 = vand.u32 %v2260, 2147483648
  %v2292 = vsel %vm2290, %v2291, %v2289
  %v2293 = vrsqrt.pop %v2261
  %v2294 = vmul.f32 %v2261, %v2293
  %vm2295 = vcmp.eq.f32.partialorder %v2261, inf
  %v2296 = vsel %vm2295, %v2261, %v2294
  %vm2297 = vcmp.eq.f32.partialorder %v2261, 0.0
  %v2298 = vand.u32 %v2261, 2147483648
  %v2299 = vsel %vm2297, %v2298, %v2296
  %v2300 = vrsqrt.pop %v2262
  %v2301 = vmul.f32 %v2262, %v2300
  %vm2302 = vcmp.eq.f32.partialorder %v2262, inf
  %v2303 = vsel %vm2302, %v2262, %v2301
  %vm2304 = vcmp.eq.f32.partialorder %v2262, 0.0
  %v2305 = vand.u32 %v2262, 2147483648
  %v2306 = vsel %vm2304, %v2305, %v2303
  %v2307 = vrsqrt.pop %v2263
  %v2308 = vmul.f32 %v2263, %v2307
  %vm2309 = vcmp.eq.f32.partialorder %v2263, inf
  %v2310 = vsel %vm2309, %v2263, %v2308
  %vm2311 = vcmp.eq.f32.partialorder %v2263, 0.0
  %v2312 = vand.u32 %v2263, 2147483648
  %v2313 = vsel %vm2311, %v2312, %v2310
  %v2314 = vrsqrt.pop %v2264
  %v2315 = vmul.f32 %v2264, %v2314
  %vm2316 = vcmp.eq.f32.partialorder %v2264, inf
  %v2317 = vsel %vm2316, %v2264, %v2315
  %vm2318 = vcmp.eq.f32.partialorder %v2264, 0.0
  %v2319 = vand.u32 %v2264, 2147483648
  %v2320 = vsel %vm2318, %v2319, %v2317
  %v2321 = vrcp.pop %v2271
  %v2322 = vmul.f32 1.0, %v2321
  %v2323 = vrcp.pop %v2278
  %v2324 = vmul.f32 1.0, %v2323
  %v2325 = vrcp.pop %v2285
  %v2326 = vmul.f32 1.0, %v2325
  %v2327 = vrcp.pop %v2292
  %v2328 = vmul.f32 1.0, %v2327
  %v2329 = vrcp.pop %v2299
  %v2330 = vmul.f32 1.0, %v2329
  %v2331 = vrcp.pop %v2306
  %v2332 = vmul.f32 1.0, %v2331
  %v2333 = vrcp.pop %v2313
  %v2334 = vmul.f32 1.0, %v2333
  %v2335 = vrcp.pop %v2320
  %v2336 = vmul.f32 1.0, %v2335
  %2345 = vrot.lane.b32.xlu0 %v2322, 4
  %v2346 = vpop.permute.xlu0 %2345
  %2347 = vrot.lane.b32.xlu0 %v2324, 4
  %v2348 = vpop.permute.xlu0 %2347
  %2349 = vrot.lane.b32.xlu0 %v2326, 4
  %v2350 = vpop.permute.xlu0 %2349
  %2351 = vrot.lane.b32.xlu0 %v2328, 4
  %v2352 = vpop.permute.xlu0 %2351
  %2353 = vrot.lane.b32.xlu0 %v2330, 4
  %v2354 = vpop.permute.xlu0 %2353
  %2355 = vrot.lane.b32.xlu0 %v2332, 4
  %v2356 = vpop.permute.xlu0 %2355
  %2357 = vrot.lane.b32.xlu0 %v2334, 4
  %v2358 = vpop.permute.xlu0 %2357
  %2359 = vrot.lane.b32.xlu0 %v2336, 4
  %v2360 = vpop.permute.xlu0 %2359
  %v2369 = vmul.f32 %v2219, %v2346
  %v2370 = vmul.f32 %v2224, %v2348
  %v2371 = vmul.f32 %v2229, %v2350
  %v2372 = vmul.f32 %v2234, %v2352
  %v2373 = vmul.f32 %v2239, %v2354
  %v2374 = vmul.f32 %v2244, %v2356
  %v2375 = vmul.f32 %v2249, %v2358
  %v2376 = vmul.f32 %v2254, %v2360
  %v2377 = vmul.f32 %v2369, %v2369
  %v2378 = vmul.f32 %v2370, %v2370
  %v2379 = vmul.f32 %v2371, %v2371
  %v2380 = vmul.f32 %v2372, %v2372
  %v2381 = vmul.f32 %v2373, %v2373
  %v2382 = vmul.f32 %v2374, %v2374
  %v2383 = vmul.f32 %v2375, %v2375
  %v2384 = vmul.f32 %v2376, %v2376
  %2393 = vrot.lane.b32.xlu0 %v2377, 1
  %v2394 = vpop.permute.xlu0 %2393
  %2395 = vrot.lane.b32.xlu0 %v2378, 1
  %v2396 = vpop.permute.xlu0 %2395
  %2397 = vrot.lane.b32.xlu0 %v2379, 1
  %v2398 = vpop.permute.xlu0 %2397
  %2399 = vrot.lane.b32.xlu0 %v2380, 1
  %v2400 = vpop.permute.xlu0 %2399
  %2401 = vrot.lane.b32.xlu0 %v2381, 1
  %v2402 = vpop.permute.xlu0 %2401
  %2403 = vrot.lane.b32.xlu0 %v2382, 1
  %v2404 = vpop.permute.xlu0 %2403
  %2405 = vrot.lane.b32.xlu0 %v2383, 1
  %v2406 = vpop.permute.xlu0 %2405
  %2407 = vrot.lane.b32.xlu0 %v2384, 1
  %v2408 = vpop.permute.xlu0 %2407
  %v2417 = vsub.f32 %v2219, %v2394
  %v2418 = vsub.f32 %v2224, %v2396
  %v2419 = vsub.f32 %v2229, %v2398
  %v2420 = vsub.f32 %v2234, %v2400
  %v2421 = vsub.f32 %v2239, %v2402
  %v2422 = vsub.f32 %v2244, %v2404
  %v2423 = vsub.f32 %v2249, %v2406
  %v2424 = vsub.f32 %v2254, %v2408
  %v2425 = vadd.f32 %v2417, 1e-06
  %v2426 = vadd.f32 %v2418, 1e-06
  %v2427 = vadd.f32 %v2419, 1e-06
  %v2428 = vadd.f32 %v2420, 1e-06
  %v2429 = vadd.f32 %v2421, 1e-06
  %v2430 = vadd.f32 %v2422, 1e-06
  %v2431 = vadd.f32 %v2423, 1e-06
  %v2432 = vadd.f32 %v2424, 1e-06
  %v2433 = vrsqrt.pop %v2425
  %v2434 = vmul.f32 %v2425, %v2433
  %vm2435 = vcmp.eq.f32.partialorder %v2425, inf
  %v2436 = vsel %vm2435, %v2425, %v2434
  %vm2437 = vcmp.eq.f32.partialorder %v2425, 0.0
  %v2438 = vand.u32 %v2425, 2147483648
  %v2439 = vsel %vm2437, %v2438, %v2436
  %v2440 = vrsqrt.pop %v2426
  %v2441 = vmul.f32 %v2426, %v2440
  %vm2442 = vcmp.eq.f32.partialorder %v2426, inf
  %v2443 = vsel %vm2442, %v2426, %v2441
  %vm2444 = vcmp.eq.f32.partialorder %v2426, 0.0
  %v2445 = vand.u32 %v2426, 2147483648
  %v2446 = vsel %vm2444, %v2445, %v2443
  %v2447 = vrsqrt.pop %v2427
  %v2448 = vmul.f32 %v2427, %v2447
  %vm2449 = vcmp.eq.f32.partialorder %v2427, inf
  %v2450 = vsel %vm2449, %v2427, %v2448
  %vm2451 = vcmp.eq.f32.partialorder %v2427, 0.0
  %v2452 = vand.u32 %v2427, 2147483648
  %v2453 = vsel %vm2451, %v2452, %v2450
  %v2454 = vrsqrt.pop %v2428
  %v2455 = vmul.f32 %v2428, %v2454
  %vm2456 = vcmp.eq.f32.partialorder %v2428, inf
  %v2457 = vsel %vm2456, %v2428, %v2455
  %vm2458 = vcmp.eq.f32.partialorder %v2428, 0.0
  %v2459 = vand.u32 %v2428, 2147483648
  %v2460 = vsel %vm2458, %v2459, %v2457
  %v2461 = vrsqrt.pop %v2429
  %v2462 = vmul.f32 %v2429, %v2461
  %vm2463 = vcmp.eq.f32.partialorder %v2429, inf
  %v2464 = vsel %vm2463, %v2429, %v2462
  %vm2465 = vcmp.eq.f32.partialorder %v2429, 0.0
  %v2466 = vand.u32 %v2429, 2147483648
  %v2467 = vsel %vm2465, %v2466, %v2464
  %v2468 = vrsqrt.pop %v2430
  %v2469 = vmul.f32 %v2430, %v2468
  %vm2470 = vcmp.eq.f32.partialorder %v2430, inf
  %v2471 = vsel %vm2470, %v2430, %v2469
  %vm2472 = vcmp.eq.f32.partialorder %v2430, 0.0
  %v2473 = vand.u32 %v2430, 2147483648
  %v2474 = vsel %vm2472, %v2473, %v2471
  %v2475 = vrsqrt.pop %v2431
  %v2476 = vmul.f32 %v2431, %v2475
  %vm2477 = vcmp.eq.f32.partialorder %v2431, inf
  %v2478 = vsel %vm2477, %v2431, %v2476
  %vm2479 = vcmp.eq.f32.partialorder %v2431, 0.0
  %v2480 = vand.u32 %v2431, 2147483648
  %v2481 = vsel %vm2479, %v2480, %v2478
  %v2482 = vrsqrt.pop %v2432
  %v2483 = vmul.f32 %v2432, %v2482
  %vm2484 = vcmp.eq.f32.partialorder %v2432, inf
  %v2485 = vsel %vm2484, %v2432, %v2483
  %vm2486 = vcmp.eq.f32.partialorder %v2432, 0.0
  %v2487 = vand.u32 %v2432, 2147483648
  %v2488 = vsel %vm2486, %v2487, %v2485
  %v2489 = vrcp.pop %v2439
  %v2490 = vmul.f32 1.0, %v2489
  %v2491 = vrcp.pop %v2446
  %v2492 = vmul.f32 1.0, %v2491
  %v2493 = vrcp.pop %v2453
  %v2494 = vmul.f32 1.0, %v2493
  %v2495 = vrcp.pop %v2460
  %v2496 = vmul.f32 1.0, %v2495
  %v2497 = vrcp.pop %v2467
  %v2498 = vmul.f32 1.0, %v2497
  %v2499 = vrcp.pop %v2474
  %v2500 = vmul.f32 1.0, %v2499
  %v2501 = vrcp.pop %v2481
  %v2502 = vmul.f32 1.0, %v2501
  %v2503 = vrcp.pop %v2488
  %v2504 = vmul.f32 1.0, %v2503
  %2505 = vrot.lane.b32.xlu0 %v2322, 8
  %v2506 = vpop.permute.xlu0 %2505
  %2507 = vrot.lane.b32.xlu0 %v2324, 8
  %v2508 = vpop.permute.xlu0 %2507
  %2509 = vrot.lane.b32.xlu0 %v2326, 8
  %v2510 = vpop.permute.xlu0 %2509
  %2511 = vrot.lane.b32.xlu0 %v2328, 8
  %v2512 = vpop.permute.xlu0 %2511
  %2513 = vrot.lane.b32.xlu0 %v2330, 8
  %v2514 = vpop.permute.xlu0 %2513
  %2515 = vrot.lane.b32.xlu0 %v2332, 8
  %v2516 = vpop.permute.xlu0 %2515
  %2517 = vrot.lane.b32.xlu0 %v2334, 8
  %v2518 = vpop.permute.xlu0 %2517
  %2519 = vrot.lane.b32.xlu0 %v2336, 8
  %v2520 = vpop.permute.xlu0 %2519
  %v2529 = vmul.f32 %v2219, %v2506
  %v2530 = vmul.f32 %v2224, %v2508
  %v2531 = vmul.f32 %v2229, %v2510
  %v2532 = vmul.f32 %v2234, %v2512
  %v2533 = vmul.f32 %v2239, %v2514
  %v2534 = vmul.f32 %v2244, %v2516
  %v2535 = vmul.f32 %v2249, %v2518
  %v2536 = vmul.f32 %v2254, %v2520
  %2545 = vrot.lane.b32.xlu0 %v2369, 4
  %v2546 = vpop.permute.xlu0 %2545
  %2547 = vrot.lane.b32.xlu0 %v2370, 4
  %v2548 = vpop.permute.xlu0 %2547
  %2549 = vrot.lane.b32.xlu0 %v2371, 4
  %v2550 = vpop.permute.xlu0 %2549
  %2551 = vrot.lane.b32.xlu0 %v2372, 4
  %v2552 = vpop.permute.xlu0 %2551
  %2553 = vrot.lane.b32.xlu0 %v2373, 4
  %v2554 = vpop.permute.xlu0 %2553
  %2555 = vrot.lane.b32.xlu0 %v2374, 4
  %v2556 = vpop.permute.xlu0 %2555
  %2557 = vrot.lane.b32.xlu0 %v2375, 4
  %v2558 = vpop.permute.xlu0 %2557
  %2559 = vrot.lane.b32.xlu0 %v2376, 4
  %v2560 = vpop.permute.xlu0 %2559
  %v2569 = vmul.f32 %v2529, %v2546
  %v2570 = vmul.f32 %v2530, %v2548
  %v2571 = vmul.f32 %v2531, %v2550
  %v2572 = vmul.f32 %v2532, %v2552
  %v2573 = vmul.f32 %v2533, %v2554
  %v2574 = vmul.f32 %v2534, %v2556
  %v2575 = vmul.f32 %v2535, %v2558
  %v2576 = vmul.f32 %v2536, %v2560
  %2585 = vrot.lane.b32.xlu0 %v2569, 1
  %v2586 = vpop.permute.xlu0 %2585
  %2587 = vrot.lane.b32.xlu0 %v2570, 1
  %v2588 = vpop.permute.xlu0 %2587
  %2589 = vrot.lane.b32.xlu0 %v2571, 1
  %v2590 = vpop.permute.xlu0 %2589
  %2591 = vrot.lane.b32.xlu0 %v2572, 1
  %v2592 = vpop.permute.xlu0 %2591
  %2593 = vrot.lane.b32.xlu0 %v2573, 1
  %v2594 = vpop.permute.xlu0 %2593
  %2595 = vrot.lane.b32.xlu0 %v2574, 1
  %v2596 = vpop.permute.xlu0 %2595
  %2597 = vrot.lane.b32.xlu0 %v2575, 1
  %v2598 = vpop.permute.xlu0 %2597
  %2599 = vrot.lane.b32.xlu0 %v2576, 1
  %v2600 = vpop.permute.xlu0 %2599
  %v2609 = vsub.f32 %v2219, %v2586
  %v2610 = vsub.f32 %v2224, %v2588
  %v2611 = vsub.f32 %v2229, %v2590
  %v2612 = vsub.f32 %v2234, %v2592
  %v2613 = vsub.f32 %v2239, %v2594
  %v2614 = vsub.f32 %v2244, %v2596
  %v2615 = vsub.f32 %v2249, %v2598
  %v2616 = vsub.f32 %v2254, %v2600
  %2625 = vrot.lane.b32.xlu0 %v2490, 4
  %v2626 = vpop.permute.xlu0 %2625
  %2627 = vrot.lane.b32.xlu0 %v2492, 4
  %v2628 = vpop.permute.xlu0 %2627
  %2629 = vrot.lane.b32.xlu0 %v2494, 4
  %v2630 = vpop.permute.xlu0 %2629
  %2631 = vrot.lane.b32.xlu0 %v2496, 4
  %v2632 = vpop.permute.xlu0 %2631
  %2633 = vrot.lane.b32.xlu0 %v2498, 4
  %v2634 = vpop.permute.xlu0 %2633
  %2635 = vrot.lane.b32.xlu0 %v2500, 4
  %v2636 = vpop.permute.xlu0 %2635
  %2637 = vrot.lane.b32.xlu0 %v2502, 4
  %v2638 = vpop.permute.xlu0 %2637
  %2639 = vrot.lane.b32.xlu0 %v2504, 4
  %v2640 = vpop.permute.xlu0 %2639
  %v2649 = vmul.f32 %v2609, %v2626
  %v2650 = vmul.f32 %v2610, %v2628
  %v2651 = vmul.f32 %v2611, %v2630
  %v2652 = vmul.f32 %v2612, %v2632
  %v2653 = vmul.f32 %v2613, %v2634
  %v2654 = vmul.f32 %v2614, %v2636
  %v2655 = vmul.f32 %v2615, %v2638
  %v2656 = vmul.f32 %v2616, %v2640
  %v2657 = vmul.f32 %v2529, %v2529
  %v2658 = vmul.f32 %v2530, %v2530
  %v2659 = vmul.f32 %v2531, %v2531
  %v2660 = vmul.f32 %v2532, %v2532
  %v2661 = vmul.f32 %v2533, %v2533
  %v2662 = vmul.f32 %v2534, %v2534
  %v2663 = vmul.f32 %v2535, %v2535
  %v2664 = vmul.f32 %v2536, %v2536
  %2673 = vrot.lane.b32.xlu0 %v2657, 2
  %v2674 = vpop.permute.xlu0 %2673
  %2675 = vrot.lane.b32.xlu0 %v2658, 2
  %v2676 = vpop.permute.xlu0 %2675
  %2677 = vrot.lane.b32.xlu0 %v2659, 2
  %v2678 = vpop.permute.xlu0 %2677
  %2679 = vrot.lane.b32.xlu0 %v2660, 2
  %v2680 = vpop.permute.xlu0 %2679
  %2681 = vrot.lane.b32.xlu0 %v2661, 2
  %v2682 = vpop.permute.xlu0 %2681
  %2683 = vrot.lane.b32.xlu0 %v2662, 2
  %v2684 = vpop.permute.xlu0 %2683
  %2685 = vrot.lane.b32.xlu0 %v2663, 2
  %v2686 = vpop.permute.xlu0 %2685
  %2687 = vrot.lane.b32.xlu0 %v2664, 2
  %v2688 = vpop.permute.xlu0 %2687
  %v2697 = vsub.f32 %v2219, %v2674
  %v2698 = vsub.f32 %v2224, %v2676
  %v2699 = vsub.f32 %v2229, %v2678
  %v2700 = vsub.f32 %v2234, %v2680
  %v2701 = vsub.f32 %v2239, %v2682
  %v2702 = vsub.f32 %v2244, %v2684
  %v2703 = vsub.f32 %v2249, %v2686
  %v2704 = vsub.f32 %v2254, %v2688
  %v2705 = vmul.f32 %v2649, %v2649
  %v2706 = vmul.f32 %v2650, %v2650
  %v2707 = vmul.f32 %v2651, %v2651
  %v2708 = vmul.f32 %v2652, %v2652
  %v2709 = vmul.f32 %v2653, %v2653
  %v2710 = vmul.f32 %v2654, %v2654
  %v2711 = vmul.f32 %v2655, %v2655
  %v2712 = vmul.f32 %v2656, %v2656
  %2721 = vrot.lane.b32.xlu0 %v2705, 1
  %v2722 = vpop.permute.xlu0 %2721
  %2723 = vrot.lane.b32.xlu0 %v2706, 1
  %v2724 = vpop.permute.xlu0 %2723
  %2725 = vrot.lane.b32.xlu0 %v2707, 1
  %v2726 = vpop.permute.xlu0 %2725
  %2727 = vrot.lane.b32.xlu0 %v2708, 1
  %v2728 = vpop.permute.xlu0 %2727
  %2729 = vrot.lane.b32.xlu0 %v2709, 1
  %v2730 = vpop.permute.xlu0 %2729
  %2731 = vrot.lane.b32.xlu0 %v2710, 1
  %v2732 = vpop.permute.xlu0 %2731
  %2733 = vrot.lane.b32.xlu0 %v2711, 1
  %v2734 = vpop.permute.xlu0 %2733
  %2735 = vrot.lane.b32.xlu0 %v2712, 1
  %v2736 = vpop.permute.xlu0 %2735
  %v2745 = vsub.f32 %v2697, %v2722
  %v2746 = vsub.f32 %v2698, %v2724
  %v2747 = vsub.f32 %v2699, %v2726
  %v2748 = vsub.f32 %v2700, %v2728
  %v2749 = vsub.f32 %v2701, %v2730
  %v2750 = vsub.f32 %v2702, %v2732
  %v2751 = vsub.f32 %v2703, %v2734
  %v2752 = vsub.f32 %v2704, %v2736
  %v2753 = vadd.f32 %v2745, 1e-06
  %v2754 = vadd.f32 %v2746, 1e-06
  %v2755 = vadd.f32 %v2747, 1e-06
  %v2756 = vadd.f32 %v2748, 1e-06
  %v2757 = vadd.f32 %v2749, 1e-06
  %v2758 = vadd.f32 %v2750, 1e-06
  %v2759 = vadd.f32 %v2751, 1e-06
  %v2760 = vadd.f32 %v2752, 1e-06
  %v2761 = vrsqrt.pop %v2753
  %v2762 = vmul.f32 %v2753, %v2761
  %vm2763 = vcmp.eq.f32.partialorder %v2753, inf
  %v2764 = vsel %vm2763, %v2753, %v2762
  %vm2765 = vcmp.eq.f32.partialorder %v2753, 0.0
  %v2766 = vand.u32 %v2753, 2147483648
  %v2767 = vsel %vm2765, %v2766, %v2764
  %v2768 = vrsqrt.pop %v2754
  %v2769 = vmul.f32 %v2754, %v2768
  %vm2770 = vcmp.eq.f32.partialorder %v2754, inf
  %v2771 = vsel %vm2770, %v2754, %v2769
  %vm2772 = vcmp.eq.f32.partialorder %v2754, 0.0
  %v2773 = vand.u32 %v2754, 2147483648
  %v2774 = vsel %vm2772, %v2773, %v2771
  %v2775 = vrsqrt.pop %v2755
  %v2776 = vmul.f32 %v2755, %v2775
  %vm2777 = vcmp.eq.f32.partialorder %v2755, inf
  %v2778 = vsel %vm2777, %v2755, %v2776
  %vm2779 = vcmp.eq.f32.partialorder %v2755, 0.0
  %v2780 = vand.u32 %v2755, 2147483648
  %v2781 = vsel %vm2779, %v2780, %v2778
  %v2782 = vrsqrt.pop %v2756
  %v2783 = vmul.f32 %v2756, %v2782
  %vm2784 = vcmp.eq.f32.partialorder %v2756, inf
  %v2785 = vsel %vm2784, %v2756, %v2783
  %vm2786 = vcmp.eq.f32.partialorder %v2756, 0.0
  %v2787 = vand.u32 %v2756, 2147483648
  %v2788 = vsel %vm2786, %v2787, %v2785
  %v2789 = vrsqrt.pop %v2757
  %v2790 = vmul.f32 %v2757, %v2789
  %vm2791 = vcmp.eq.f32.partialorder %v2757, inf
  %v2792 = vsel %vm2791, %v2757, %v2790
  %vm2793 = vcmp.eq.f32.partialorder %v2757, 0.0
  %v2794 = vand.u32 %v2757, 2147483648
  %v2795 = vsel %vm2793, %v2794, %v2792
  %v2796 = vrsqrt.pop %v2758
  %v2797 = vmul.f32 %v2758, %v2796
  %vm2798 = vcmp.eq.f32.partialorder %v2758, inf
  %v2799 = vsel %vm2798, %v2758, %v2797
  %vm2800 = vcmp.eq.f32.partialorder %v2758, 0.0
  %v2801 = vand.u32 %v2758, 2147483648
  %v2802 = vsel %vm2800, %v2801, %v2799
  %v2803 = vrsqrt.pop %v2759
  %v2804 = vmul.f32 %v2759, %v2803
  %vm2805 = vcmp.eq.f32.partialorder %v2759, inf
  %v2806 = vsel %vm2805, %v2759, %v2804
  %vm2807 = vcmp.eq.f32.partialorder %v2759, 0.0
  %v2808 = vand.u32 %v2759, 2147483648
  %v2809 = vsel %vm2807, %v2808, %v2806
  %v2810 = vrsqrt.pop %v2760
  %v2811 = vmul.f32 %v2760, %v2810
  %vm2812 = vcmp.eq.f32.partialorder %v2760, inf
  %v2813 = vsel %vm2812, %v2760, %v2811
  %vm2814 = vcmp.eq.f32.partialorder %v2760, 0.0
  %v2815 = vand.u32 %v2760, 2147483648
  %v2816 = vsel %vm2814, %v2815, %v2813
  %v2817 = vrcp.pop %v2767
  %v2818 = vmul.f32 1.0, %v2817
  %v2819 = vrcp.pop %v2774
  %v2820 = vmul.f32 1.0, %v2819
  %v2821 = vrcp.pop %v2781
  %v2822 = vmul.f32 1.0, %v2821
  %v2823 = vrcp.pop %v2788
  %v2824 = vmul.f32 1.0, %v2823
  %v2825 = vrcp.pop %v2795
  %v2826 = vmul.f32 1.0, %v2825
  %v2827 = vrcp.pop %v2802
  %v2828 = vmul.f32 1.0, %v2827
  %v2829 = vrcp.pop %v2809
  %v2830 = vmul.f32 1.0, %v2829
  %v2831 = vrcp.pop %v2816
  %v2832 = vmul.f32 1.0, %v2831
  %2833 = vrot.lane.b32.xlu0 %v2322, 12
  %v2834 = vpop.permute.xlu0 %2833
  %2835 = vrot.lane.b32.xlu0 %v2324, 12
  %v2836 = vpop.permute.xlu0 %2835
  %2837 = vrot.lane.b32.xlu0 %v2326, 12
  %v2838 = vpop.permute.xlu0 %2837
  %2839 = vrot.lane.b32.xlu0 %v2328, 12
  %v2840 = vpop.permute.xlu0 %2839
  %2841 = vrot.lane.b32.xlu0 %v2330, 12
  %v2842 = vpop.permute.xlu0 %2841
  %2843 = vrot.lane.b32.xlu0 %v2332, 12
  %v2844 = vpop.permute.xlu0 %2843
  %2845 = vrot.lane.b32.xlu0 %v2334, 12
  %v2846 = vpop.permute.xlu0 %2845
  %2847 = vrot.lane.b32.xlu0 %v2336, 12
  %v2848 = vpop.permute.xlu0 %2847
  %v2857 = vmul.f32 %v2219, %v2834
  %v2858 = vmul.f32 %v2224, %v2836
  %v2859 = vmul.f32 %v2229, %v2838
  %v2860 = vmul.f32 %v2234, %v2840
  %v2861 = vmul.f32 %v2239, %v2842
  %v2862 = vmul.f32 %v2244, %v2844
  %v2863 = vmul.f32 %v2249, %v2846
  %v2864 = vmul.f32 %v2254, %v2848
  %2865 = vrot.lane.b32.xlu0 %v2369, 8
  %v2866 = vpop.permute.xlu0 %2865
  %2867 = vrot.lane.b32.xlu0 %v2370, 8
  %v2868 = vpop.permute.xlu0 %2867
  %2869 = vrot.lane.b32.xlu0 %v2371, 8
  %v2870 = vpop.permute.xlu0 %2869
  %2871 = vrot.lane.b32.xlu0 %v2372, 8
  %v2872 = vpop.permute.xlu0 %2871
  %2873 = vrot.lane.b32.xlu0 %v2373, 8
  %v2874 = vpop.permute.xlu0 %2873
  %2875 = vrot.lane.b32.xlu0 %v2374, 8
  %v2876 = vpop.permute.xlu0 %2875
  %2877 = vrot.lane.b32.xlu0 %v2375, 8
  %v2878 = vpop.permute.xlu0 %2877
  %2879 = vrot.lane.b32.xlu0 %v2376, 8
  %v2880 = vpop.permute.xlu0 %2879
  %v2889 = vmul.f32 %v2857, %v2866
  %v2890 = vmul.f32 %v2858, %v2868
  %v2891 = vmul.f32 %v2859, %v2870
  %v2892 = vmul.f32 %v2860, %v2872
  %v2893 = vmul.f32 %v2861, %v2874
  %v2894 = vmul.f32 %v2862, %v2876
  %v2895 = vmul.f32 %v2863, %v2878
  %v2896 = vmul.f32 %v2864, %v2880
  %2905 = vrot.lane.b32.xlu0 %v2889, 1
  %v2906 = vpop.permute.xlu0 %2905
  %2907 = vrot.lane.b32.xlu0 %v2890, 1
  %v2908 = vpop.permute.xlu0 %2907
  %2909 = vrot.lane.b32.xlu0 %v2891, 1
  %v2910 = vpop.permute.xlu0 %2909
  %2911 = vrot.lane.b32.xlu0 %v2892, 1
  %v2912 = vpop.permute.xlu0 %2911
  %2913 = vrot.lane.b32.xlu0 %v2893, 1
  %v2914 = vpop.permute.xlu0 %2913
  %2915 = vrot.lane.b32.xlu0 %v2894, 1
  %v2916 = vpop.permute.xlu0 %2915
  %2917 = vrot.lane.b32.xlu0 %v2895, 1
  %v2918 = vpop.permute.xlu0 %2917
  %2919 = vrot.lane.b32.xlu0 %v2896, 1
  %v2920 = vpop.permute.xlu0 %2919
  %v2929 = vsub.f32 %v2219, %v2906
  %v2930 = vsub.f32 %v2224, %v2908
  %v2931 = vsub.f32 %v2229, %v2910
  %v2932 = vsub.f32 %v2234, %v2912
  %v2933 = vsub.f32 %v2239, %v2914
  %v2934 = vsub.f32 %v2244, %v2916
  %v2935 = vsub.f32 %v2249, %v2918
  %v2936 = vsub.f32 %v2254, %v2920
  %2937 = vrot.lane.b32.xlu0 %v2490, 8
  %v2938 = vpop.permute.xlu0 %2937
  %2939 = vrot.lane.b32.xlu0 %v2492, 8
  %v2940 = vpop.permute.xlu0 %2939
  %2941 = vrot.lane.b32.xlu0 %v2494, 8
  %v2942 = vpop.permute.xlu0 %2941
  %2943 = vrot.lane.b32.xlu0 %v2496, 8
  %v2944 = vpop.permute.xlu0 %2943
  %2945 = vrot.lane.b32.xlu0 %v2498, 8
  %v2946 = vpop.permute.xlu0 %2945
  %2947 = vrot.lane.b32.xlu0 %v2500, 8
  %v2948 = vpop.permute.xlu0 %2947
  %2949 = vrot.lane.b32.xlu0 %v2502, 8
  %v2950 = vpop.permute.xlu0 %2949
  %2951 = vrot.lane.b32.xlu0 %v2504, 8
  %v2952 = vpop.permute.xlu0 %2951
  %v2961 = vmul.f32 %v2929, %v2938
  %v2962 = vmul.f32 %v2930, %v2940
  %v2963 = vmul.f32 %v2931, %v2942
  %v2964 = vmul.f32 %v2932, %v2944
  %v2965 = vmul.f32 %v2933, %v2946
  %v2966 = vmul.f32 %v2934, %v2948
  %v2967 = vmul.f32 %v2935, %v2950
  %v2968 = vmul.f32 %v2936, %v2952
  %2977 = vrot.lane.b32.xlu0 %v2529, 4
  %v2978 = vpop.permute.xlu0 %2977
  %2979 = vrot.lane.b32.xlu0 %v2530, 4
  %v2980 = vpop.permute.xlu0 %2979
  %2981 = vrot.lane.b32.xlu0 %v2531, 4
  %v2982 = vpop.permute.xlu0 %2981
  %2983 = vrot.lane.b32.xlu0 %v2532, 4
  %v2984 = vpop.permute.xlu0 %2983
  %2985 = vrot.lane.b32.xlu0 %v2533, 4
  %v2986 = vpop.permute.xlu0 %2985
  %2987 = vrot.lane.b32.xlu0 %v2534, 4
  %v2988 = vpop.permute.xlu0 %2987
  %2989 = vrot.lane.b32.xlu0 %v2535, 4
  %v2990 = vpop.permute.xlu0 %2989
  %2991 = vrot.lane.b32.xlu0 %v2536, 4
  %v2992 = vpop.permute.xlu0 %2991
  %v3001 = vmul.f32 %v2857, %v2978
  %v3002 = vmul.f32 %v2858, %v2980
  %v3003 = vmul.f32 %v2859, %v2982
  %v3004 = vmul.f32 %v2860, %v2984
  %v3005 = vmul.f32 %v2861, %v2986
  %v3006 = vmul.f32 %v2862, %v2988
  %v3007 = vmul.f32 %v2863, %v2990
  %v3008 = vmul.f32 %v2864, %v2992
  %3017 = vrot.lane.b32.xlu0 %v3001, 2
  %v3018 = vpop.permute.xlu0 %3017
  %3019 = vrot.lane.b32.xlu0 %v3002, 2
  %v3020 = vpop.permute.xlu0 %3019
  %3021 = vrot.lane.b32.xlu0 %v3003, 2
  %v3022 = vpop.permute.xlu0 %3021
  %3023 = vrot.lane.b32.xlu0 %v3004, 2
  %v3024 = vpop.permute.xlu0 %3023
  %3025 = vrot.lane.b32.xlu0 %v3005, 2
  %v3026 = vpop.permute.xlu0 %3025
  %3027 = vrot.lane.b32.xlu0 %v3006, 2
  %v3028 = vpop.permute.xlu0 %3027
  %3029 = vrot.lane.b32.xlu0 %v3007, 2
  %v3030 = vpop.permute.xlu0 %3029
  %3031 = vrot.lane.b32.xlu0 %v3008, 2
  %v3032 = vpop.permute.xlu0 %3031
  %v3041 = vsub.f32 %v2219, %v3018
  %v3042 = vsub.f32 %v2224, %v3020
  %v3043 = vsub.f32 %v2229, %v3022
  %v3044 = vsub.f32 %v2234, %v3024
  %v3045 = vsub.f32 %v2239, %v3026
  %v3046 = vsub.f32 %v2244, %v3028
  %v3047 = vsub.f32 %v2249, %v3030
  %v3048 = vsub.f32 %v2254, %v3032
  %3057 = vrot.lane.b32.xlu0 %v2649, 4
  %v3058 = vpop.permute.xlu0 %3057
  %3059 = vrot.lane.b32.xlu0 %v2650, 4
  %v3060 = vpop.permute.xlu0 %3059
  %3061 = vrot.lane.b32.xlu0 %v2651, 4
  %v3062 = vpop.permute.xlu0 %3061
  %3063 = vrot.lane.b32.xlu0 %v2652, 4
  %v3064 = vpop.permute.xlu0 %3063
  %3065 = vrot.lane.b32.xlu0 %v2653, 4
  %v3066 = vpop.permute.xlu0 %3065
  %3067 = vrot.lane.b32.xlu0 %v2654, 4
  %v3068 = vpop.permute.xlu0 %3067
  %3069 = vrot.lane.b32.xlu0 %v2655, 4
  %v3070 = vpop.permute.xlu0 %3069
  %3071 = vrot.lane.b32.xlu0 %v2656, 4
  %v3072 = vpop.permute.xlu0 %3071
  %v3081 = vmul.f32 %v2961, %v3058
  %v3082 = vmul.f32 %v2962, %v3060
  %v3083 = vmul.f32 %v2963, %v3062
  %v3084 = vmul.f32 %v2964, %v3064
  %v3085 = vmul.f32 %v2965, %v3066
  %v3086 = vmul.f32 %v2966, %v3068
  %v3087 = vmul.f32 %v2967, %v3070
  %v3088 = vmul.f32 %v2968, %v3072
  %3097 = vrot.lane.b32.xlu0 %v3081, 1
  %v3098 = vpop.permute.xlu0 %3097
  %3099 = vrot.lane.b32.xlu0 %v3082, 1
  %v3100 = vpop.permute.xlu0 %3099
  %3101 = vrot.lane.b32.xlu0 %v3083, 1
  %v3102 = vpop.permute.xlu0 %3101
  %3103 = vrot.lane.b32.xlu0 %v3084, 1
  %v3104 = vpop.permute.xlu0 %3103
  %3105 = vrot.lane.b32.xlu0 %v3085, 1
  %v3106 = vpop.permute.xlu0 %3105
  %3107 = vrot.lane.b32.xlu0 %v3086, 1
  %v3108 = vpop.permute.xlu0 %3107
  %3109 = vrot.lane.b32.xlu0 %v3087, 1
  %v3110 = vpop.permute.xlu0 %3109
  %3111 = vrot.lane.b32.xlu0 %v3088, 1
  %v3112 = vpop.permute.xlu0 %3111
  %v3121 = vsub.f32 %v3041, %v3098
  %v3122 = vsub.f32 %v3042, %v3100
  %v3123 = vsub.f32 %v3043, %v3102
  %v3124 = vsub.f32 %v3044, %v3104
  %v3125 = vsub.f32 %v3045, %v3106
  %v3126 = vsub.f32 %v3046, %v3108
  %v3127 = vsub.f32 %v3047, %v3110
  %v3128 = vsub.f32 %v3048, %v3112
  %3137 = vrot.lane.b32.xlu0 %v2818, 4
  %v3138 = vpop.permute.xlu0 %3137
  %3139 = vrot.lane.b32.xlu0 %v2820, 4
  %v3140 = vpop.permute.xlu0 %3139
  %3141 = vrot.lane.b32.xlu0 %v2822, 4
  %v3142 = vpop.permute.xlu0 %3141
  %3143 = vrot.lane.b32.xlu0 %v2824, 4
  %v3144 = vpop.permute.xlu0 %3143
  %3145 = vrot.lane.b32.xlu0 %v2826, 4
  %v3146 = vpop.permute.xlu0 %3145
  %3147 = vrot.lane.b32.xlu0 %v2828, 4
  %v3148 = vpop.permute.xlu0 %3147
  %3149 = vrot.lane.b32.xlu0 %v2830, 4
  %v3150 = vpop.permute.xlu0 %3149
  %3151 = vrot.lane.b32.xlu0 %v2832, 4
  %v3152 = vpop.permute.xlu0 %3151
  %v3161 = vmul.f32 %v3121, %v3138
  %v3162 = vmul.f32 %v3122, %v3140
  %v3163 = vmul.f32 %v3123, %v3142
  %v3164 = vmul.f32 %v3124, %v3144
  %v3165 = vmul.f32 %v3125, %v3146
  %v3166 = vmul.f32 %v3126, %v3148
  %v3167 = vmul.f32 %v3127, %v3150
  %v3168 = vmul.f32 %v3128, %v3152
  %v3169 = vmul.f32 %v2857, %v2857
  %v3170 = vmul.f32 %v2858, %v2858
  %v3171 = vmul.f32 %v2859, %v2859
  %v3172 = vmul.f32 %v2860, %v2860
  %v3173 = vmul.f32 %v2861, %v2861
  %v3174 = vmul.f32 %v2862, %v2862
  %v3175 = vmul.f32 %v2863, %v2863
  %v3176 = vmul.f32 %v2864, %v2864
  %3185 = vrot.lane.b32.xlu0 %v3169, 3
  %v3186 = vpop.permute.xlu0 %3185
  %3187 = vrot.lane.b32.xlu0 %v3170, 3
  %v3188 = vpop.permute.xlu0 %3187
  %3189 = vrot.lane.b32.xlu0 %v3171, 3
  %v3190 = vpop.permute.xlu0 %3189
  %3191 = vrot.lane.b32.xlu0 %v3172, 3
  %v3192 = vpop.permute.xlu0 %3191
  %3193 = vrot.lane.b32.xlu0 %v3173, 3
  %v3194 = vpop.permute.xlu0 %3193
  %3195 = vrot.lane.b32.xlu0 %v3174, 3
  %v3196 = vpop.permute.xlu0 %3195
  %3197 = vrot.lane.b32.xlu0 %v3175, 3
  %v3198 = vpop.permute.xlu0 %3197
  %3199 = vrot.lane.b32.xlu0 %v3176, 3
  %v3200 = vpop.permute.xlu0 %3199
  %v3209 = vsub.f32 %v2219, %v3186
  %v3210 = vsub.f32 %v2224, %v3188
  %v3211 = vsub.f32 %v2229, %v3190
  %v3212 = vsub.f32 %v2234, %v3192
  %v3213 = vsub.f32 %v2239, %v3194
  %v3214 = vsub.f32 %v2244, %v3196
  %v3215 = vsub.f32 %v2249, %v3198
  %v3216 = vsub.f32 %v2254, %v3200
  %v3217 = vmul.f32 %v2961, %v2961
  %v3218 = vmul.f32 %v2962, %v2962
  %v3219 = vmul.f32 %v2963, %v2963
  %v3220 = vmul.f32 %v2964, %v2964
  %v3221 = vmul.f32 %v2965, %v2965
  %v3222 = vmul.f32 %v2966, %v2966
  %v3223 = vmul.f32 %v2967, %v2967
  %v3224 = vmul.f32 %v2968, %v2968
  %3233 = vrot.lane.b32.xlu0 %v3217, 2
  %v3234 = vpop.permute.xlu0 %3233
  %3235 = vrot.lane.b32.xlu0 %v3218, 2
  %v3236 = vpop.permute.xlu0 %3235
  %3237 = vrot.lane.b32.xlu0 %v3219, 2
  %v3238 = vpop.permute.xlu0 %3237
  %3239 = vrot.lane.b32.xlu0 %v3220, 2
  %v3240 = vpop.permute.xlu0 %3239
  %3241 = vrot.lane.b32.xlu0 %v3221, 2
  %v3242 = vpop.permute.xlu0 %3241
  %3243 = vrot.lane.b32.xlu0 %v3222, 2
  %v3244 = vpop.permute.xlu0 %3243
  %3245 = vrot.lane.b32.xlu0 %v3223, 2
  %v3246 = vpop.permute.xlu0 %3245
  %3247 = vrot.lane.b32.xlu0 %v3224, 2
  %v3248 = vpop.permute.xlu0 %3247
  %v3257 = vsub.f32 %v3209, %v3234
  %v3258 = vsub.f32 %v3210, %v3236
  %v3259 = vsub.f32 %v3211, %v3238
  %v3260 = vsub.f32 %v3212, %v3240
  %v3261 = vsub.f32 %v3213, %v3242
  %v3262 = vsub.f32 %v3214, %v3244
  %v3263 = vsub.f32 %v3215, %v3246
  %v3264 = vsub.f32 %v3216, %v3248
  %v3265 = vmul.f32 %v3161, %v3161
  %v3266 = vmul.f32 %v3162, %v3162
  %v3267 = vmul.f32 %v3163, %v3163
  %v3268 = vmul.f32 %v3164, %v3164
  %v3269 = vmul.f32 %v3165, %v3165
  %v3270 = vmul.f32 %v3166, %v3166
  %v3271 = vmul.f32 %v3167, %v3167
  %v3272 = vmul.f32 %v3168, %v3168
  %3281 = vrot.lane.b32.xlu0 %v3265, 1
  %v3282 = vpop.permute.xlu0 %3281
  %3283 = vrot.lane.b32.xlu0 %v3266, 1
  %v3284 = vpop.permute.xlu0 %3283
  %3285 = vrot.lane.b32.xlu0 %v3267, 1
  %v3286 = vpop.permute.xlu0 %3285
  %3287 = vrot.lane.b32.xlu0 %v3268, 1
  %v3288 = vpop.permute.xlu0 %3287
  %3289 = vrot.lane.b32.xlu0 %v3269, 1
  %v3290 = vpop.permute.xlu0 %3289
  %3291 = vrot.lane.b32.xlu0 %v3270, 1
  %v3292 = vpop.permute.xlu0 %3291
  %3293 = vrot.lane.b32.xlu0 %v3271, 1
  %v3294 = vpop.permute.xlu0 %3293
  %3295 = vrot.lane.b32.xlu0 %v3272, 1
  %v3296 = vpop.permute.xlu0 %3295
  %v3305 = vsub.f32 %v3257, %v3282
  %v3306 = vsub.f32 %v3258, %v3284
  %v3307 = vsub.f32 %v3259, %v3286
  %v3308 = vsub.f32 %v3260, %v3288
  %v3309 = vsub.f32 %v3261, %v3290
  %v3310 = vsub.f32 %v3262, %v3292
  %v3311 = vsub.f32 %v3263, %v3294
  %v3312 = vsub.f32 %v3264, %v3296
  %v3313 = vadd.f32 %v3305, 1e-06
  %v3314 = vadd.f32 %v3306, 1e-06
  %v3315 = vadd.f32 %v3307, 1e-06
  %v3316 = vadd.f32 %v3308, 1e-06
  %v3317 = vadd.f32 %v3309, 1e-06
  %v3318 = vadd.f32 %v3310, 1e-06
  %v3319 = vadd.f32 %v3311, 1e-06
  %v3320 = vadd.f32 %v3312, 1e-06
  %v3321 = vrsqrt.pop %v3313
  %v3322 = vmul.f32 %v3313, %v3321
  %vm3323 = vcmp.eq.f32.partialorder %v3313, inf
  %v3324 = vsel %vm3323, %v3313, %v3322
  %vm3325 = vcmp.eq.f32.partialorder %v3313, 0.0
  %v3326 = vand.u32 %v3313, 2147483648
  %v3327 = vsel %vm3325, %v3326, %v3324
  %v3328 = vrsqrt.pop %v3314
  %v3329 = vmul.f32 %v3314, %v3328
  %vm3330 = vcmp.eq.f32.partialorder %v3314, inf
  %v3331 = vsel %vm3330, %v3314, %v3329
  %vm3332 = vcmp.eq.f32.partialorder %v3314, 0.0
  %v3333 = vand.u32 %v3314, 2147483648
  %v3334 = vsel %vm3332, %v3333, %v3331
  %v3335 = vrsqrt.pop %v3315
  %v3336 = vmul.f32 %v3315, %v3335
  %vm3337 = vcmp.eq.f32.partialorder %v3315, inf
  %v3338 = vsel %vm3337, %v3315, %v3336
  %vm3339 = vcmp.eq.f32.partialorder %v3315, 0.0
  %v3340 = vand.u32 %v3315, 2147483648
  %v3341 = vsel %vm3339, %v3340, %v3338
  %v3342 = vrsqrt.pop %v3316
  %v3343 = vmul.f32 %v3316, %v3342
  %vm3344 = vcmp.eq.f32.partialorder %v3316, inf
  %v3345 = vsel %vm3344, %v3316, %v3343
  %vm3346 = vcmp.eq.f32.partialorder %v3316, 0.0
  %v3347 = vand.u32 %v3316, 2147483648
  %v3348 = vsel %vm3346, %v3347, %v3345
  %v3349 = vrsqrt.pop %v3317
  %v3350 = vmul.f32 %v3317, %v3349
  %vm3351 = vcmp.eq.f32.partialorder %v3317, inf
  %v3352 = vsel %vm3351, %v3317, %v3350
  %vm3353 = vcmp.eq.f32.partialorder %v3317, 0.0
  %v3354 = vand.u32 %v3317, 2147483648
  %v3355 = vsel %vm3353, %v3354, %v3352
  %v3356 = vrsqrt.pop %v3318
  %v3357 = vmul.f32 %v3318, %v3356
  %vm3358 = vcmp.eq.f32.partialorder %v3318, inf
  %v3359 = vsel %vm3358, %v3318, %v3357
  %vm3360 = vcmp.eq.f32.partialorder %v3318, 0.0
  %v3361 = vand.u32 %v3318, 2147483648
  %v3362 = vsel %vm3360, %v3361, %v3359
  %v3363 = vrsqrt.pop %v3319
  %v3364 = vmul.f32 %v3319, %v3363
  %vm3365 = vcmp.eq.f32.partialorder %v3319, inf
  %v3366 = vsel %vm3365, %v3319, %v3364
  %vm3367 = vcmp.eq.f32.partialorder %v3319, 0.0
  %v3368 = vand.u32 %v3319, 2147483648
  %v3369 = vsel %vm3367, %v3368, %v3366
  %v3370 = vrsqrt.pop %v3320
  %v3371 = vmul.f32 %v3320, %v3370
  %vm3372 = vcmp.eq.f32.partialorder %v3320, inf
  %v3373 = vsel %vm3372, %v3320, %v3371
  %vm3374 = vcmp.eq.f32.partialorder %v3320, 0.0
  %v3375 = vand.u32 %v3320, 2147483648
  %v3376 = vsel %vm3374, %v3375, %v3373
  %v3377 = vrcp.pop %v3327
  %v3378 = vmul.f32 1.0, %v3377
  %v3379 = vrcp.pop %v3334
  %v3380 = vmul.f32 1.0, %v3379
  %v3381 = vrcp.pop %v3341
  %v3382 = vmul.f32 1.0, %v3381
  %v3383 = vrcp.pop %v3348
  %v3384 = vmul.f32 1.0, %v3383
  %v3385 = vrcp.pop %v3355
  %v3386 = vmul.f32 1.0, %v3385
  %v3387 = vrcp.pop %v3362
  %v3388 = vmul.f32 1.0, %v3387
  %v3389 = vrcp.pop %v3369
  %v3390 = vmul.f32 1.0, %v3389
  %v3391 = vrcp.pop %v3376
  %v3392 = vmul.f32 1.0, %v3391
  %v3393 = vlog2.pop %v2271
  %v3394 = vmul.f32 %v3393, 0.6931472
  %v3395 = vlog2.pop %v2278
  %v3396 = vmul.f32 %v3395, 0.6931472
  %v3397 = vlog2.pop %v2285
  %v3398 = vmul.f32 %v3397, 0.6931472
  %v3399 = vlog2.pop %v2292
  %v3400 = vmul.f32 %v3399, 0.6931472
  %v3401 = vlog2.pop %v2299
  %v3402 = vmul.f32 %v3401, 0.6931472
  %v3403 = vlog2.pop %v2306
  %v3404 = vmul.f32 %v3403, 0.6931472
  %v3405 = vlog2.pop %v2313
  %v3406 = vmul.f32 %v3405, 0.6931472
  %v3407 = vlog2.pop %v2320
  %v3408 = vmul.f32 %v3407, 0.6931472
  %v3409 = vlog2.pop %v2439
  %v3410 = vmul.f32 %v3409, 0.6931472
  %v3411 = vlog2.pop %v2446
  %v3412 = vmul.f32 %v3411, 0.6931472
  %v3413 = vlog2.pop %v2453
  %v3414 = vmul.f32 %v3413, 0.6931472
  %v3415 = vlog2.pop %v2460
  %v3416 = vmul.f32 %v3415, 0.6931472
  %v3417 = vlog2.pop %v2467
  %v3418 = vmul.f32 %v3417, 0.6931472
  %v3419 = vlog2.pop %v2474
  %v3420 = vmul.f32 %v3419, 0.6931472
  %v3421 = vlog2.pop %v2481
  %v3422 = vmul.f32 %v3421, 0.6931472
  %v3423 = vlog2.pop %v2488
  %v3424 = vmul.f32 %v3423, 0.6931472
  %3433 = vrot.lane.b32.xlu0 %v3410, 123
  %v3434 = vpop.permute.xlu0 %3433
  %3435 = vrot.lane.b32.xlu0 %v3412, 123
  %v3436 = vpop.permute.xlu0 %3435
  %3437 = vrot.lane.b32.xlu0 %v3414, 123
  %v3438 = vpop.permute.xlu0 %3437
  %3439 = vrot.lane.b32.xlu0 %v3416, 123
  %v3440 = vpop.permute.xlu0 %3439
  %3441 = vrot.lane.b32.xlu0 %v3418, 123
  %v3442 = vpop.permute.xlu0 %3441
  %3443 = vrot.lane.b32.xlu0 %v3420, 123
  %v3444 = vpop.permute.xlu0 %3443
  %3445 = vrot.lane.b32.xlu0 %v3422, 123
  %v3446 = vpop.permute.xlu0 %3445
  %3447 = vrot.lane.b32.xlu0 %v3424, 123
  %v3448 = vpop.permute.xlu0 %3447
  %v3457 = vadd.f32 %v3394, %v3434
  %v3458 = vadd.f32 %v3396, %v3436
  %v3459 = vadd.f32 %v3398, %v3438
  %v3460 = vadd.f32 %v3400, %v3440
  %v3461 = vadd.f32 %v3402, %v3442
  %v3462 = vadd.f32 %v3404, %v3444
  %v3463 = vadd.f32 %v3406, %v3446
  %v3464 = vadd.f32 %v3408, %v3448
  %v3465 = vlog2.pop %v2767
  %v3466 = vmul.f32 %v3465, 0.6931472
  %v3467 = vlog2.pop %v2774
  %v3468 = vmul.f32 %v3467, 0.6931472
  %v3469 = vlog2.pop %v2781
  %v3470 = vmul.f32 %v3469, 0.6931472
  %v3471 = vlog2.pop %v2788
  %v3472 = vmul.f32 %v3471, 0.6931472
  %v3473 = vlog2.pop %v2795
  %v3474 = vmul.f32 %v3473, 0.6931472
  %v3475 = vlog2.pop %v2802
  %v3476 = vmul.f32 %v3475, 0.6931472
  %v3477 = vlog2.pop %v2809
  %v3478 = vmul.f32 %v3477, 0.6931472
  %v3479 = vlog2.pop %v2816
  %v3480 = vmul.f32 %v3479, 0.6931472
  %3489 = vrot.lane.b32.xlu0 %v3466, 118
  %v3490 = vpop.permute.xlu0 %3489
  %3491 = vrot.lane.b32.xlu0 %v3468, 118
  %v3492 = vpop.permute.xlu0 %3491
  %3493 = vrot.lane.b32.xlu0 %v3470, 118
  %v3494 = vpop.permute.xlu0 %3493
  %3495 = vrot.lane.b32.xlu0 %v3472, 118
  %v3496 = vpop.permute.xlu0 %3495
  %3497 = vrot.lane.b32.xlu0 %v3474, 118
  %v3498 = vpop.permute.xlu0 %3497
  %3499 = vrot.lane.b32.xlu0 %v3476, 118
  %v3500 = vpop.permute.xlu0 %3499
  %3501 = vrot.lane.b32.xlu0 %v3478, 118
  %v3502 = vpop.permute.xlu0 %3501
  %3503 = vrot.lane.b32.xlu0 %v3480, 118
  %v3504 = vpop.permute.xlu0 %3503
  %v3513 = vadd.f32 %v3457, %v3490
  %v3514 = vadd.f32 %v3458, %v3492
  %v3515 = vadd.f32 %v3459, %v3494
  %v3516 = vadd.f32 %v3460, %v3496
  %v3517 = vadd.f32 %v3461, %v3498
  %v3518 = vadd.f32 %v3462, %v3500
  %v3519 = vadd.f32 %v3463, %v3502
  %v3520 = vadd.f32 %v3464, %v3504
  %v3521 = vlog2.pop %v3327
  %v3522 = vmul.f32 %v3521, 0.6931472
  %v3523 = vlog2.pop %v3334
  %v3524 = vmul.f32 %v3523, 0.6931472
  %v3525 = vlog2.pop %v3341
  %v3526 = vmul.f32 %v3525, 0.6931472
  %v3527 = vlog2.pop %v3348
  %v3528 = vmul.f32 %v3527, 0.6931472
  %v3529 = vlog2.pop %v3355
  %v3530 = vmul.f32 %v3529, 0.6931472
  %v3531 = vlog2.pop %v3362
  %v3532 = vmul.f32 %v3531, 0.6931472
  %v3533 = vlog2.pop %v3369
  %v3534 = vmul.f32 %v3533, 0.6931472
  %v3535 = vlog2.pop %v3376
  %v3536 = vmul.f32 %v3535, 0.6931472
  %3545 = vrot.lane.b32.xlu0 %v3522, 113
  %v3546 = vpop.permute.xlu0 %3545
  %3547 = vrot.lane.b32.xlu0 %v3524, 113
  %v3548 = vpop.permute.xlu0 %3547
  %3549 = vrot.lane.b32.xlu0 %v3526, 113
  %v3550 = vpop.permute.xlu0 %3549
  %3551 = vrot.lane.b32.xlu0 %v3528, 113
  %v3552 = vpop.permute.xlu0 %3551
  %3553 = vrot.lane.b32.xlu0 %v3530, 113
  %v3554 = vpop.permute.xlu0 %3553
  %3555 = vrot.lane.b32.xlu0 %v3532, 113
  %v3556 = vpop.permute.xlu0 %3555
  %3557 = vrot.lane.b32.xlu0 %v3534, 113
  %v3558 = vpop.permute.xlu0 %3557
  %3559 = vrot.lane.b32.xlu0 %v3536, 113
  %v3560 = vpop.permute.xlu0 %3559
  %v3569 = vadd.f32 %v3513, %v3546
  %v3570 = vadd.f32 %v3514, %v3548
  %v3571 = vadd.f32 %v3515, %v3550
  %v3572 = vadd.f32 %v3516, %v3552
  %v3573 = vadd.f32 %v3517, %v3554
  %v3574 = vadd.f32 %v3518, %v3556
  %v3575 = vadd.f32 %v3519, %v3558
  %v3576 = vadd.f32 %v3520, %v3560
  %v3577 = vmul.f32 %v3569, 2.0
  %v3578 = vmul.f32 %v3570, 2.0
  %v3579 = vmul.f32 %v3571, 2.0
  %v3580 = vmul.f32 %v3572, 2.0
  %v3581 = vmul.f32 %v3573, 2.0
  %v3582 = vmul.f32 %v3574, 2.0
  %v3583 = vmul.f32 %v3575, 2.0
  %v3584 = vmul.f32 %v3576, 2.0
  %v3585 = vmul.f32 %v2108, %v2322
  %v3586 = vmul.f32 %v2109, %v2324
  %v3587 = vmul.f32 %v2110, %v2326
  %v3588 = vmul.f32 %v2111, %v2328
  %v3589 = vmul.f32 %v2112, %v2330
  %v3590 = vmul.f32 %v2113, %v2332
  %v3591 = vmul.f32 %v2114, %v2334
  %v3592 = vmul.f32 %v2115, %v2336
  %v3593 = vmul.f32 %v3585, %v3585
  %v3594 = vmul.f32 %v3586, %v3586
  %v3595 = vmul.f32 %v3587, %v3587
  %v3596 = vmul.f32 %v3588, %v3588
  %v3597 = vmul.f32 %v3589, %v3589
  %v3598 = vmul.f32 %v3590, %v3590
  %v3599 = vmul.f32 %v3591, %v3591
  %v3600 = vmul.f32 %v3592, %v3592
  %3609 = vrot.lane.b32.xlu0 %v3585, 4
  %v3610 = vpop.permute.xlu0 %3609
  %3611 = vrot.lane.b32.xlu0 %v3586, 4
  %v3612 = vpop.permute.xlu0 %3611
  %3613 = vrot.lane.b32.xlu0 %v3587, 4
  %v3614 = vpop.permute.xlu0 %3613
  %3615 = vrot.lane.b32.xlu0 %v3588, 4
  %v3616 = vpop.permute.xlu0 %3615
  %3617 = vrot.lane.b32.xlu0 %v3589, 4
  %v3618 = vpop.permute.xlu0 %3617
  %3619 = vrot.lane.b32.xlu0 %v3590, 4
  %v3620 = vpop.permute.xlu0 %3619
  %3621 = vrot.lane.b32.xlu0 %v3591, 4
  %v3622 = vpop.permute.xlu0 %3621
  %3623 = vrot.lane.b32.xlu0 %v3592, 4
  %v3624 = vpop.permute.xlu0 %3623
  %v3633 = vmul.f32 %v2369, %v3610
  %v3634 = vmul.f32 %v2370, %v3612
  %v3635 = vmul.f32 %v2371, %v3614
  %v3636 = vmul.f32 %v2372, %v3616
  %v3637 = vmul.f32 %v2373, %v3618
  %v3638 = vmul.f32 %v2374, %v3620
  %v3639 = vmul.f32 %v2375, %v3622
  %v3640 = vmul.f32 %v2376, %v3624
  %3649 = vrot.lane.b32.xlu0 %v3633, 125
  %v3650 = vpop.permute.xlu0 %3649
  %3651 = vrot.lane.b32.xlu0 %v3634, 125
  %v3652 = vpop.permute.xlu0 %3651
  %3653 = vrot.lane.b32.xlu0 %v3635, 125
  %v3654 = vpop.permute.xlu0 %3653
  %3655 = vrot.lane.b32.xlu0 %v3636, 125
  %v3656 = vpop.permute.xlu0 %3655
  %3657 = vrot.lane.b32.xlu0 %v3637, 125
  %v3658 = vpop.permute.xlu0 %3657
  %3659 = vrot.lane.b32.xlu0 %v3638, 125
  %v3660 = vpop.permute.xlu0 %3659
  %3661 = vrot.lane.b32.xlu0 %v3639, 125
  %v3662 = vpop.permute.xlu0 %3661
  %3663 = vrot.lane.b32.xlu0 %v3640, 125
  %v3664 = vpop.permute.xlu0 %3663
  %v3673 = vsub.f32 %v2108, %v3650
  %v3674 = vsub.f32 %v2109, %v3652
  %v3675 = vsub.f32 %v2110, %v3654
  %v3676 = vsub.f32 %v2111, %v3656
  %v3677 = vsub.f32 %v2112, %v3658
  %v3678 = vsub.f32 %v2113, %v3660
  %v3679 = vsub.f32 %v2114, %v3662
  %v3680 = vsub.f32 %v2115, %v3664
  %3681 = vrot.lane.b32.xlu0 %v2490, 124
  %v3682 = vpop.permute.xlu0 %3681
  %3683 = vrot.lane.b32.xlu0 %v2492, 124
  %v3684 = vpop.permute.xlu0 %3683
  %3685 = vrot.lane.b32.xlu0 %v2494, 124
  %v3686 = vpop.permute.xlu0 %3685
  %3687 = vrot.lane.b32.xlu0 %v2496, 124
  %v3688 = vpop.permute.xlu0 %3687
  %3689 = vrot.lane.b32.xlu0 %v2498, 124
  %v3690 = vpop.permute.xlu0 %3689
  %3691 = vrot.lane.b32.xlu0 %v2500, 124
  %v3692 = vpop.permute.xlu0 %3691
  %3693 = vrot.lane.b32.xlu0 %v2502, 124
  %v3694 = vpop.permute.xlu0 %3693
  %3695 = vrot.lane.b32.xlu0 %v2504, 124
  %v3696 = vpop.permute.xlu0 %3695
  %v3705 = vmul.f32 %v3673, %v3682
  %v3706 = vmul.f32 %v3674, %v3684
  %v3707 = vmul.f32 %v3675, %v3686
  %v3708 = vmul.f32 %v3676, %v3688
  %v3709 = vmul.f32 %v3677, %v3690
  %v3710 = vmul.f32 %v3678, %v3692
  %v3711 = vmul.f32 %v3679, %v3694
  %v3712 = vmul.f32 %v3680, %v3696
  %v3713 = vmul.f32 %v3705, %v3705
  %v3714 = vmul.f32 %v3706, %v3706
  %v3715 = vmul.f32 %v3707, %v3707
  %v3716 = vmul.f32 %v3708, %v3708
  %v3717 = vmul.f32 %v3709, %v3709
  %v3718 = vmul.f32 %v3710, %v3710
  %v3719 = vmul.f32 %v3711, %v3711
  %v3720 = vmul.f32 %v3712, %v3712
  %3729 = vrot.lane.b32.xlu0 %v3713, 127
  %v3730 = vpop.permute.xlu0 %3729
  %3731 = vrot.lane.b32.xlu0 %v3714, 127
  %v3732 = vpop.permute.xlu0 %3731
  %3733 = vrot.lane.b32.xlu0 %v3715, 127
  %v3734 = vpop.permute.xlu0 %3733
  %3735 = vrot.lane.b32.xlu0 %v3716, 127
  %v3736 = vpop.permute.xlu0 %3735
  %3737 = vrot.lane.b32.xlu0 %v3717, 127
  %v3738 = vpop.permute.xlu0 %3737
  %3739 = vrot.lane.b32.xlu0 %v3718, 127
  %v3740 = vpop.permute.xlu0 %3739
  %3741 = vrot.lane.b32.xlu0 %v3719, 127
  %v3742 = vpop.permute.xlu0 %3741
  %3743 = vrot.lane.b32.xlu0 %v3720, 127
  %v3744 = vpop.permute.xlu0 %3743
  %v3753 = vadd.f32 %v3593, %v3730
  %v3754 = vadd.f32 %v3594, %v3732
  %v3755 = vadd.f32 %v3595, %v3734
  %v3756 = vadd.f32 %v3596, %v3736
  %v3757 = vadd.f32 %v3597, %v3738
  %v3758 = vadd.f32 %v3598, %v3740
  %v3759 = vadd.f32 %v3599, %v3742
  %v3760 = vadd.f32 %v3600, %v3744
  %3761 = vrot.lane.b32.xlu0 %v3585, 8
  %v3762 = vpop.permute.xlu0 %3761
  %3763 = vrot.lane.b32.xlu0 %v3586, 8
  %v3764 = vpop.permute.xlu0 %3763
  %3765 = vrot.lane.b32.xlu0 %v3587, 8
  %v3766 = vpop.permute.xlu0 %3765
  %3767 = vrot.lane.b32.xlu0 %v3588, 8
  %v3768 = vpop.permute.xlu0 %3767
  %3769 = vrot.lane.b32.xlu0 %v3589, 8
  %v3770 = vpop.permute.xlu0 %3769
  %3771 = vrot.lane.b32.xlu0 %v3590, 8
  %v3772 = vpop.permute.xlu0 %3771
  %3773 = vrot.lane.b32.xlu0 %v3591, 8
  %v3774 = vpop.permute.xlu0 %3773
  %3775 = vrot.lane.b32.xlu0 %v3592, 8
  %v3776 = vpop.permute.xlu0 %3775
  %v3785 = vmul.f32 %v2529, %v3762
  %v3786 = vmul.f32 %v2530, %v3764
  %v3787 = vmul.f32 %v2531, %v3766
  %v3788 = vmul.f32 %v2532, %v3768
  %v3789 = vmul.f32 %v2533, %v3770
  %v3790 = vmul.f32 %v2534, %v3772
  %v3791 = vmul.f32 %v2535, %v3774
  %v3792 = vmul.f32 %v2536, %v3776
  %3801 = vrot.lane.b32.xlu0 %v3785, 122
  %v3802 = vpop.permute.xlu0 %3801
  %3803 = vrot.lane.b32.xlu0 %v3786, 122
  %v3804 = vpop.permute.xlu0 %3803
  %3805 = vrot.lane.b32.xlu0 %v3787, 122
  %v3806 = vpop.permute.xlu0 %3805
  %3807 = vrot.lane.b32.xlu0 %v3788, 122
  %v3808 = vpop.permute.xlu0 %3807
  %3809 = vrot.lane.b32.xlu0 %v3789, 122
  %v3810 = vpop.permute.xlu0 %3809
  %3811 = vrot.lane.b32.xlu0 %v3790, 122
  %v3812 = vpop.permute.xlu0 %3811
  %3813 = vrot.lane.b32.xlu0 %v3791, 122
  %v3814 = vpop.permute.xlu0 %3813
  %3815 = vrot.lane.b32.xlu0 %v3792, 122
  %v3816 = vpop.permute.xlu0 %3815
  %v3825 = vsub.f32 %v2108, %v3802
  %v3826 = vsub.f32 %v2109, %v3804
  %v3827 = vsub.f32 %v2110, %v3806
  %v3828 = vsub.f32 %v2111, %v3808
  %v3829 = vsub.f32 %v2112, %v3810
  %v3830 = vsub.f32 %v2113, %v3812
  %v3831 = vsub.f32 %v2114, %v3814
  %v3832 = vsub.f32 %v2115, %v3816
  %3841 = vrot.lane.b32.xlu0 %v3705, 8
  %v3842 = vpop.permute.xlu0 %3841
  %3843 = vrot.lane.b32.xlu0 %v3706, 8
  %v3844 = vpop.permute.xlu0 %3843
  %3845 = vrot.lane.b32.xlu0 %v3707, 8
  %v3846 = vpop.permute.xlu0 %3845
  %3847 = vrot.lane.b32.xlu0 %v3708, 8
  %v3848 = vpop.permute.xlu0 %3847
  %3849 = vrot.lane.b32.xlu0 %v3709, 8
  %v3850 = vpop.permute.xlu0 %3849
  %3851 = vrot.lane.b32.xlu0 %v3710, 8
  %v3852 = vpop.permute.xlu0 %3851
  %3853 = vrot.lane.b32.xlu0 %v3711, 8
  %v3854 = vpop.permute.xlu0 %3853
  %3855 = vrot.lane.b32.xlu0 %v3712, 8
  %v3856 = vpop.permute.xlu0 %3855
  %v3865 = vmul.f32 %v2649, %v3842
  %v3866 = vmul.f32 %v2650, %v3844
  %v3867 = vmul.f32 %v2651, %v3846
  %v3868 = vmul.f32 %v2652, %v3848
  %v3869 = vmul.f32 %v2653, %v3850
  %v3870 = vmul.f32 %v2654, %v3852
  %v3871 = vmul.f32 %v2655, %v3854
  %v3872 = vmul.f32 %v2656, %v3856
  %3881 = vrot.lane.b32.xlu0 %v3865, 121
  %v3882 = vpop.permute.xlu0 %3881
  %3883 = vrot.lane.b32.xlu0 %v3866, 121
  %v3884 = vpop.permute.xlu0 %3883
  %3885 = vrot.lane.b32.xlu0 %v3867, 121
  %v3886 = vpop.permute.xlu0 %3885
  %3887 = vrot.lane.b32.xlu0 %v3868, 121
  %v3888 = vpop.permute.xlu0 %3887
  %3889 = vrot.lane.b32.xlu0 %v3869, 121
  %v3890 = vpop.permute.xlu0 %3889
  %3891 = vrot.lane.b32.xlu0 %v3870, 121
  %v3892 = vpop.permute.xlu0 %3891
  %3893 = vrot.lane.b32.xlu0 %v3871, 121
  %v3894 = vpop.permute.xlu0 %3893
  %3895 = vrot.lane.b32.xlu0 %v3872, 121
  %v3896 = vpop.permute.xlu0 %3895
  %v3905 = vsub.f32 %v3825, %v3882
  %v3906 = vsub.f32 %v3826, %v3884
  %v3907 = vsub.f32 %v3827, %v3886
  %v3908 = vsub.f32 %v3828, %v3888
  %v3909 = vsub.f32 %v3829, %v3890
  %v3910 = vsub.f32 %v3830, %v3892
  %v3911 = vsub.f32 %v3831, %v3894
  %v3912 = vsub.f32 %v3832, %v3896
  %3913 = vrot.lane.b32.xlu0 %v2818, 120
  %v3914 = vpop.permute.xlu0 %3913
  %3915 = vrot.lane.b32.xlu0 %v2820, 120
  %v3916 = vpop.permute.xlu0 %3915
  %3917 = vrot.lane.b32.xlu0 %v2822, 120
  %v3918 = vpop.permute.xlu0 %3917
  %3919 = vrot.lane.b32.xlu0 %v2824, 120
  %v3920 = vpop.permute.xlu0 %3919
  %3921 = vrot.lane.b32.xlu0 %v2826, 120
  %v3922 = vpop.permute.xlu0 %3921
  %3923 = vrot.lane.b32.xlu0 %v2828, 120
  %v3924 = vpop.permute.xlu0 %3923
  %3925 = vrot.lane.b32.xlu0 %v2830, 120
  %v3926 = vpop.permute.xlu0 %3925
  %3927 = vrot.lane.b32.xlu0 %v2832, 120
  %v3928 = vpop.permute.xlu0 %3927
  %v3937 = vmul.f32 %v3905, %v3914
  %v3938 = vmul.f32 %v3906, %v3916
  %v3939 = vmul.f32 %v3907, %v3918
  %v3940 = vmul.f32 %v3908, %v3920
  %v3941 = vmul.f32 %v3909, %v3922
  %v3942 = vmul.f32 %v3910, %v3924
  %v3943 = vmul.f32 %v3911, %v3926
  %v3944 = vmul.f32 %v3912, %v3928
  %v3945 = vmul.f32 %v3937, %v3937
  %v3946 = vmul.f32 %v3938, %v3938
  %v3947 = vmul.f32 %v3939, %v3939
  %v3948 = vmul.f32 %v3940, %v3940
  %v3949 = vmul.f32 %v3941, %v3941
  %v3950 = vmul.f32 %v3942, %v3942
  %v3951 = vmul.f32 %v3943, %v3943
  %v3952 = vmul.f32 %v3944, %v3944
  %3961 = vrot.lane.b32.xlu0 %v3945, 126
  %v3962 = vpop.permute.xlu0 %3961
  %3963 = vrot.lane.b32.xlu0 %v3946, 126
  %v3964 = vpop.permute.xlu0 %3963
  %3965 = vrot.lane.b32.xlu0 %v3947, 126
  %v3966 = vpop.permute.xlu0 %3965
  %3967 = vrot.lane.b32.xlu0 %v3948, 126
  %v3968 = vpop.permute.xlu0 %3967
  %3969 = vrot.lane.b32.xlu0 %v3949, 126
  %v3970 = vpop.permute.xlu0 %3969
  %3971 = vrot.lane.b32.xlu0 %v3950, 126
  %v3972 = vpop.permute.xlu0 %3971
  %3973 = vrot.lane.b32.xlu0 %v3951, 126
  %v3974 = vpop.permute.xlu0 %3973
  %3975 = vrot.lane.b32.xlu0 %v3952, 126
  %v3976 = vpop.permute.xlu0 %3975
  %v3985 = vadd.f32 %v3753, %v3962
  %v3986 = vadd.f32 %v3754, %v3964
  %v3987 = vadd.f32 %v3755, %v3966
  %v3988 = vadd.f32 %v3756, %v3968
  %v3989 = vadd.f32 %v3757, %v3970
  %v3990 = vadd.f32 %v3758, %v3972
  %v3991 = vadd.f32 %v3759, %v3974
  %v3992 = vadd.f32 %v3760, %v3976
  %3993 = vrot.lane.b32.xlu0 %v3585, 12
  %v3994 = vpop.permute.xlu0 %3993
  %3995 = vrot.lane.b32.xlu0 %v3586, 12
  %v3996 = vpop.permute.xlu0 %3995
  %3997 = vrot.lane.b32.xlu0 %v3587, 12
  %v3998 = vpop.permute.xlu0 %3997
  %3999 = vrot.lane.b32.xlu0 %v3588, 12
  %v4000 = vpop.permute.xlu0 %3999
  %4001 = vrot.lane.b32.xlu0 %v3589, 12
  %v4002 = vpop.permute.xlu0 %4001
  %4003 = vrot.lane.b32.xlu0 %v3590, 12
  %v4004 = vpop.permute.xlu0 %4003
  %4005 = vrot.lane.b32.xlu0 %v3591, 12
  %v4006 = vpop.permute.xlu0 %4005
  %4007 = vrot.lane.b32.xlu0 %v3592, 12
  %v4008 = vpop.permute.xlu0 %4007
  %v4017 = vmul.f32 %v2857, %v3994
  %v4018 = vmul.f32 %v2858, %v3996
  %v4019 = vmul.f32 %v2859, %v3998
  %v4020 = vmul.f32 %v2860, %v4000
  %v4021 = vmul.f32 %v2861, %v4002
  %v4022 = vmul.f32 %v2862, %v4004
  %v4023 = vmul.f32 %v2863, %v4006
  %v4024 = vmul.f32 %v2864, %v4008
  %4033 = vrot.lane.b32.xlu0 %v4017, 119
  %v4034 = vpop.permute.xlu0 %4033
  %4035 = vrot.lane.b32.xlu0 %v4018, 119
  %v4036 = vpop.permute.xlu0 %4035
  %4037 = vrot.lane.b32.xlu0 %v4019, 119
  %v4038 = vpop.permute.xlu0 %4037
  %4039 = vrot.lane.b32.xlu0 %v4020, 119
  %v4040 = vpop.permute.xlu0 %4039
  %4041 = vrot.lane.b32.xlu0 %v4021, 119
  %v4042 = vpop.permute.xlu0 %4041
  %4043 = vrot.lane.b32.xlu0 %v4022, 119
  %v4044 = vpop.permute.xlu0 %4043
  %4045 = vrot.lane.b32.xlu0 %v4023, 119
  %v4046 = vpop.permute.xlu0 %4045
  %4047 = vrot.lane.b32.xlu0 %v4024, 119
  %v4048 = vpop.permute.xlu0 %4047
  %v4057 = vsub.f32 %v2108, %v4034
  %v4058 = vsub.f32 %v2109, %v4036
  %v4059 = vsub.f32 %v2110, %v4038
  %v4060 = vsub.f32 %v2111, %v4040
  %v4061 = vsub.f32 %v2112, %v4042
  %v4062 = vsub.f32 %v2113, %v4044
  %v4063 = vsub.f32 %v2114, %v4046
  %v4064 = vsub.f32 %v2115, %v4048
  %4065 = vrot.lane.b32.xlu0 %v3705, 12
  %v4066 = vpop.permute.xlu0 %4065
  %4067 = vrot.lane.b32.xlu0 %v3706, 12
  %v4068 = vpop.permute.xlu0 %4067
  %4069 = vrot.lane.b32.xlu0 %v3707, 12
  %v4070 = vpop.permute.xlu0 %4069
  %4071 = vrot.lane.b32.xlu0 %v3708, 12
  %v4072 = vpop.permute.xlu0 %4071
  %4073 = vrot.lane.b32.xlu0 %v3709, 12
  %v4074 = vpop.permute.xlu0 %4073
  %4075 = vrot.lane.b32.xlu0 %v3710, 12
  %v4076 = vpop.permute.xlu0 %4075
  %4077 = vrot.lane.b32.xlu0 %v3711, 12
  %v4078 = vpop.permute.xlu0 %4077
  %4079 = vrot.lane.b32.xlu0 %v3712, 12
  %v4080 = vpop.permute.xlu0 %4079
  %v4089 = vmul.f32 %v2961, %v4066
  %v4090 = vmul.f32 %v2962, %v4068
  %v4091 = vmul.f32 %v2963, %v4070
  %v4092 = vmul.f32 %v2964, %v4072
  %v4093 = vmul.f32 %v2965, %v4074
  %v4094 = vmul.f32 %v2966, %v4076
  %v4095 = vmul.f32 %v2967, %v4078
  %v4096 = vmul.f32 %v2968, %v4080
  %4105 = vrot.lane.b32.xlu0 %v4089, 118
  %v4106 = vpop.permute.xlu0 %4105
  %4107 = vrot.lane.b32.xlu0 %v4090, 118
  %v4108 = vpop.permute.xlu0 %4107
  %4109 = vrot.lane.b32.xlu0 %v4091, 118
  %v4110 = vpop.permute.xlu0 %4109
  %4111 = vrot.lane.b32.xlu0 %v4092, 118
  %v4112 = vpop.permute.xlu0 %4111
  %4113 = vrot.lane.b32.xlu0 %v4093, 118
  %v4114 = vpop.permute.xlu0 %4113
  %4115 = vrot.lane.b32.xlu0 %v4094, 118
  %v4116 = vpop.permute.xlu0 %4115
  %4117 = vrot.lane.b32.xlu0 %v4095, 118
  %v4118 = vpop.permute.xlu0 %4117
  %4119 = vrot.lane.b32.xlu0 %v4096, 118
  %v4120 = vpop.permute.xlu0 %4119
  %v4129 = vsub.f32 %v4057, %v4106
  %v4130 = vsub.f32 %v4058, %v4108
  %v4131 = vsub.f32 %v4059, %v4110
  %v4132 = vsub.f32 %v4060, %v4112
  %v4133 = vsub.f32 %v4061, %v4114
  %v4134 = vsub.f32 %v4062, %v4116
  %v4135 = vsub.f32 %v4063, %v4118
  %v4136 = vsub.f32 %v4064, %v4120
  %4145 = vrot.lane.b32.xlu0 %v3937, 12
  %v4146 = vpop.permute.xlu0 %4145
  %4147 = vrot.lane.b32.xlu0 %v3938, 12
  %v4148 = vpop.permute.xlu0 %4147
  %4149 = vrot.lane.b32.xlu0 %v3939, 12
  %v4150 = vpop.permute.xlu0 %4149
  %4151 = vrot.lane.b32.xlu0 %v3940, 12
  %v4152 = vpop.permute.xlu0 %4151
  %4153 = vrot.lane.b32.xlu0 %v3941, 12
  %v4154 = vpop.permute.xlu0 %4153
  %4155 = vrot.lane.b32.xlu0 %v3942, 12
  %v4156 = vpop.permute.xlu0 %4155
  %4157 = vrot.lane.b32.xlu0 %v3943, 12
  %v4158 = vpop.permute.xlu0 %4157
  %4159 = vrot.lane.b32.xlu0 %v3944, 12
  %v4160 = vpop.permute.xlu0 %4159
  %v4169 = vmul.f32 %v3161, %v4146
  %v4170 = vmul.f32 %v3162, %v4148
  %v4171 = vmul.f32 %v3163, %v4150
  %v4172 = vmul.f32 %v3164, %v4152
  %v4173 = vmul.f32 %v3165, %v4154
  %v4174 = vmul.f32 %v3166, %v4156
  %v4175 = vmul.f32 %v3167, %v4158
  %v4176 = vmul.f32 %v3168, %v4160
  %4185 = vrot.lane.b32.xlu0 %v4169, 117
  %v4186 = vpop.permute.xlu0 %4185
  %4187 = vrot.lane.b32.xlu0 %v4170, 117
  %v4188 = vpop.permute.xlu0 %4187
  %4189 = vrot.lane.b32.xlu0 %v4171, 117
  %v4190 = vpop.permute.xlu0 %4189
  %4191 = vrot.lane.b32.xlu0 %v4172, 117
  %v4192 = vpop.permute.xlu0 %4191
  %4193 = vrot.lane.b32.xlu0 %v4173, 117
  %v4194 = vpop.permute.xlu0 %4193
  %4195 = vrot.lane.b32.xlu0 %v4174, 117
  %v4196 = vpop.permute.xlu0 %4195
  %4197 = vrot.lane.b32.xlu0 %v4175, 117
  %v4198 = vpop.permute.xlu0 %4197
  %4199 = vrot.lane.b32.xlu0 %v4176, 117
  %v4200 = vpop.permute.xlu0 %4199
  %v4209 = vsub.f32 %v4129, %v4186
  %v4210 = vsub.f32 %v4130, %v4188
  %v4211 = vsub.f32 %v4131, %v4190
  %v4212 = vsub.f32 %v4132, %v4192
  %v4213 = vsub.f32 %v4133, %v4194
  %v4214 = vsub.f32 %v4134, %v4196
  %v4215 = vsub.f32 %v4135, %v4198
  %v4216 = vsub.f32 %v4136, %v4200
  %4225 = vrot.lane.b32.xlu0 %v3378, 116
  %v4226 = vpop.permute.xlu0 %4225
  %4227 = vrot.lane.b32.xlu0 %v3380, 116
  %v4228 = vpop.permute.xlu0 %4227
  %4229 = vrot.lane.b32.xlu0 %v3382, 116
  %v4230 = vpop.permute.xlu0 %4229
  %4231 = vrot.lane.b32.xlu0 %v3384, 116
  %v4232 = vpop.permute.xlu0 %4231
  %4233 = vrot.lane.b32.xlu0 %v3386, 116
  %v4234 = vpop.permute.xlu0 %4233
  %4235 = vrot.lane.b32.xlu0 %v3388, 116
  %v4236 = vpop.permute.xlu0 %4235
  %4237 = vrot.lane.b32.xlu0 %v3390, 116
  %v4238 = vpop.permute.xlu0 %4237
  %4239 = vrot.lane.b32.xlu0 %v3392, 116
  %v4240 = vpop.permute.xlu0 %4239
  %v4249 = vmul.f32 %v4209, %v4226
  %v4250 = vmul.f32 %v4210, %v4228
  %v4251 = vmul.f32 %v4211, %v4230
  %v4252 = vmul.f32 %v4212, %v4232
  %v4253 = vmul.f32 %v4213, %v4234
  %v4254 = vmul.f32 %v4214, %v4236
  %v4255 = vmul.f32 %v4215, %v4238
  %v4256 = vmul.f32 %v4216, %v4240
  %v4257 = vmul.f32 %v4249, %v4249
  %v4258 = vmul.f32 %v4250, %v4250
  %v4259 = vmul.f32 %v4251, %v4251
  %v4260 = vmul.f32 %v4252, %v4252
  %v4261 = vmul.f32 %v4253, %v4253
  %v4262 = vmul.f32 %v4254, %v4254
  %v4263 = vmul.f32 %v4255, %v4255
  %v4264 = vmul.f32 %v4256, %v4256
  %4273 = vrot.lane.b32.xlu0 %v4257, 125
  %v4274 = vpop.permute.xlu0 %4273
  %4275 = vrot.lane.b32.xlu0 %v4258, 125
  %v4276 = vpop.permute.xlu0 %4275
  %4277 = vrot.lane.b32.xlu0 %v4259, 125
  %v4278 = vpop.permute.xlu0 %4277
  %4279 = vrot.lane.b32.xlu0 %v4260, 125
  %v4280 = vpop.permute.xlu0 %4279
  %4281 = vrot.lane.b32.xlu0 %v4261, 125
  %v4282 = vpop.permute.xlu0 %4281
  %4283 = vrot.lane.b32.xlu0 %v4262, 125
  %v4284 = vpop.permute.xlu0 %4283
  %4285 = vrot.lane.b32.xlu0 %v4263, 125
  %v4286 = vpop.permute.xlu0 %4285
  %4287 = vrot.lane.b32.xlu0 %v4264, 125
  %v4288 = vpop.permute.xlu0 %4287
  %v4297 = vadd.f32 %v3985, %v4274
  %v4298 = vadd.f32 %v3986, %v4276
  %v4299 = vadd.f32 %v3987, %v4278
  %v4300 = vadd.f32 %v3988, %v4280
  %v4301 = vadd.f32 %v3989, %v4282
  %v4302 = vadd.f32 %v3990, %v4284
  %v4303 = vadd.f32 %v3991, %v4286
  %v4304 = vadd.f32 %v3992, %v4288
  %v4305 = vmul.f32 %v3577, 0.5
  %v4306 = vmul.f32 %v3578, 0.5
  %v4307 = vmul.f32 %v3579, 0.5
  %v4308 = vmul.f32 %v3580, 0.5
  %v4309 = vmul.f32 %v3581, 0.5
  %v4310 = vmul.f32 %v3582, 0.5
  %v4311 = vmul.f32 %v3583, 0.5
  %v4312 = vmul.f32 %v3584, 0.5
  %v4313 = vsub.f32 -3.675754, %v4305
  %v4314 = vsub.f32 -3.675754, %v4306
  %v4315 = vsub.f32 -3.675754, %v4307
  %v4316 = vsub.f32 -3.675754, %v4308
  %v4317 = vsub.f32 -3.675754, %v4309
  %v4318 = vsub.f32 -3.675754, %v4310
  %v4319 = vsub.f32 -3.675754, %v4311
  %v4320 = vsub.f32 -3.675754, %v4312
  %v4321 = vmul.f32 %v4297, 0.5
  %v4322 = vmul.f32 %v4298, 0.5
  %v4323 = vmul.f32 %v4299, 0.5
  %v4324 = vmul.f32 %v4300, 0.5
  %v4325 = vmul.f32 %v4301, 0.5
  %v4326 = vmul.f32 %v4302, 0.5
  %v4327 = vmul.f32 %v4303, 0.5
  %v4328 = vmul.f32 %v4304, 0.5
  %v4329 = vsub.f32 %v4313, %v4321
  %v4330 = vsub.f32 %v4314, %v4322
  %v4331 = vsub.f32 %v4315, %v4323
  %v4332 = vsub.f32 %v4316, %v4324
  %v4333 = vsub.f32 %v4317, %v4325
  %v4334 = vsub.f32 %v4318, %v4326
  %v4335 = vsub.f32 %v4319, %v4327
  %v4336 = vsub.f32 %v4320, %v4328
  %v4337 = vadd.f32 %v4329, %v4330
  %v4338 = vadd.f32 %v4337, %v4331
  %v4339 = vadd.f32 %v4338, %v4332
  %v4340 = vadd.f32 %v4339, %v4333
  %v4341 = vadd.f32 %v4340, %v4334
  %v4342 = vadd.f32 %v4341, %v4335
  %v4343 = vadd.f32 %v4342, %v4336
  %vm4344 = vcmask 7168
  %4345 = vst.msk [vmem:[%s15] sm:$0xff] %vm4344, %v4343
  // Predicated region
  $region62: #{semidanse_forward.1} parent=0 // pred_check
    _
  $region63: #{semidanse_forward.1} parent=0 // pred_check_branch
    %4347 = sbr.rel (0) target = $region65
  $region64: #{semidanse_forward.1} parent=0 // pred_region
    _
  $region65: #{semidanse_forward.1} parent=0 // pred_fallthru
    _
  // Predicated region
  $region66: #{semidanse_forward.1} parent=0 // pred_check
    _
  $region67: #{semidanse_forward.1} parent=0 // pred_check_branch
    %4349 = sbr.rel (0) target = $region69
  $region68: #{semidanse_forward.1} parent=0 // pred_region
    _
  $region69: #{semidanse_forward.1} parent=0 // pred_fallthru
    _

</llo_original>
